<compile_context>
chip_gen: v7x
topology: tpu7x:2x2x1
jax: 0.10.0
libtpu: 0.0.40
codegen_flags: <defaults>
</compile_context>

<pallas_src>
import functools
from dataclasses import dataclass, field
from typing import List, Tuple

import jax
import jax.numpy as jnp
from jax.experimental import pallas as pl
from jax.experimental.pallas import tpu as pltpu


# ----------------------------------------------------------------------------
# Hardware / budget helpers
# ----------------------------------------------------------------------------
def _physical_vmem_bytes() -> int:
    try:
        return int(pltpu.get_tpu_info().vmem_capacity_bytes)
    except Exception:
        return 64 * 1024 * 1024          # conservative fallback (v7x per-TC)


def _vmem_limit_bytes() -> int:
    # Raise the default scoped limit, but leave ~30% headroom for Mosaic
    # internal scratch and pipeline buffers.
    return int(_physical_vmem_bytes() * 0.7)


def _resident_param_bytes(weights, biases, buffer_count: int) -> int:
    wb = sum(int(w.shape[0]) * int(w.shape[1]) * 2 for w in weights)      # bf16
    bb = sum(max(int(b.shape[-1]), 128) * 4 for b in biases)              # f32
    return (wb + bb) * buffer_count


def _fits_whole_model(weights, biases) -> bool:
    # Weights are single-buffered; budget <=45% of physical VMEM for resident
    # parameters so activation tiles + compiler scratch still fit (the guard
    # that matters on v7x's 64 MiB VMEM).
    return _resident_param_bytes(weights, biases, buffer_count=1) <= int(
        _physical_vmem_bytes() * 0.45)


def _row_tile(batch: int) -> int:
    """Row tile: multiple of 16 (bf16 sublane packing), divides batch, as large
    as possible up to 512, while keeping >= 2 grid steps (v7x megacore) when
    the batch allows it."""
    cap = min(batch, 512)
    if batch >= 32:                       # room for >=2 steps of >=16 rows
        cap = min(cap, batch // 2)
    tm = (cap // 16) * 16
    while tm >= 16 and batch % tm != 0:
        tm -= 16
    if tm < 16 or batch % tm != 0:
        tm = batch                        # full-extent block is always legal
    return tm


# ----------------------------------------------------------------------------
# Fused multi-layer Linear(+ReLU) Pallas kernel
# ----------------------------------------------------------------------------
def _fused_mlp_kernel(*refs, n_layers: int, relu_flags: Tuple[bool, ...]):
    # refs layout: x_ref, (w1, b1), (w2, b2), ..., (wN, bN), o_ref
    x_ref = refs[0]
    o_ref = refs[1 + 2 * n_layers]

    # Cast to bf16 inside the kernel (no separate XLA cast op / HBM round trip).
    h = x_ref[...].astype(jnp.bfloat16)              # (TM, D0), VMEM-resident
    for l in range(n_layers):
        w_ref = refs[1 + 2 * l]                      # bf16 (D_l, D_{l+1}), resident
        b_ref = refs[2 + 2 * l]                      # f32  (1,  D_{l+1}), resident
        acc = jnp.dot(h, w_ref[...],
                      preferred_element_type=jnp.float32)   # MXU, f32 accumulate
        acc = acc + b_ref[...]                       # f32 VPU epilogue (v5e-safe)
        if relu_flags[l]:
            acc = jnp.maximum(acc, 0.0)
        # Keep the activation in VMEM; feed the next MXU pass as bf16.
        h = acc.astype(jnp.bfloat16) if l + 1 < n_layers else acc

    o_ref[...] = h.astype(o_ref.dtype)


@functools.partial(jax.jit,
                   static_argnames=("relu_flags", "tile_m", "single_buffer_params"))
def _fused_mlp_call(x, weights, biases, *, relu_flags, tile_m, single_buffer_params):
    batch, d_in = x.shape
    n_layers = len(weights)
    d_out = weights[-1].shape[1]

    tm = tile_m
    grid = (batch // tm,)

    def _const_spec(shape):
        # Constant index_map -> block never changes; Buffered(1) keeps a single
        # resident copy instead of the default double buffer.
        if single_buffer_params:
            return pl.BlockSpec(shape, lambda i: (0, 0),
                                pipeline_mode=pl.Buffered(1))
        return pl.BlockSpec(shape, lambda i: (0, 0))

    in_specs = [pl.BlockSpec((tm, d_in), lambda i: (i, 0))]   # activation tile (f32)
    operands = [x]
    for w, b in zip(weights, biases):
        di, do = w.shape
        in_specs.append(_const_spec((di, do)))
        in_specs.append(_const_spec((1, do)))
        operands.append(w.astype(jnp.bfloat16))
        operands.append(b.reshape(1, do).astype(jnp.float32))

    kernel = functools.partial(_fused_mlp_kernel,
                               n_layers=n_layers, relu_flags=relu_flags)

    return pl.pallas_call(
        kernel,
        out_shape=jax.ShapeDtypeStruct((batch, d_out), jnp.float32),
        grid_spec=pltpu.PrefetchScalarGridSpec(
            num_scalar_prefetch=0,
            grid=grid,
            in_specs=in_specs,
            out_specs=pl.BlockSpec((tm, d_out), lambda i: (i, 0)),
        ),
        compiler_params=pltpu.CompilerParams(
            # Batch axis is independent -> shard across both v7x TensorCores.
            dimension_semantics=("parallel",),
            vmem_limit_bytes=_vmem_limit_bytes(),
        ),
    )(*operands)


def fused_mlp_forward(x, weights, biases, *, relu_flags):
    """y = (...relu(relu(x @ W1 + b1) @ W2 + b2)... @ WN + bN) in one pallas_call."""
    tm = _row_tile(x.shape[0])
    try:
        return _fused_mlp_call(x, weights, biases, relu_flags=relu_flags,
                               tile_m=tm, single_buffer_params=True)
    except Exception:
        # Safety net: if this Mosaic version rejects Buffered(1), fall back to
        # the default double-buffered parameter specs (identical math).
        return _fused_mlp_call(x, weights, biases, relu_flags=relu_flags,
                               tile_m=tm, single_buffer_params=False)


# ----------------------------------------------------------------------------
# JAX mirrors of PipelineConfig / PipelineStage / PipelineParallelModel
# ----------------------------------------------------------------------------
@dataclass
class PipelineConfig:
    pipeline_parallel_size: int = 1
    micro_batch_size: int = 1        # pipeline concept only; NOT the kernel tile
    chunks: int = 1
    checkpoint: str = "never"


@dataclass
class LinearLayerParams:
    weight: jax.Array        # (in_features, out_features), bf16 MXU operand
    bias: jax.Array          # (out_features,), f32
    apply_relu: bool


@dataclass
class PipelineStage:
    layers: List[LinearLayerParams]
    stage_id: int
    is_first_stage: bool = False
    is_last_stage: bool = False

    def __post_init__(self):
        self.is_first_stage = self.stage_id == 0

    def forward(self, x: jax.Array) -> jax.Array:
        # Per-stage fused kernel (used when the whole model's weights would not
        # fit in VMEM, or what a single rank runs in the multi-rank pipeline).
        w = tuple(l.weight for l in self.layers)
        b = tuple(l.bias for l in self.layers)
        r = tuple(l.apply_relu for l in self.layers)
        return fused_mlp_forward(x, w, b, relu_flags=r)


@dataclass
class PipelineParallelModel:
    stages: List[PipelineStage]
    config: PipelineConfig = field(default_factory=PipelineConfig)

    def __post_init__(self):
        self.num_stages = len(self.stages)
        if self.stages:
            self.stages[-1].is_last_stage = True
        self.current_stage_id = 0   # get_pipeline_model_parallel_rank() == 0

    def forward(self, x: jax.Array) -> jax.Array:
        if self.config.pipeline_parallel_size == 1:
            # Single-rank path of the reference: every stage runs sequentially
            # on this device.  Fuse all layers of all stages into ONE kernel
            # when the resident parameters fit the VMEM budget (per-generation
            # guard -- v7x has only 64 MiB), otherwise fall back to per-stage
            # fused kernels.
            layers = [l for stage in self.stages for l in stage.layers]
            w = tuple(l.weight for l in layers)
            b = tuple(l.bias for l in layers)
            r = tuple(l.apply_relu for l in layers)
            if _fits_whole_model(w, b):
                return fused_mlp_forward(x, w, b, relu_flags=r)
            for stage in self.stages:
                x = stage.forward(x)
            return x
        # TODO(synk): multi-rank pipeline (dist.send/recv) would need
        # make_async_remote_copy between ranks; not exercised at world_size==1.
        raise NotImplementedError("multi-rank pipeline requires RDMA")


# ----------------------------------------------------------------------------
# Deterministic parameter construction
# ----------------------------------------------------------------------------
def _make_linear(key, d_in: int, d_out: int, apply_relu: bool) -> LinearLayerParams:
    kw, kb = jax.random.split(key)
    bound = 1.0 / jnp.sqrt(d_in)
    w = jax.random.uniform(kw, (d_in, d_out), jnp.float32, -bound, bound)
    b = jax.random.uniform(kb, (d_out,), jnp.float32, -bound, bound)
    # bf16 weight storage: matches the MXU operand path (reference below uses
    # the identical dtype path; documented deviation from fp32 nn.Linear).
    return LinearLayerParams(weight=w.astype(jnp.bfloat16), bias=b,
                             apply_relu=apply_relu)


def build_model(key, d_in: int, d_hidden: int, d_out: int) -> PipelineParallelModel:
    keys = jax.random.split(key, 4)
    stage0 = PipelineStage(
        layers=[
            _make_linear(keys[0], d_in, d_hidden, apply_relu=True),
            _make_linear(keys[1], d_hidden, d_hidden, apply_relu=True),
        ],
        stage_id=0,
    )
    stage1 = PipelineStage(
        layers=[
            _make_linear(keys[2], d_hidden, d_hidden, apply_relu=True),
            _make_linear(keys[3], d_hidden, d_out, apply_relu=False),
        ],
        stage_id=1,
    )
    return PipelineParallelModel(
        stages=[stage0, stage1],
        config=PipelineConfig(pipeline_parallel_size=1, micro_batch_size=16),
    )


# ----------------------------------------------------------------------------
# Main
# ----------------------------------------------------------------------------
if __name__ == "__main__":
    key = jax.random.PRNGKey(0)
    k_params, k_x = jax.random.split(key)

    # Feature dims multiples of 256 (full K-occupancy on v6e/v7x MXU, lane-
    # dense stores everywhere); batch large enough to give a 128-row tile and
    # >= 2 parallel grid steps (both v7x TensorCores busy).
    batch, d_in, d_hidden, d_out = 256, 256, 256, 128
    model = build_model(k_params, d_in, d_hidden, d_out)

    x = jax.random.normal(k_x, (batch, d_in), jnp.float32)

    out = jax.block_until_ready(model.forward(x))

    # Pure-JAX reference following the exact same dtype path
    # (bf16 MXU operands, f32 accumulation, f32 bias/ReLU epilogue).
    layers = [l for stage in model.stages for l in stage.layers]
    h = x.astype(jnp.bfloat16)
    for idx, layer in enumerate(layers):
        acc = jnp.dot(h, layer.weight.astype(jnp.bfloat16),
                      preferred_element_type=jnp.float32)
        acc = acc + layer.bias.astype(jnp.float32)[None, :]
        if layer.apply_relu:
            acc = jnp.maximum(acc, 0.0)
        h = acc.astype(jnp.bfloat16) if idx + 1 < len(layers) else acc
    ref = h

    assert out.shape == (batch, d_out)
    assert out.dtype == jnp.float32
    assert jnp.allclose(out, ref, atol=2e-2, rtol=2e-2), \
        float(jnp.max(jnp.abs(out - ref)))

    print("KERNEL_OK")
</pallas_src>

<mosaic_0001>
module attributes {stable_mosaic.version = 11 : i64} {
  func.func @_fused_mlp_kernel(%arg0: i32, %arg1: memref<128x256xf32, #tpu.memory_space<vmem>>, %arg2: memref<256x256xbf16, #tpu.memory_space<vmem>>, %arg3: memref<1x256xf32, #tpu.memory_space<vmem>>, %arg4: memref<256x256xbf16, #tpu.memory_space<vmem>>, %arg5: memref<1x256xf32, #tpu.memory_space<vmem>>, %arg6: memref<256x256xbf16, #tpu.memory_space<vmem>>, %arg7: memref<1x256xf32, #tpu.memory_space<vmem>>, %arg8: memref<256x128xbf16, #tpu.memory_space<vmem>>, %arg9: memref<1x128xf32, #tpu.memory_space<vmem>>, %arg10: memref<128x128xf32, #tpu.memory_space<vmem>>) attributes {dimension_semantics = [#tpu.dimension_semantics<parallel>], iteration_bounds = array<i64: 2>, scalar_prefetch = 0 : i64, scratch_operands = 0 : i64, tpu.core_type = #tpu.core_type<tc>, window_params = [{transform_indices = @transform_0, window_bounds = array<i64: 128, 256>}, {pipeline_mode = #tpu.pipeline_mode<synchronous>, transform_indices = @transform_1, window_bounds = array<i64: 256, 256>}, {pipeline_mode = #tpu.pipeline_mode<synchronous>, transform_indices = @transform_2, window_bounds = array<i64: 1, 256>}, {pipeline_mode = #tpu.pipeline_mode<synchronous>, transform_indices = @transform_3, window_bounds = array<i64: 256, 256>}, {pipeline_mode = #tpu.pipeline_mode<synchronous>, transform_indices = @transform_4, window_bounds = array<i64: 1, 256>}, {pipeline_mode = #tpu.pipeline_mode<synchronous>, transform_indices = @transform_5, window_bounds = array<i64: 256, 256>}, {pipeline_mode = #tpu.pipeline_mode<synchronous>, transform_indices = @transform_6, window_bounds = array<i64: 1, 256>}, {pipeline_mode = #tpu.pipeline_mode<synchronous>, transform_indices = @transform_7, window_bounds = array<i64: 256, 128>}, {pipeline_mode = #tpu.pipeline_mode<synchronous>, transform_indices = @transform_8, window_bounds = array<i64: 1, 128>}, {transform_indices = @transform_9, window_bounds = array<i64: 128, 128>}]} {
    %c0 = arith.constant 0 : index
    %c0_0 = arith.constant 0 : index
    %0 = vector.load %arg1[%c0, %c0_0] : memref<128x256xf32, #tpu.memory_space<vmem>>, vector<128x256xf32>
    %1 = arith.truncf %0 : vector<128x256xf32> to vector<128x256xbf16>
    %c0_1 = arith.constant 0 : index
    %c0_2 = arith.constant 0 : index
    %2 = vector.load %arg2[%c0_1, %c0_2] : memref<256x256xbf16, #tpu.memory_space<vmem>>, vector<256x256xbf16>
    %cst = arith.constant dense<0.000000e+00> : vector<128x256xf32>
    %3 = tpu.matmul %1, %2, %cst {dimension_numbers = #tpu.dot_dimension_numbers<[1], [0], [0], [1], [0, 0, 1, 1], [], []>} : vector<128x256xbf16>, vector<256x256xbf16>, vector<128x256xf32> -> vector<128x256xf32>
    %c0_3 = arith.constant 0 : index
    %c0_4 = arith.constant 0 : index
    %4 = vector.load %arg3[%c0_3, %c0_4] : memref<1x256xf32, #tpu.memory_space<vmem>>, vector<1x256xf32>
    %5 = vector.broadcast %4 : vector<1x256xf32> to vector<128x256xf32>
    %6 = arith.addf %3, %5 : vector<128x256xf32>
    %cst_5 = arith.constant 0.000000e+00 : f32
    %7 = vector.broadcast %cst_5 : f32 to vector<128x256xf32>
    %8 = arith.maximumf %6, %7 : vector<128x256xf32>
    %9 = arith.truncf %8 : vector<128x256xf32> to vector<128x256xbf16>
    %c0_6 = arith.constant 0 : index
    %c0_7 = arith.constant 0 : index
    %10 = vector.load %arg4[%c0_6, %c0_7] : memref<256x256xbf16, #tpu.memory_space<vmem>>, vector<256x256xbf16>
    %cst_8 = arith.constant dense<0.000000e+00> : vector<128x256xf32>
    %11 = tpu.matmul %9, %10, %cst_8 {dimension_numbers = #tpu.dot_dimension_numbers<[1], [0], [0], [1], [0, 0, 1, 1], [], []>} : vector<128x256xbf16>, vector<256x256xbf16>, vector<128x256xf32> -> vector<128x256xf32>
    %c0_9 = arith.constant 0 : index
    %c0_10 = arith.constant 0 : index
    %12 = vector.load %arg5[%c0_9, %c0_10] : memref<1x256xf32, #tpu.memory_space<vmem>>, vector<1x256xf32>
    %13 = vector.broadcast %12 : vector<1x256xf32> to vector<128x256xf32>
    %14 = arith.addf %11, %13 : vector<128x256xf32>
    %cst_11 = arith.constant 0.000000e+00 : f32
    %15 = vector.broadcast %cst_11 : f32 to vector<128x256xf32>
    %16 = arith.maximumf %14, %15 : vector<128x256xf32>
    %17 = arith.truncf %16 : vector<128x256xf32> to vector<128x256xbf16>
    %c0_12 = arith.constant 0 : index
    %c0_13 = arith.constant 0 : index
    %18 = vector.load %arg6[%c0_12, %c0_13] : memref<256x256xbf16, #tpu.memory_space<vmem>>, vector<256x256xbf16>
    %cst_14 = arith.constant dense<0.000000e+00> : vector<128x256xf32>
    %19 = tpu.matmul %17, %18, %cst_14 {dimension_numbers = #tpu.dot_dimension_numbers<[1], [0], [0], [1], [0, 0, 1, 1], [], []>} : vector<128x256xbf16>, vector<256x256xbf16>, vector<128x256xf32> -> vector<128x256xf32>
    %c0_15 = arith.constant 0 : index
    %c0_16 = arith.constant 0 : index
    %20 = vector.load %arg7[%c0_15, %c0_16] : memref<1x256xf32, #tpu.memory_space<vmem>>, vector<1x256xf32>
    %21 = vector.broadcast %20 : vector<1x256xf32> to vector<128x256xf32>
    %22 = arith.addf %19, %21 : vector<128x256xf32>
    %cst_17 = arith.constant 0.000000e+00 : f32
    %23 = vector.broadcast %cst_17 : f32 to vector<128x256xf32>
    %24 = arith.maximumf %22, %23 : vector<128x256xf32>
    %25 = arith.truncf %24 : vector<128x256xf32> to vector<128x256xbf16>
    %c0_18 = arith.constant 0 : index
    %c0_19 = arith.constant 0 : index
    %26 = vector.load %arg8[%c0_18, %c0_19] : memref<256x128xbf16, #tpu.memory_space<vmem>>, vector<256x128xbf16>
    %cst_20 = arith.constant dense<0.000000e+00> : vector<128x128xf32>
    %27 = tpu.matmul %25, %26, %cst_20 {dimension_numbers = #tpu.dot_dimension_numbers<[1], [0], [0], [1], [0, 0, 1, 1], [], []>} : vector<128x256xbf16>, vector<256x128xbf16>, vector<128x128xf32> -> vector<128x128xf32>
    %c0_21 = arith.constant 0 : index
    %c0_22 = arith.constant 0 : index
    %28 = vector.load %arg9[%c0_21, %c0_22] : memref<1x128xf32, #tpu.memory_space<vmem>>, vector<1x128xf32>
    %29 = vector.broadcast %28 : vector<1x128xf32> to vector<128x128xf32>
    %30 = arith.addf %27, %29 : vector<128x128xf32>
    %c0_23 = arith.constant 0 : index
    %c0_24 = arith.constant 0 : index
    %31 = vector.load %arg10[%c0_23, %c0_24] : memref<128x128xf32, #tpu.memory_space<vmem>>, vector<128x128xf32>
    tpu.vector_store %arg10[%c0_23, %c0_24], %30 {strides = array<i32>} : memref<128x128xf32, #tpu.memory_space<vmem>>, vector<128x128xf32>,
    return
  }
  func.func @transform_0(%arg0: i32) -> (i32, i32) {
    %c0_i32 = arith.constant 0 : i32
    %c0_i32_0 = arith.constant 0 : i32
    return %arg0, %c0_i32 : i32, i32
  }
  func.func @transform_1(%arg0: i32) -> (i32, i32) {
    %c0_i32 = arith.constant 0 : i32
    %c0_i32_0 = arith.constant 0 : i32
    %c0_i32_1 = arith.constant 0 : i32
    return %c0_i32, %c0_i32_0 : i32, i32
  }
  func.func @transform_2(%arg0: i32) -> (i32, i32) {
    %c0_i32 = arith.constant 0 : i32
    %c0_i32_0 = arith.constant 0 : i32
    %c0_i32_1 = arith.constant 0 : i32
    return %c0_i32, %c0_i32_0 : i32, i32
  }
  func.func @transform_3(%arg0: i32) -> (i32, i32) {
    %c0_i32 = arith.constant 0 : i32
    %c0_i32_0 = arith.constant 0 : i32
    %c0_i32_1 = arith.constant 0 : i32
    return %c0_i32, %c0_i32_0 : i32, i32
  }
  func.func @transform_4(%arg0: i32) -> (i32, i32) {
    %c0_i32 = arith.constant 0 : i32
    %c0_i32_0 = arith.constant 0 : i32
    %c0_i32_1 = arith.constant 0 : i32
    return %c0_i32, %c0_i32_0 : i32, i32
  }
  func.func @transform_5(%arg0: i32) -> (i32, i32) {
    %c0_i32 = arith.constant 0 : i32
    %c0_i32_0 = arith.constant 0 : i32
    %c0_i32_1 = arith.constant 0 : i32
    return %c0_i32, %c0_i32_0 : i32, i32
  }
  func.func @transform_6(%arg0: i32) -> (i32, i32) {
    %c0_i32 = arith.constant 0 : i32
    %c0_i32_0 = arith.constant 0 : i32
    %c0_i32_1 = arith.constant 0 : i32
    return %c0_i32, %c0_i32_0 : i32, i32
  }
  func.func @transform_7(%arg0: i32) -> (i32, i32) {
    %c0_i32 = arith.constant 0 : i32
    %c0_i32_0 = arith.constant 0 : i32
    %c0_i32_1 = arith.constant 0 : i32
    return %c0_i32, %c0_i32_0 : i32, i32
  }
  func.func @transform_8(%arg0: i32) -> (i32, i32) {
    %c0_i32 = arith.constant 0 : i32
    %c0_i32_0 = arith.constant 0 : i32
    %c0_i32_1 = arith.constant 0 : i32
    return %c0_i32, %c0_i32_0 : i32, i32
  }
  func.func @transform_9(%arg0: i32) -> (i32, i32) {
    %c0_i32 = arith.constant 0 : i32
    %c0_i32_0 = arith.constant 0 : i32
    return %arg0, %c0_i32 : i32, i32
  }
}

module attributes {stable_mosaic.version = 11 : i64} {
  func.func @_fused_mlp_kernel(%arg0: i32, %arg1: memref<128x256xf32, #tpu.memory_space<vmem>>, %arg2: memref<256x256xbf16, #tpu.memory_space<vmem>>, %arg3: memref<1x256xf32, #tpu.memory_space<vmem>>, %arg4: memref<256x256xbf16, #tpu.memory_space<vmem>>, %arg5: memref<1x256xf32, #tpu.memory_space<vmem>>, %arg6: memref<256x256xbf16, #tpu.memory_space<vmem>>, %arg7: memref<1x256xf32, #tpu.memory_space<vmem>>, %arg8: memref<256x128xbf16, #tpu.memory_space<vmem>>, %arg9: memref<1x128xf32, #tpu.memory_space<vmem>>, %arg10: memref<128x128xf32, #tpu.memory_space<vmem>>) attributes {dimension_semantics = [#tpu.dimension_semantics<parallel>], iteration_bounds = array<i64: 2>, scalar_prefetch = 0 : i64, scratch_operands = 0 : i64, tpu.core_type = #tpu.core_type<tc>, window_params = [{transform_indices = @transform_0, window_bounds = array<i64: 128, 256>}, {pipeline_mode = #tpu.pipeline_mode<synchronous>, transform_indices = @transform_1, window_bounds = array<i64: 256, 256>}, {pipeline_mode = #tpu.pipeline_mode<synchronous>, transform_indices = @transform_2, window_bounds = array<i64: 1, 256>}, {pipeline_mode = #tpu.pipeline_mode<synchronous>, transform_indices = @transform_3, window_bounds = array<i64: 256, 256>}, {pipeline_mode = #tpu.pipeline_mode<synchronous>, transform_indices = @transform_4, window_bounds = array<i64: 1, 256>}, {pipeline_mode = #tpu.pipeline_mode<synchronous>, transform_indices = @transform_5, window_bounds = array<i64: 256, 256>}, {pipeline_mode = #tpu.pipeline_mode<synchronous>, transform_indices = @transform_6, window_bounds = array<i64: 1, 256>}, {pipeline_mode = #tpu.pipeline_mode<synchronous>, transform_indices = @transform_7, window_bounds = array<i64: 256, 128>}, {pipeline_mode = #tpu.pipeline_mode<synchronous>, transform_indices = @transform_8, window_bounds = array<i64: 1, 128>}, {transform_indices = @transform_9, window_bounds = array<i64: 128, 128>}]} {
    %c0 = arith.constant 0 : index
    %c0_0 = arith.constant 0 : index
    %0 = vector.load %arg1[%c0, %c0_0] : memref<128x256xf32, #tpu.memory_space<vmem>>, vector<128x256xf32>
    %1 = arith.truncf %0 : vector<128x256xf32> to vector<128x256xbf16>
    %c0_1 = arith.constant 0 : index
    %c0_2 = arith.constant 0 : index
    %2 = vector.load %arg2[%c0_1, %c0_2] : memref<256x256xbf16, #tpu.memory_space<vmem>>, vector<256x256xbf16>
    %cst = arith.constant dense<0.000000e+00> : vector<128x256xf32>
    %3 = tpu.matmul %1, %2, %cst {dimension_numbers = #tpu.dot_dimension_numbers<[1], [0], [0], [1], [0, 0, 1, 1], [], []>} : vector<128x256xbf16>, vector<256x256xbf16>, vector<128x256xf32> -> vector<128x256xf32>
    %c0_3 = arith.constant 0 : index
    %c0_4 = arith.constant 0 : index
    %4 = vector.load %arg3[%c0_3, %c0_4] : memref<1x256xf32, #tpu.memory_space<vmem>>, vector<1x256xf32>
    %5 = vector.broadcast %4 : vector<1x256xf32> to vector<128x256xf32>
    %6 = arith.addf %3, %5 : vector<128x256xf32>
    %cst_5 = arith.constant 0.000000e+00 : f32
    %7 = vector.broadcast %cst_5 : f32 to vector<128x256xf32>
    %8 = arith.maximumf %6, %7 : vector<128x256xf32>
    %9 = arith.truncf %8 : vector<128x256xf32> to vector<128x256xbf16>
    %c0_6 = arith.constant 0 : index
    %c0_7 = arith.constant 0 : index
    %10 = vector.load %arg4[%c0_6, %c0_7] : memref<256x256xbf16, #tpu.memory_space<vmem>>, vector<256x256xbf16>
    %cst_8 = arith.constant dense<0.000000e+00> : vector<128x256xf32>
    %11 = tpu.matmul %9, %10, %cst_8 {dimension_numbers = #tpu.dot_dimension_numbers<[1], [0], [0], [1], [0, 0, 1, 1], [], []>} : vector<128x256xbf16>, vector<256x256xbf16>, vector<128x256xf32> -> vector<128x256xf32>
    %c0_9 = arith.constant 0 : index
    %c0_10 = arith.constant 0 : index
    %12 = vector.load %arg5[%c0_9, %c0_10] : memref<1x256xf32, #tpu.memory_space<vmem>>, vector<1x256xf32>
    %13 = vector.broadcast %12 : vector<1x256xf32> to vector<128x256xf32>
    %14 = arith.addf %11, %13 : vector<128x256xf32>
    %cst_11 = arith.constant 0.000000e+00 : f32
    %15 = vector.broadcast %cst_11 : f32 to vector<128x256xf32>
    %16 = arith.maximumf %14, %15 : vector<128x256xf32>
    %17 = arith.truncf %16 : vector<128x256xf32> to vector<128x256xbf16>
    %c0_12 = arith.constant 0 : index
    %c0_13 = arith.constant 0 : index
    %18 = vector.load %arg6[%c0_12, %c0_13] : memref<256x256xbf16, #tpu.memory_space<vmem>>, vector<256x256xbf16>
    %cst_14 = arith.constant dense<0.000000e+00> : vector<128x256xf32>
    %19 = tpu.matmul %17, %18, %cst_14 {dimension_numbers = #tpu.dot_dimension_numbers<[1], [0], [0], [1], [0, 0, 1, 1], [], []>} : vector<128x256xbf16>, vector<256x256xbf16>, vector<128x256xf32> -> vector<128x256xf32>
    %c0_15 = arith.constant 0 : index
    %c0_16 = arith.constant 0 : index
    %20 = vector.load %arg7[%c0_15, %c0_16] : memref<1x256xf32, #tpu.memory_space<vmem>>, vector<1x256xf32>
    %21 = vector.broadcast %20 : vector<1x256xf32> to vector<128x256xf32>
    %22 = arith.addf %19, %21 : vector<128x256xf32>
    %cst_17 = arith.constant 0.000000e+00 : f32
    %23 = vector.broadcast %cst_17 : f32 to vector<128x256xf32>
    %24 = arith.maximumf %22, %23 : vector<128x256xf32>
    %25 = arith.truncf %24 : vector<128x256xf32> to vector<128x256xbf16>
    %c0_18 = arith.constant 0 : index
    %c0_19 = arith.constant 0 : index
    %26 = vector.load %arg8[%c0_18, %c0_19] : memref<256x128xbf16, #tpu.memory_space<vmem>>, vector<256x128xbf16>
    %cst_20 = arith.constant dense<0.000000e+00> : vector<128x128xf32>
    %27 = tpu.matmul %25, %26, %cst_20 {dimension_numbers = #tpu.dot_dimension_numbers<[1], [0], [0], [1], [0, 0, 1, 1], [], []>} : vector<128x256xbf16>, vector<256x128xbf16>, vector<128x128xf32> -> vector<128x128xf32>
    %c0_21 = arith.constant 0 : index
    %c0_22 = arith.constant 0 : index
    %28 = vector.load %arg9[%c0_21, %c0_22] : memref<1x128xf32, #tpu.memory_space<vmem>>, vector<1x128xf32>
    %29 = vector.broadcast %28 : vector<1x128xf32> to vector<128x128xf32>
    %30 = arith.addf %27, %29 : vector<128x128xf32>
    %c0_23 = arith.constant 0 : index
    %c0_24 = arith.constant 0 : index
    %31 = vector.load %arg10[%c0_23, %c0_24] : memref<128x128xf32, #tpu.memory_space<vmem>>, vector<128x128xf32>
    tpu.vector_store %arg10[%c0_23, %c0_24], %30 {strides = array<i32>} : memref<128x128xf32, #tpu.memory_space<vmem>>, vector<128x128xf32>,
    return
  }
  func.func @transform_0(%arg0: i32) -> (i32, i32) {
    %c0_i32 = arith.constant 0 : i32
    %c0_i32_0 = arith.constant 0 : i32
    return %arg0, %c0_i32 : i32, i32
  }
  func.func @transform_1(%arg0: i32) -> (i32, i32) {
    %c0_i32 = arith.constant 0 : i32
    %c0_i32_0 = arith.constant 0 : i32
    %c0_i32_1 = arith.constant 0 : i32
    return %c0_i32, %c0_i32_0 : i32, i32
  }
  func.func @transform_2(%arg0: i32) -> (i32, i32) {
    %c0_i32 = arith.constant 0 : i32
    %c0_i32_0 = arith.constant 0 : i32
    %c0_i32_1 = arith.constant 0 : i32
    return %c0_i32, %c0_i32_0 : i32, i32
  }
  func.func @transform_3(%arg0: i32) -> (i32, i32) {
    %c0_i32 = arith.constant 0 : i32
    %c0_i32_0 = arith.constant 0 : i32
    %c0_i32_1 = arith.constant 0 : i32
    return %c0_i32, %c0_i32_0 : i32, i32
  }
  func.func @transform_4(%arg0: i32) -> (i32, i32) {
    %c0_i32 = arith.constant 0 : i32
    %c0_i32_0 = arith.constant 0 : i32
    %c0_i32_1 = arith.constant 0 : i32
    return %c0_i32, %c0_i32_0 : i32, i32
  }
  func.func @transform_5(%arg0: i32) -> (i32, i32) {
    %c0_i32 = arith.constant 0 : i32
    %c0_i32_0 = arith.constant 0 : i32
    %c0_i32_1 = arith.constant 0 : i32
    return %c0_i32, %c0_i32_0 : i32, i32
  }
  func.func @transform_6(%arg0: i32) -> (i32, i32) {
    %c0_i32 = arith.constant 0 : i32
    %c0_i32_0 = arith.constant 0 : i32
    %c0_i32_1 = arith.constant 0 : i32
    return %c0_i32, %c0_i32_0 : i32, i32
  }
  func.func @transform_7(%arg0: i32) -> (i32, i32) {
    %c0_i32 = arith.constant 0 : i32
    %c0_i32_0 = arith.constant 0 : i32
    %c0_i32_1 = arith.constant 0 : i32
    return %c0_i32, %c0_i32_0 : i32, i32
  }
  func.func @transform_8(%arg0: i32) -> (i32, i32) {
    %c0_i32 = arith.constant 0 : i32
    %c0_i32_0 = arith.constant 0 : i32
    %c0_i32_1 = arith.constant 0 : i32
    return %c0_i32, %c0_i32_0 : i32, i32
  }
  func.func @transform_9(%arg0: i32) -> (i32, i32) {
    %c0_i32 = arith.constant 0 : i32
    %c0_i32_0 = arith.constant 0 : i32
    return %arg0, %c0_i32 : i32, i32
  }
}

</mosaic_0001>

<llo_original>
// kernel: _fused_mlp_call.1
$region0: #{_fused_mlp_call.1}
  #allocation0 [shape = 'u32[]', space=smem, size = 0x4, offset = 0x4, fixed_abs, tag = 'smem constant byte address 0x4 - core index']
  #allocation1 [shape = 'u32[144,128]{1,0:T(1,128)}', space=vmem, size = 0x12000, scoped, tag = 'internal scratch']
  %s0 = inlined_call_operand.hbm [shape: f32[256,256], index: 0, kind: input, shape index: {}]
  %s1 = inlined_call_operand.hbm [shape: bf16[256,256], index: 1, kind: input, shape index: {}]
  %s2 = inlined_call_operand.vmem [shape: f32[1,256], index: 2, kind: input, shape index: {}]
  %s3 = inlined_call_operand.hbm [shape: bf16[256,256], index: 3, kind: input, shape index: {}]
  %s4 = inlined_call_operand.vmem [shape: f32[1,256], index: 4, kind: input, shape index: {}]
  %s5 = inlined_call_operand.hbm [shape: bf16[256,256], index: 5, kind: input, shape index: {}]
  %s6 = inlined_call_operand.vmem [shape: f32[1,256], index: 6, kind: input, shape index: {}]
  %s7 = inlined_call_operand.hbm [shape: bf16[256,128], index: 7, kind: input, shape index: {}]
  %s8 = inlined_call_operand.vmem [shape: f32[1,128], index: 8, kind: input, shape index: {}]
  %s9 = inlined_call_operand.hbm [shape: f32[256,128], index: 9, kind: output, shape index: {}]
  %s10 = sld [smem:[#allocation0]]
  $region89: #{_fused_mlp_call.1} parent=0
    _
  %s12 = ssub.s32 1, %s10
  %s13 = scalar_select 0, %s12, %s10
  $region1: #{_fused_mlp_call.1} parent=0
    #allocation2 [shape = 'u8[262144]{0}', space=vmem, size = 0x40000, scoped, tag = 'input window, operand 0']
    #allocation3 [shape = 's32[2]{0}', space=sflag, size = 0x8, scoped, tag = 'scoped memory for _fused_mlp_call.1']
    #allocation4 [shape = 's32[2]{0}', space=sflag, size = 0x8, scoped, tag = 'scoped memory for _fused_mlp_call.1']
    #allocation5 [shape = 'u8[131072]{0}', space=vmem, size = 0x20000, scoped, tag = 'input window, operand 1, single buffered']
    #allocation6 [shape = 's32[1]{0}', space=sflag, size = 0x4, scoped, tag = 'scoped memory for _fused_mlp_call.1']
    #allocation7 [shape = 'u8[131072]{0}', space=vmem, size = 0x20000, scoped, tag = 'input window, operand 3, single buffered']
    #allocation8 [shape = 'u8[131072]{0}', space=vmem, size = 0x20000, scoped, tag = 'input window, operand 5, single buffered']
    #allocation9 [shape = 's32[1]{0}', space=sflag, size = 0x4, scoped, tag = 'scoped memory for _fused_mlp_call.1']
    #allocation10 [shape = 'u8[65536]{0}', space=vmem, size = 0x10000, scoped, tag = 'input window, operand 7, single buffered']
    #allocation11 [shape = 'u8[131072]{0}', space=vmem, size = 0x20000, scoped, tag = 'output window, operand 0']
    %14 = vsyncpa [#allocation3], 0
    %s15 = scalar_lea.sflag [#allocation3], 1
    %16 = vsyncpa %s15, 0
    %17 = vsyncpa [#allocation6], 0
    %18 = vsyncpa [#allocation9], 0
    %19 = vsyncpa [#allocation4], 0
    %s20 = scalar_lea.sflag [#allocation4], 1
    %21 = vsyncpa %s20, 0
    loop: start=0, step=1, limit=4
    $region2: #{_fused_mlp_call.1} parent=1 // loop_pre_header
      _
    $region3: #{_fused_mlp_call.1} parent=1 // loop_header
      %s23 = sphi 0, %s27
      %p24 = scmp.ge.s32.totalorder %s23, 4
      %s33 = sphi 0, %s35
      %s36 = sphi 0, %s33
      %s37 = sphi 0, %s36
      %s53 = sphi 0, %s37
      %s57 = sphi 0, %s57
      %s59 = sphi 0, %s57
      %s60 = sphi 0, %s59
      %s74 = sphi 0, %s60
      %s78 = sphi 0, %s78
      %s80 = sphi 0, %s78
      %s81 = sphi 0, %s80
      %s95 = sphi 0, %s81
      %s99 = sphi 0, %s99
      %s101 = sphi 0, %s99
      %s102 = sphi 0, %s101
      %s116 = sphi 0, %s102
      %s120 = sphi 0, %s120
      %s122 = sphi 0, %s120
      %s123 = sphi 0, %s122
      %s137 = sphi 0, %s123
      %s141 = sphi 0, %s141
      %s143 = sphi 0, %s141
      %s144 = sphi 0, %s143
      %s158 = sphi 0, %s144
      %s162 = sphi 0, %s162
      %s164 = sphi 0, %s162
      %s165 = sphi 0, %s164
      %s179 = sphi 0, %s165
      %s183 = sphi 0, %s183
      %s185 = sphi 0, %s183
      %s186 = sphi 0, %s185
      %s200 = sphi 0, %s186
      %s204 = sphi 0, %s204
      %s206 = sphi 0, %s204
      %s207 = sphi 0, %s206
      %s221 = sphi 0, %s207
      %s227 = sphi 0, %s229
      %s230 = sphi 0, %s227
      %s231 = sphi 0, %s230
      %s247 = sphi 0, %s231
    $region4: #{_fused_mlp_call.1} parent=1 // loop_header_branch
      %26 = sbr.rel (%p24) target = $region8
    $region5: #{_fused_mlp_call.1} parent=1 // loop_body
      %s28 = ssub.s32 %s23, 1
      %s29 = ssub.s32 %s23, 2
      %s30 = sadd.s32 %s23, 1
      %s31 = ssub.s32 %s23, %s30
      %p32 = scmp.eq.s32.totalorder %s31, 0
      %s34 = sadd.s32 %s33, 1
      %s35 = scalar_select %p32, %s33, %s34
      %p38 = pneg %p32
      %p39 = scmp.eq.s32.totalorder %s23, 1
      %p40 = por %p38, %p39
      %p41 = scmp.ne.s32.totalorder %s33, %s36
      %p42 = scmp.eq.s32.totalorder %s23, 0
      %p43 = por %p41, %p42
      %p44 = scmp.ne.s32.totalorder %s33, %s36
      %p45 = scmp.eq.s32.totalorder %s28, 1
      %p46 = por %p44, %p45
      %p47 = scmp.ne.s32.totalorder %s36, %s37
      %p48 = scmp.eq.s32.totalorder %s28, 0
      %p49 = por %p47, %p48
      %p50 = scmp.ne.s32.totalorder %s36, %s37
      %p51 = scmp.eq.s32.totalorder %s29, 1
      %p52 = por %p50, %p51
      %p54 = scmp.ne.s32.totalorder %s37, %s53
      %p55 = scmp.eq.s32.totalorder %s29, 0
      %p56 = por %p54, %p55
      %s58 = sadd.s32 %s57, 1
      %p61 = scmp.eq.s32.totalorder %s23, 1
      %p62 = scmp.ne.s32.totalorder %s57, %s59
      %p63 = scmp.eq.s32.totalorder %s23, 0
      %p64 = por %p62, %p63
      %p65 = scmp.ne.s32.totalorder %s57, %s59
      %p66 = scmp.eq.s32.totalorder %s28, 1
      %p67 = por %p65, %p66
      %p68 = scmp.ne.s32.totalorder %s59, %s60
      %p69 = scmp.eq.s32.totalorder %s28, 0
      %p70 = por %p68, %p69
      %p71 = scmp.ne.s32.totalorder %s59, %s60
      %p72 = scmp.eq.s32.totalorder %s29, 1
      %p73 = por %p71, %p72
      %p75 = scmp.ne.s32.totalorder %s60, %s74
      %p76 = scmp.eq.s32.totalorder %s29, 0
      %p77 = por %p75, %p76
      %s79 = sadd.s32 %s78, 1
      %p82 = scmp.eq.s32.totalorder %s23, 1
      %p83 = scmp.ne.s32.totalorder %s78, %s80
      %p84 = scmp.eq.s32.totalorder %s23, 0
      %p85 = por %p83, %p84
      %p86 = scmp.ne.s32.totalorder %s78, %s80
      %p87 = scmp.eq.s32.totalorder %s28, 1
      %p88 = por %p86, %p87
      %p89 = scmp.ne.s32.totalorder %s80, %s81
      %p90 = scmp.eq.s32.totalorder %s28, 0
      %p91 = por %p89, %p90
      %p92 = scmp.ne.s32.totalorder %s80, %s81
      %p93 = scmp.eq.s32.totalorder %s29, 1
      %p94 = por %p92, %p93
      %p96 = scmp.ne.s32.totalorder %s81, %s95
      %p97 = scmp.eq.s32.totalorder %s29, 0
      %p98 = por %p96, %p97
      %s100 = sadd.s32 %s99, 1
      %p103 = scmp.eq.s32.totalorder %s23, 1
      %p104 = scmp.ne.s32.totalorder %s99, %s101
      %p105 = scmp.eq.s32.totalorder %s23, 0
      %p106 = por %p104, %p105
      %p107 = scmp.ne.s32.totalorder %s99, %s101
      %p108 = scmp.eq.s32.totalorder %s28, 1
      %p109 = por %p107, %p108
      %p110 = scmp.ne.s32.totalorder %s101, %s102
      %p111 = scmp.eq.s32.totalorder %s28, 0
      %p112 = por %p110, %p111
      %p113 = scmp.ne.s32.totalorder %s101, %s102
      %p114 = scmp.eq.s32.totalorder %s29, 1
      %p115 = por %p113, %p114
      %p117 = scmp.ne.s32.totalorder %s102, %s116
      %p118 = scmp.eq.s32.totalorder %s29, 0
      %p119 = por %p117, %p118
      %s121 = sadd.s32 %s120, 1
      %p124 = scmp.eq.s32.totalorder %s23, 1
      %p125 = scmp.ne.s32.totalorder %s120, %s122
      %p126 = scmp.eq.s32.totalorder %s23, 0
      %p127 = por %p125, %p126
      %p128 = scmp.ne.s32.totalorder %s120, %s122
      %p129 = scmp.eq.s32.totalorder %s28, 1
      %p130 = por %p128, %p129
      %p131 = scmp.ne.s32.totalorder %s122, %s123
      %p132 = scmp.eq.s32.totalorder %s28, 0
      %p133 = por %p131, %p132
      %p134 = scmp.ne.s32.totalorder %s122, %s123
      %p135 = scmp.eq.s32.totalorder %s29, 1
      %p136 = por %p134, %p135
      %p138 = scmp.ne.s32.totalorder %s123, %s137
      %p139 = scmp.eq.s32.totalorder %s29, 0
      %p140 = por %p138, %p139
      %s142 = sadd.s32 %s141, 1
      %p145 = scmp.eq.s32.totalorder %s23, 1
      %p146 = scmp.ne.s32.totalorder %s141, %s143
      %p147 = scmp.eq.s32.totalorder %s23, 0
      %p148 = por %p146, %p147
      %p149 = scmp.ne.s32.totalorder %s141, %s143
      %p150 = scmp.eq.s32.totalorder %s28, 1
      %p151 = por %p149, %p150
      %p152 = scmp.ne.s32.totalorder %s143, %s144
      %p153 = scmp.eq.s32.totalorder %s28, 0
      %p154 = por %p152, %p153
      %p155 = scmp.ne.s32.totalorder %s143, %s144
      %p156 = scmp.eq.s32.totalorder %s29, 1
      %p157 = por %p155, %p156
      %p159 = scmp.ne.s32.totalorder %s144, %s158
      %p160 = scmp.eq.s32.totalorder %s29, 0
      %p161 = por %p159, %p160
      %s163 = sadd.s32 %s162, 1
      %p166 = scmp.eq.s32.totalorder %s23, 1
      %p167 = scmp.ne.s32.totalorder %s162, %s164
      %p168 = scmp.eq.s32.totalorder %s23, 0
      %p169 = por %p167, %p168
      %p170 = scmp.ne.s32.totalorder %s162, %s164
      %p171 = scmp.eq.s32.totalorder %s28, 1
      %p172 = por %p170, %p171
      %p173 = scmp.ne.s32.totalorder %s164, %s165
      %p174 = scmp.eq.s32.totalorder %s28, 0
      %p175 = por %p173, %p174
      %p176 = scmp.ne.s32.totalorder %s164, %s165
      %p177 = scmp.eq.s32.totalorder %s29, 1
      %p178 = por %p176, %p177
      %p180 = scmp.ne.s32.totalorder %s165, %s179
      %p181 = scmp.eq.s32.totalorder %s29, 0
      %p182 = por %p180, %p181
      %s184 = sadd.s32 %s183, 1
      %p187 = scmp.eq.s32.totalorder %s23, 1
      %p188 = scmp.ne.s32.totalorder %s183, %s185
      %p189 = scmp.eq.s32.totalorder %s23, 0
      %p190 = por %p188, %p189
      %p191 = scmp.ne.s32.totalorder %s183, %s185
      %p192 = scmp.eq.s32.totalorder %s28, 1
      %p193 = por %p191, %p192
      %p194 = scmp.ne.s32.totalorder %s185, %s186
      %p195 = scmp.eq.s32.totalorder %s28, 0
      %p196 = por %p194, %p195
      %p197 = scmp.ne.s32.totalorder %s185, %s186
      %p198 = scmp.eq.s32.totalorder %s29, 1
      %p199 = por %p197, %p198
      %p201 = scmp.ne.s32.totalorder %s186, %s200
      %p202 = scmp.eq.s32.totalorder %s29, 0
      %p203 = por %p201, %p202
      %s205 = sadd.s32 %s204, 1
      %p208 = scmp.eq.s32.totalorder %s23, 1
      %p209 = scmp.ne.s32.totalorder %s204, %s206
      %p210 = scmp.eq.s32.totalorder %s23, 0
      %p211 = por %p209, %p210
      %p212 = scmp.ne.s32.totalorder %s204, %s206
      %p213 = scmp.eq.s32.totalorder %s28, 1
      %p214 = por %p212, %p213
      %p215 = scmp.ne.s32.totalorder %s206, %s207
      %p216 = scmp.eq.s32.totalorder %s28, 0
      %p217 = por %p215, %p216
      %p218 = scmp.ne.s32.totalorder %s206, %s207
      %p219 = scmp.eq.s32.totalorder %s29, 1
      %p220 = por %p218, %p219
      %p222 = scmp.ne.s32.totalorder %s207, %s221
      %p223 = scmp.eq.s32.totalorder %s29, 0
      %p224 = por %p222, %p223
      %s225 = ssub.s32 %s23, %s30
      %p226 = scmp.eq.s32.totalorder %s225, 0
      %s228 = sadd.s32 %s227, 1
      %s229 = scalar_select %p226, %s227, %s228
      %p232 = pneg %p226
      %p233 = scmp.eq.s32.totalorder %s23, 1
      %p234 = por %p232, %p233
      %p235 = scmp.ne.s32.totalorder %s227, %s230
      %p236 = scmp.eq.s32.totalorder %s23, 0
      %p237 = por %p235, %p236
      %p238 = scmp.ne.s32.totalorder %s227, %s230
      %p239 = scmp.eq.s32.totalorder %s28, 1
      %p240 = por %p238, %p239
      %p241 = scmp.ne.s32.totalorder %s230, %s231
      %p242 = scmp.eq.s32.totalorder %s28, 0
      %p243 = por %p241, %p242
      %p244 = scmp.ne.s32.totalorder %s230, %s231
      %p245 = scmp.eq.s32.totalorder %s29, 1
      %p246 = por %p244, %p245
      %p248 = scmp.ne.s32.totalorder %s231, %s247
      %p249 = scmp.eq.s32.totalorder %s29, 0
      %p250 = por %p248, %p249
      %p251 = scmp.le.s32.totalorder 1, %s23
      %p252 = scmp.lt.s32.totalorder %s23, 3
      %p253 = pnand %p251, %p252
      %p254 = pneg %p253
      // Predicated region
      $region9: #{_fused_mlp_call.1} parent=5 // pred_check
        _
      $region10: #{_fused_mlp_call.1} parent=5 // pred_check_branch
        %256 = sbr.rel (%p253) target = $region12
      $region11: #{_fused_mlp_call.1} parent=5 // pred_region
        %s257 = ssub.s32 %s23, 1
        // Predicated region
        $region13: #{_fused_mlp_call.1} parent=11 // pred_check
          %p258 = pneg %p70
        $region14: #{_fused_mlp_call.1} parent=11 // pred_check_branch
          %260 = sbr.rel (%p258) target = $region16
        $region15: #{_fused_mlp_call.1} parent=11 // pred_region
          %s262 = ssub.s32 4096, 4096
          %263 = vsyncadd [#allocation6], %s262
          %s264 = sshll.u32 [#allocation5], 4
          %s265 = int_to_ptr.vmem [resolvable:$true] %s264
          %270 = dma.hbm_to_vmem [thread:$0]  %s1, 4096, %s265, [#allocation6], 128, 128, 8
        $region16: #{_fused_mlp_call.1} parent=11 // pred_fallthru
          _
        // Predicated region
        $region17: #{_fused_mlp_call.1} parent=11 // pred_check
          %p271 = pneg %p91
        $region18: #{_fused_mlp_call.1} parent=11 // pred_check_branch
          %273 = sbr.rel (%p271) target = $region20
        $region19: #{_fused_mlp_call.1} parent=11 // pred_region
          _
        $region20: #{_fused_mlp_call.1} parent=11 // pred_fallthru
          _
        // Predicated region
        $region21: #{_fused_mlp_call.1} parent=11 // pred_check
          %p274 = pneg %p112
        $region22: #{_fused_mlp_call.1} parent=11 // pred_check_branch
          %276 = sbr.rel (%p274) target = $region24
        $region23: #{_fused_mlp_call.1} parent=11 // pred_region
          %s278 = ssub.s32 4096, 4096
          %279 = vsyncadd [#allocation6], %s278
          %s280 = sshll.u32 [#allocation7], 4
          %s281 = int_to_ptr.vmem [resolvable:$true] %s280
          %286 = dma.hbm_to_vmem [thread:$0]  %s3, 4096, %s281, [#allocation6], 128, 128, 8
        $region24: #{_fused_mlp_call.1} parent=11 // pred_fallthru
          _
        // Predicated region
        $region25: #{_fused_mlp_call.1} parent=11 // pred_check
          %p287 = pneg %p133
        $region26: #{_fused_mlp_call.1} parent=11 // pred_check_branch
          %289 = sbr.rel (%p287) target = $region28
        $region27: #{_fused_mlp_call.1} parent=11 // pred_region
          _
        $region28: #{_fused_mlp_call.1} parent=11 // pred_fallthru
          _
        // Predicated region
        $region29: #{_fused_mlp_call.1} parent=11 // pred_check
          %p290 = pneg %p154
        $region30: #{_fused_mlp_call.1} parent=11 // pred_check_branch
          %292 = sbr.rel (%p290) target = $region32
        $region31: #{_fused_mlp_call.1} parent=11 // pred_region
          %s294 = ssub.s32 4096, 4096
          %295 = vsyncadd [#allocation9], %s294
          %s296 = sshll.u32 [#allocation8], 4
          %s297 = int_to_ptr.vmem [resolvable:$true] %s296
          %302 = dma.hbm_to_vmem [thread:$0]  %s5, 4096, %s297, [#allocation9], 128, 128, 8
        $region32: #{_fused_mlp_call.1} parent=11 // pred_fallthru
          _
        // Predicated region
        $region33: #{_fused_mlp_call.1} parent=11 // pred_check
          %p303 = pneg %p175
        $region34: #{_fused_mlp_call.1} parent=11 // pred_check_branch
          %305 = sbr.rel (%p303) target = $region36
        $region35: #{_fused_mlp_call.1} parent=11 // pred_region
          _
        $region36: #{_fused_mlp_call.1} parent=11 // pred_fallthru
          _
        // Predicated region
        $region37: #{_fused_mlp_call.1} parent=11 // pred_check
          %p306 = pneg %p196
        $region38: #{_fused_mlp_call.1} parent=11 // pred_check_branch
          %308 = sbr.rel (%p306) target = $region40
        $region39: #{_fused_mlp_call.1} parent=11 // pred_region
          %s310 = ssub.s32 2048, 2048
          %311 = vsyncadd [#allocation9], %s310
          %s312 = sshll.u32 [#allocation10], 4
          %s313 = int_to_ptr.vmem [resolvable:$true] %s312
          %318 = dma.hbm_to_vmem [thread:$0]  %s7, 2048, %s313, [#allocation9], 64, 64, 4
        $region40: #{_fused_mlp_call.1} parent=11 // pred_fallthru
          _
        // Predicated region
        $region41: #{_fused_mlp_call.1} parent=11 // pred_check
          %p319 = pneg %p217
        $region42: #{_fused_mlp_call.1} parent=11 // pred_check_branch
          %321 = sbr.rel (%p319) target = $region44
        $region43: #{_fused_mlp_call.1} parent=11 // pred_region
          _
        $region44: #{_fused_mlp_call.1} parent=11 // pred_fallthru
          _
      $region12: #{_fused_mlp_call.1} parent=5 // pred_fallthru
        _
      %p322 = scmp.lt.s32.totalorder %s23, 2
      // Predicated region
      $region45: #{_fused_mlp_call.1} parent=5 // pred_check
        %p323 = pneg %p322
      $region46: #{_fused_mlp_call.1} parent=5 // pred_check_branch
        %325 = sbr.rel (%p323) target = $region48
      $region47: #{_fused_mlp_call.1} parent=5 // pred_region
        // Predicated region
        $region49: #{_fused_mlp_call.1} parent=47 // pred_check
          %p326 = pneg %p43
        $region50: #{_fused_mlp_call.1} parent=47 // pred_check_branch
          %328 = sbr.rel (%p326) target = $region52
        $region51: #{_fused_mlp_call.1} parent=47 // pred_region
          %s329 = sand.u32 %s33, 1
          %s330 = scalar_lea.sflag [#allocation3], %s329
          %s331 = sand.u32 %s33, 1
          %s332 = smul.addr %s331, 256
          %s333 = scalar_lea.vmem [#allocation2], %s332
          %s334 = smul.u32 16, %s23
          %s336 = ssub.s32 4096, 4096
          %337 = vsyncadd %s330, %s336
          %s338 = smul.addr %s334, 2
          %s339 = smul.addr %s338, 128
          %s340 = scalar_lea.hbm %s0, %s339
          %s341 = sshll.u32 %s333, 4
          %s342 = int_to_ptr.vmem [resolvable:$true] %s341
          %347 = dma.hbm_to_vmem [thread:$0]  %s340, 4096, %s342, %s330, 256, 256, 16
        $region52: #{_fused_mlp_call.1} parent=47 // pred_fallthru
          _
      $region48: #{_fused_mlp_call.1} parent=5 // pred_fallthru
        _
      %p348 = scmp.le.s32.totalorder 1, %s23
      %p349 = scmp.lt.s32.totalorder %s23, 3
      %p350 = pnand %p348, %p349
      %p351 = pneg %p350
      // Predicated region
      $region53: #{_fused_mlp_call.1} parent=5 // pred_check
        _
      $region54: #{_fused_mlp_call.1} parent=5 // pred_check_branch
        %353 = sbr.rel (%p350) target = $region56
      $region55: #{_fused_mlp_call.1} parent=5 // pred_region
        %s354 = ssub.s32 %s23, 1
        %s355 = sand.u32 %s36, 1
        %s356 = scalar_lea.sflag [#allocation3], %s355
        %s357 = sand.u32 %s36, 1
        %s358 = smul.addr %s357, 256
        %s359 = scalar_lea.vmem [#allocation2], %s358
        // Predicated region
        $region57: #{_fused_mlp_call.1} parent=55 // pred_check
          %p360 = pneg %p49
        $region58: #{_fused_mlp_call.1} parent=55 // pred_check_branch
          %362 = sbr.rel (%p360) target = $region60
        $region59: #{_fused_mlp_call.1} parent=55 // pred_region
          %363 = dma.done %s356, 4096
        $region60: #{_fused_mlp_call.1} parent=55 // pred_fallthru
          _
        // Predicated region
        $region61: #{_fused_mlp_call.1} parent=55 // pred_check
          %p364 = pneg %p70
        $region62: #{_fused_mlp_call.1} parent=55 // pred_check_branch
          %366 = sbr.rel (%p364) target = $region64
        $region63: #{_fused_mlp_call.1} parent=55 // pred_region
          %367 = dma.done [#allocation6], 4096
        $region64: #{_fused_mlp_call.1} parent=55 // pred_fallthru
          _
        // Predicated region
        $region65: #{_fused_mlp_call.1} parent=55 // pred_check
          %p368 = pneg %p112
        $region66: #{_fused_mlp_call.1} parent=55 // pred_check_branch
          %370 = sbr.rel (%p368) target = $region68
        $region67: #{_fused_mlp_call.1} parent=55 // pred_region
          %371 = dma.done [#allocation6], 4096
        $region68: #{_fused_mlp_call.1} parent=55 // pred_fallthru
          _
        // Predicated region
        $region69: #{_fused_mlp_call.1} parent=55 // pred_check
          %p372 = pneg %p154
        $region70: #{_fused_mlp_call.1} parent=55 // pred_check_branch
          %374 = sbr.rel (%p372) target = $region72
        $region71: #{_fused_mlp_call.1} parent=55 // pred_region
          %375 = dma.done [#allocation9], 4096
        $region72: #{_fused_mlp_call.1} parent=55 // pred_fallthru
          _
        // Predicated region
        $region73: #{_fused_mlp_call.1} parent=55 // pred_check
          %p376 = pneg %p196
        $region74: #{_fused_mlp_call.1} parent=55 // pred_check_branch
          %378 = sbr.rel (%p376) target = $region76
        $region75: #{_fused_mlp_call.1} parent=55 // pred_region
          %379 = dma.done [#allocation9], 2048
        $region76: #{_fused_mlp_call.1} parent=55 // pred_fallthru
          _
        %s380 = sand.u32 %s36, 1
        %s381 = scalar_lea.sflag [#allocation3], %s380
        %s382 = sand.u32 %s36, 1
        %s383 = smul.addr %s382, 256
        %s384 = scalar_lea.vmem [#allocation2], %s383
        %p385 = pneg %p49
        %p386 = pneg %p46
        %p387 = pneg %p70
        %p388 = pneg %p67
        %p389 = pneg %p91
        %p390 = pneg %p88
        %p391 = pneg %p112
        %p392 = pneg %p109
        %p393 = pneg %p133
        %p394 = pneg %p130
        %p395 = pneg %p154
        %p396 = pneg %p151
        %p397 = pneg %p175
        %p398 = pneg %p172
        %p399 = pneg %p196
        %p400 = pneg %p193
        %p401 = pneg %p217
        %p402 = pneg %p214
        %p403 = pneg %p243
        %p404 = pneg %p240
        %s405 = sand.u32 %s230, 1
        %s406 = scalar_lea.sflag [#allocation4], %s405
        %s407 = sand.u32 %s230, 1
        %s408 = smul.addr %s407, 128
        %s409 = scalar_lea.vmem [#allocation11], %s408
        %s410 = smul.u32 16, %s28
        %s411 = smul.u32 16, %s28
        %v413 = vld [vmem:[%s359] sm:$0xff]
        %v414 = vld [vmem:[%s359 + $0x8] sm:$0xff]
        %v415 = vld [vmem:[%s359 + $0x10] sm:$0xff]
        %v416 = vld [vmem:[%s359 + $0x18] sm:$0xff]
        %v417 = vld [vmem:[%s359 + $0x20] sm:$0xff]
        %v418 = vld [vmem:[%s359 + $0x28] sm:$0xff]
        %v419 = vld [vmem:[%s359 + $0x30] sm:$0xff]
        %v420 = vld [vmem:[%s359 + $0x38] sm:$0xff]
        %v421 = vld [vmem:[%s359 + $0x40] sm:$0xff]
        %v422 = vld [vmem:[%s359 + $0x48] sm:$0xff]
        %v423 = vld [vmem:[%s359 + $0x50] sm:$0xff]
        %v424 = vld [vmem:[%s359 + $0x58] sm:$0xff]
        %v425 = vld [vmem:[%s359 + $0x60] sm:$0xff]
        %v426 = vld [vmem:[%s359 + $0x68] sm:$0xff]
        %v427 = vld [vmem:[%s359 + $0x70] sm:$0xff]
        %v428 = vld [vmem:[%s359 + $0x78] sm:$0xff]
        %v429 = vld [vmem:[%s359 + $0x80] sm:$0xff]
        %v430 = vld [vmem:[%s359 + $0x88] sm:$0xff]
        %v431 = vld [vmem:[%s359 + $0x90] sm:$0xff]
        %v432 = vld [vmem:[%s359 + $0x98] sm:$0xff]
        %v433 = vld [vmem:[%s359 + $0xa0] sm:$0xff]
        %v434 = vld [vmem:[%s359 + $0xa8] sm:$0xff]
        %v435 = vld [vmem:[%s359 + $0xb0] sm:$0xff]
        %v436 = vld [vmem:[%s359 + $0xb8] sm:$0xff]
        %v437 = vld [vmem:[%s359 + $0xc0] sm:$0xff]
        %v438 = vld [vmem:[%s359 + $0xc8] sm:$0xff]
        %v439 = vld [vmem:[%s359 + $0xd0] sm:$0xff]
        %v440 = vld [vmem:[%s359 + $0xd8] sm:$0xff]
        %v441 = vld [vmem:[%s359 + $0xe0] sm:$0xff]
        %v442 = vld [vmem:[%s359 + $0xe8] sm:$0xff]
        %v443 = vld [vmem:[%s359 + $0xf0] sm:$0xff]
        %v444 = vld [vmem:[%s359 + $0xf8] sm:$0xff]
        %v445 = vpack.c.bf16 %v415, %v413
        %v446 = vpack.c.bf16 %v416, %v414
        %v447 = vpack.c.bf16 %v419, %v417
        %v448 = vpack.c.bf16 %v420, %v418
        %v449 = vpack.c.bf16 %v423, %v421
        %v450 = vpack.c.bf16 %v424, %v422
        %v451 = vpack.c.bf16 %v427, %v425
        %v452 = vpack.c.bf16 %v428, %v426
        %v453 = vpack.c.bf16 %v431, %v429
        %v454 = vpack.c.bf16 %v432, %v430
        %v455 = vpack.c.bf16 %v435, %v433
        %v456 = vpack.c.bf16 %v436, %v434
        %v457 = vpack.c.bf16 %v439, %v437
        %v458 = vpack.c.bf16 %v440, %v438
        %v459 = vpack.c.bf16 %v443, %v441
        %v460 = vpack.c.bf16 %v444, %v442
        %v461 = vld [vmem:[#allocation5] sm:$0xff]
        %v462 = vld [vmem:[#allocation5 + $0x8] sm:$0xff]
        %v463 = vld [vmem:[#allocation5 + $0x10] sm:$0xff]
        %v464 = vld [vmem:[#allocation5 + $0x18] sm:$0xff]
        %v465 = vld [vmem:[#allocation5 + $0x20] sm:$0xff]
        %v466 = vld [vmem:[#allocation5 + $0x28] sm:$0xff]
        %v467 = vld [vmem:[#allocation5 + $0x30] sm:$0xff]
        %v468 = vld [vmem:[#allocation5 + $0x38] sm:$0xff]
        %v469 = vld [vmem:[#allocation5 + $0x40] sm:$0xff]
        %v470 = vld [vmem:[#allocation5 + $0x48] sm:$0xff]
        %v471 = vld [vmem:[#allocation5 + $0x50] sm:$0xff]
        %v472 = vld [vmem:[#allocation5 + $0x58] sm:$0xff]
        %v473 = vld [vmem:[#allocation5 + $0x60] sm:$0xff]
        %v474 = vld [vmem:[#allocation5 + $0x68] sm:$0xff]
        %v475 = vld [vmem:[#allocation5 + $0x70] sm:$0xff]
        %v476 = vld [vmem:[#allocation5 + $0x78] sm:$0xff]
        %v477 = vld [vmem:[#allocation5 + $0x80] sm:$0xff]
        %v478 = vld [vmem:[#allocation5 + $0x88] sm:$0xff]
        %v479 = vld [vmem:[#allocation5 + $0x90] sm:$0xff]
        %v480 = vld [vmem:[#allocation5 + $0x98] sm:$0xff]
        %v481 = vld [vmem:[#allocation5 + $0xa0] sm:$0xff]
        %v482 = vld [vmem:[#allocation5 + $0xa8] sm:$0xff]
        %v483 = vld [vmem:[#allocation5 + $0xb0] sm:$0xff]
        %v484 = vld [vmem:[#allocation5 + $0xb8] sm:$0xff]
        %v485 = vld [vmem:[#allocation5 + $0xc0] sm:$0xff]
        %v486 = vld [vmem:[#allocation5 + $0xc8] sm:$0xff]
        %v487 = vld [vmem:[#allocation5 + $0xd0] sm:$0xff]
        %v488 = vld [vmem:[#allocation5 + $0xd8] sm:$0xff]
        %v489 = vld [vmem:[#allocation5 + $0xe0] sm:$0xff]
        %v490 = vld [vmem:[#allocation5 + $0xe8] sm:$0xff]
        %v491 = vld [vmem:[#allocation5 + $0xf0] sm:$0xff]
        %v492 = vld [vmem:[#allocation5 + $0xf8] sm:$0xff]
        %v493 = vld [vmem:[%s2] sm:$0x3]
        %v495 = vlaneseq
        %v496 = vshrl.u32 %v495, 7
        %v497 = vsub.s32 0, %v496
        %v498 = vrot.slane %v493, %v497
        %v499 = vlaneseq
        %v500 = vshrl.u32 %v499, 7
        %v501 = vsub.s32 1, %v500
        %v502 = vrot.slane %v493, %v501
        %v537 = vunpack.c.l.b16 %v461
        %v538 = vunpack.c.h.b16 %v461
        %v539 = vunpack.c.l.b16 %v462
        %v540 = vunpack.c.h.b16 %v462
        %v541 = vunpack.c.l.b16 %v463
        %v542 = vunpack.c.h.b16 %v463
        %v543 = vunpack.c.l.b16 %v464
        %v544 = vunpack.c.h.b16 %v464
        %v545 = vunpack.c.l.b16 %v465
        %v546 = vunpack.c.h.b16 %v465
        %v547 = vunpack.c.l.b16 %v466
        %v548 = vunpack.c.h.b16 %v466
        %v549 = vunpack.c.l.b16 %v467
        %v550 = vunpack.c.h.b16 %v467
        %v551 = vunpack.c.l.b16 %v468
        %v552 = vunpack.c.h.b16 %v468
        %v553 = vunpack.c.l.b16 %v469
        %v554 = vunpack.c.h.b16 %v469
        %v555 = vunpack.c.l.b16 %v470
        %v556 = vunpack.c.h.b16 %v470
        %v557 = vunpack.c.l.b16 %v471
        %v558 = vunpack.c.h.b16 %v471
        %v559 = vunpack.c.l.b16 %v472
        %v560 = vunpack.c.h.b16 %v472
        %v561 = vunpack.c.l.b16 %v473
        %v562 = vunpack.c.h.b16 %v473
        %v563 = vunpack.c.l.b16 %v474
        %v564 = vunpack.c.h.b16 %v474
        %v565 = vunpack.c.l.b16 %v475
        %v566 = vunpack.c.h.b16 %v475
        %v567 = vunpack.c.l.b16 %v476
        %v568 = vunpack.c.h.b16 %v476
        %v569 = vunpack.c.l.b16 %v477
        %v570 = vunpack.c.h.b16 %v477
        %v571 = vunpack.c.l.b16 %v478
        %v572 = vunpack.c.h.b16 %v478
        %v573 = vunpack.c.l.b16 %v479
        %v574 = vunpack.c.h.b16 %v479
        %v575 = vunpack.c.l.b16 %v480
        %v576 = vunpack.c.h.b16 %v480
        %v577 = vunpack.c.l.b16 %v481
        %v578 = vunpack.c.h.b16 %v481
        %v579 = vunpack.c.l.b16 %v482
        %v580 = vunpack.c.h.b16 %v482
        %v581 = vunpack.c.l.b16 %v483
        %v582 = vunpack.c.h.b16 %v483
        %v583 = vunpack.c.l.b16 %v484
        %v584 = vunpack.c.h.b16 %v484
        %v585 = vunpack.c.l.b16 %v485
        %v586 = vunpack.c.h.b16 %v485
        %v587 = vunpack.c.l.b16 %v486
        %v588 = vunpack.c.h.b16 %v486
        %v589 = vunpack.c.l.b16 %v487
        %v590 = vunpack.c.h.b16 %v487
        %v591 = vunpack.c.l.b16 %v488
        %v592 = vunpack.c.h.b16 %v488
        %v593 = vunpack.c.l.b16 %v489
        %v594 = vunpack.c.h.b16 %v489
        %v595 = vunpack.c.l.b16 %v490
        %v596 = vunpack.c.h.b16 %v490
        %v597 = vunpack.c.l.b16 %v491
        %v598 = vunpack.c.h.b16 %v491
        %v599 = vunpack.c.l.b16 %v492
        %v600 = vunpack.c.h.b16 %v492
        %v601 = vpack.c.b16 %v539, %v537
        %v602 = vpack.c.b16 %v540, %v538
        %v603 = vpack.c.b16 %v543, %v541
        %v604 = vpack.c.b16 %v544, %v542
        %v605 = vpack.c.b16 %v547, %v545
        %v606 = vpack.c.b16 %v548, %v546
        %v607 = vpack.c.b16 %v551, %v549
        %v608 = vpack.c.b16 %v552, %v550
        %v609 = vpack.c.b16 %v555, %v553
        %v610 = vpack.c.b16 %v556, %v554
        %v611 = vpack.c.b16 %v559, %v557
        %v612 = vpack.c.b16 %v560, %v558
        %v613 = vpack.c.b16 %v563, %v561
        %v614 = vpack.c.b16 %v564, %v562
        %v615 = vpack.c.b16 %v567, %v565
        %v616 = vpack.c.b16 %v568, %v566
        %v617 = vpack.c.b16 %v571, %v569
        %v618 = vpack.c.b16 %v572, %v570
        %v619 = vpack.c.b16 %v575, %v573
        %v620 = vpack.c.b16 %v576, %v574
        %v621 = vpack.c.b16 %v579, %v577
        %v622 = vpack.c.b16 %v580, %v578
        %v623 = vpack.c.b16 %v583, %v581
        %v624 = vpack.c.b16 %v584, %v582
        %v625 = vpack.c.b16 %v587, %v585
        %v626 = vpack.c.b16 %v588, %v586
        %v627 = vpack.c.b16 %v591, %v589
        %v628 = vpack.c.b16 %v592, %v590
        %v629 = vpack.c.b16 %v595, %v593
        %v630 = vpack.c.b16 %v596, %v594
        %v631 = vpack.c.b16 %v599, %v597
        %v632 = vpack.c.b16 %v600, %v598
        %665 = vmatprep.subr.bf16.mxu0 %v602
        %666 = vmatpush1.bf16.msra.mxu0 %v601
        %667 = vmatprep.subr.bf16.mxu0 %v604
        %668 = vmatpush1.bf16.msra.mxu0 %v603
        %669 = vmatprep.subr.bf16.mxu0 %v606
        %670 = vmatpush1.bf16.msra.mxu0 %v605
        %671 = vmatprep.subr.bf16.mxu0 %v608
        %672 = vmatpush1.bf16.msra.mxu0 %v607
        %673 = vmatprep.subr.bf16.mxu0 %v610
        %674 = vmatpush1.bf16.msra.mxu0 %v609
        %675 = vmatprep.subr.bf16.mxu0 %v612
        %676 = vmatpush1.bf16.msra.mxu0 %v611
        %677 = vmatprep.subr.bf16.mxu0 %v614
        %678 = vmatpush1.bf16.msra.mxu0 %v613
        %679 = vmatprep.subr.bf16.mxu0 %v616
        %680 = vmatpush1.bf16.msra.mxu0 %v615
        %681 = vmatprep.subr.bf16.mxu0 %v618
        %682 = vmatpush1.bf16.msra.mxu0 %v617
        %683 = vmatprep.subr.bf16.mxu0 %v620
        %684 = vmatpush1.bf16.msra.mxu0 %v619
        %685 = vmatprep.subr.bf16.mxu0 %v622
        %686 = vmatpush1.bf16.msra.mxu0 %v621
        %687 = vmatprep.subr.bf16.mxu0 %v624
        %688 = vmatpush1.bf16.msra.mxu0 %v623
        %689 = vmatprep.subr.bf16.mxu0 %v626
        %690 = vmatpush1.bf16.msra.mxu0 %v625
        %691 = vmatprep.subr.bf16.mxu0 %v628
        %692 = vmatpush1.bf16.msra.mxu0 %v627
        %693 = vmatprep.subr.bf16.mxu0 %v630
        %694 = vmatpush1.bf16.msra.mxu0 %v629
        %695 = vmatprep.subr.bf16.mxu0 %v632
        %696 = vmatpush1.bf16.msra.mxu0 %v631
        %697 = vmatprep.mubr.bf16.mxu0 %v446
        %698 = vmatmul.mubr.bf16.gmra.mrb[0].mxu0 %v445
        %v699 = vpop.f32.mrb[0].mxu0
        %v700 = vadd.f32 %v498, %v699
        %v701 = vpop.f32.mrb[0].mxu0
        %v702 = vadd.f32 %v502, %v701
        %v703 = vpop.f32.mrb[0].mxu0
        %v704 = vadd.f32 %v498, %v703
        %v705 = vpop.f32.mrb[0].mxu0
        %v706 = vadd.f32 %v502, %v705
        %707 = vmatprep.mubr.bf16.mxu0 %v448
        %708 = vmatmul.mubr.bf16.gmra.mrb[0].mxu0 %v447
        %v709 = vpop.f32.mrb[0].mxu0
        %v710 = vadd.f32 %v498, %v709
        %v711 = vpop.f32.mrb[0].mxu0
        %v712 = vadd.f32 %v502, %v711
        %v713 = vpop.f32.mrb[0].mxu0
        %v714 = vadd.f32 %v498, %v713
        %v715 = vpop.f32.mrb[0].mxu0
        %v716 = vadd.f32 %v502, %v715
        %717 = vmatprep.mubr.bf16.mxu0 %v450
        %718 = vmatmul.mubr.bf16.gmra.mrb[0].mxu0 %v449
        %v719 = vpop.f32.mrb[0].mxu0
        %v720 = vadd.f32 %v498, %v719
        %v721 = vpop.f32.mrb[0].mxu0
        %v722 = vadd.f32 %v502, %v721
        %v723 = vpop.f32.mrb[0].mxu0
        %v724 = vadd.f32 %v498, %v723
        %v725 = vpop.f32.mrb[0].mxu0
        %v726 = vadd.f32 %v502, %v725
        %727 = vmatprep.mubr.bf16.mxu0 %v452
        %728 = vmatmul.mubr.bf16.gmra.mrb[0].mxu0 %v451
        %v729 = vpop.f32.mrb[0].mxu0
        %v730 = vadd.f32 %v498, %v729
        %v731 = vpop.f32.mrb[0].mxu0
        %v732 = vadd.f32 %v502, %v731
        %v733 = vpop.f32.mrb[0].mxu0
        %v734 = vadd.f32 %v498, %v733
        %v735 = vpop.f32.mrb[0].mxu0
        %v736 = vadd.f32 %v502, %v735
        %737 = vmatprep.mubr.bf16.mxu0 %v454
        %738 = vmatmul.mubr.bf16.gmra.mrb[0].mxu0 %v453
        %v739 = vpop.f32.mrb[0].mxu0
        %v740 = vadd.f32 %v498, %v739
        %v741 = vpop.f32.mrb[0].mxu0
        %v742 = vadd.f32 %v502, %v741
        %v743 = vpop.f32.mrb[0].mxu0
        %v744 = vadd.f32 %v498, %v743
        %v745 = vpop.f32.mrb[0].mxu0
        %v746 = vadd.f32 %v502, %v745
        %747 = vmatprep.mubr.bf16.mxu0 %v456
        %748 = vmatmul.mubr.bf16.gmra.mrb[0].mxu0 %v455
        %v749 = vpop.f32.mrb[0].mxu0
        %v750 = vadd.f32 %v498, %v749
        %v751 = vpop.f32.mrb[0].mxu0
        %v752 = vadd.f32 %v502, %v751
        %v753 = vpop.f32.mrb[0].mxu0
        %v754 = vadd.f32 %v498, %v753
        %v755 = vpop.f32.mrb[0].mxu0
        %v756 = vadd.f32 %v502, %v755
        %757 = vmatprep.mubr.bf16.mxu0 %v458
        %758 = vmatmul.mubr.bf16.gmra.mrb[0].mxu0 %v457
        %v759 = vpop.f32.mrb[0].mxu0
        %v760 = vadd.f32 %v498, %v759
        %v761 = vpop.f32.mrb[0].mxu0
        %v762 = vadd.f32 %v502, %v761
        %v763 = vpop.f32.mrb[0].mxu0
        %v764 = vadd.f32 %v498, %v763
        %v765 = vpop.f32.mrb[0].mxu0
        %v766 = vadd.f32 %v502, %v765
        %767 = vmatprep.mubr.bf16.mxu0 %v460
        %768 = vmatmul.mubr.bf16.gmra.mrb[0].mxu0 %v459
        %v769 = vpop.f32.mrb[0].mxu0
        %v770 = vadd.f32 %v498, %v769
        %v771 = vpop.f32.mrb[0].mxu0
        %v772 = vadd.f32 %v502, %v771
        %v773 = vpop.f32.mrb[0].mxu0
        %v774 = vadd.f32 %v498, %v773
        %v775 = vpop.f32.mrb[0].mxu0
        %v776 = vadd.f32 %v502, %v775
        %777 = vdwg.mxu0
        %v778 = vmax.f32 %v700, 0.0
        %v779 = vmax.f32 %v702, 0.0
        %v780 = vmax.f32 %v704, 0.0
        %v781 = vmax.f32 %v706, 0.0
        %v782 = vmax.f32 %v710, 0.0
        %v783 = vmax.f32 %v712, 0.0
        %v784 = vmax.f32 %v714, 0.0
        %v785 = vmax.f32 %v716, 0.0
        %v786 = vmax.f32 %v720, 0.0
        %v787 = vmax.f32 %v722, 0.0
        %v788 = vmax.f32 %v724, 0.0
        %v789 = vmax.f32 %v726, 0.0
        %v790 = vmax.f32 %v730, 0.0
        %v791 = vmax.f32 %v732, 0.0
        %v792 = vmax.f32 %v734, 0.0
        %v793 = vmax.f32 %v736, 0.0
        %v794 = vmax.f32 %v740, 0.0
        %v795 = vmax.f32 %v742, 0.0
        %v796 = vmax.f32 %v744, 0.0
        %v797 = vmax.f32 %v746, 0.0
        %v798 = vmax.f32 %v750, 0.0
        %v799 = vmax.f32 %v752, 0.0
        %v800 = vmax.f32 %v754, 0.0
        %v801 = vmax.f32 %v756, 0.0
        %v802 = vmax.f32 %v760, 0.0
        %v803 = vmax.f32 %v762, 0.0
        %v804 = vmax.f32 %v764, 0.0
        %v805 = vmax.f32 %v766, 0.0
        %v806 = vmax.f32 %v770, 0.0
        %v807 = vmax.f32 %v772, 0.0
        %v808 = vmax.f32 %v774, 0.0
        %v809 = vmax.f32 %v776, 0.0
        %v810 = vpack.c.bf16 %v780, %v778
        %v811 = vpack.c.bf16 %v781, %v779
        %v812 = vpack.c.bf16 %v784, %v782
        %v813 = vpack.c.bf16 %v785, %v783
        %v814 = vpack.c.bf16 %v788, %v786
        %v815 = vpack.c.bf16 %v789, %v787
        %v816 = vpack.c.bf16 %v792, %v790
        %v817 = vpack.c.bf16 %v793, %v791
        %v818 = vpack.c.bf16 %v796, %v794
        %v819 = vpack.c.bf16 %v797, %v795
        %v820 = vpack.c.bf16 %v800, %v798
        %v821 = vpack.c.bf16 %v801, %v799
        %v822 = vpack.c.bf16 %v804, %v802
        %v823 = vpack.c.bf16 %v805, %v803
        %v824 = vpack.c.bf16 %v808, %v806
        %v825 = vpack.c.bf16 %v809, %v807
        %v826 = vld [vmem:[#allocation7] sm:$0xff]
        %v827 = vld [vmem:[#allocation7 + $0x8] sm:$0xff]
        %v828 = vld [vmem:[#allocation7 + $0x10] sm:$0xff]
        %v829 = vld [vmem:[#allocation7 + $0x18] sm:$0xff]
        %v830 = vld [vmem:[#allocation7 + $0x20] sm:$0xff]
        %v831 = vld [vmem:[#allocation7 + $0x28] sm:$0xff]
        %v832 = vld [vmem:[#allocation7 + $0x30] sm:$0xff]
        %v833 = vld [vmem:[#allocation7 + $0x38] sm:$0xff]
        %v834 = vld [vmem:[#allocation7 + $0x40] sm:$0xff]
        %v835 = vld [vmem:[#allocation7 + $0x48] sm:$0xff]
        %v836 = vld [vmem:[#allocation7 + $0x50] sm:$0xff]
        %v837 = vld [vmem:[#allocation7 + $0x58] sm:$0xff]
        %v838 = vld [vmem:[#allocation7 + $0x60] sm:$0xff]
        %v839 = vld [vmem:[#allocation7 + $0x68] sm:$0xff]
        %v840 = vld [vmem:[#allocation7 + $0x70] sm:$0xff]
        %v841 = vld [vmem:[#allocation7 + $0x78] sm:$0xff]
        %v842 = vld [vmem:[#allocation7 + $0x80] sm:$0xff]
        %v843 = vld [vmem:[#allocation7 + $0x88] sm:$0xff]
        %v844 = vld [vmem:[#allocation7 + $0x90] sm:$0xff]
        %v845 = vld [vmem:[#allocation7 + $0x98] sm:$0xff]
        %v846 = vld [vmem:[#allocation7 + $0xa0] sm:$0xff]
        %v847 = vld [vmem:[#allocation7 + $0xa8] sm:$0xff]
        %v848 = vld [vmem:[#allocation7 + $0xb0] sm:$0xff]
        %v849 = vld [vmem:[#allocation7 + $0xb8] sm:$0xff]
        %v850 = vld [vmem:[#allocation7 + $0xc0] sm:$0xff]
        %v851 = vld [vmem:[#allocation7 + $0xc8] sm:$0xff]
        %v852 = vld [vmem:[#allocation7 + $0xd0] sm:$0xff]
        %v853 = vld [vmem:[#allocation7 + $0xd8] sm:$0xff]
        %v854 = vld [vmem:[#allocation7 + $0xe0] sm:$0xff]
        %v855 = vld [vmem:[#allocation7 + $0xe8] sm:$0xff]
        %v856 = vld [vmem:[#allocation7 + $0xf0] sm:$0xff]
        %v857 = vld [vmem:[#allocation7 + $0xf8] sm:$0xff]
        %v858 = vld [vmem:[%s4] sm:$0x3]
        %v860 = vlaneseq
        %v861 = vshrl.u32 %v860, 7
        %v862 = vsub.s32 0, %v861
        %v863 = vrot.slane %v858, %v862
        %v864 = vlaneseq
        %v865 = vshrl.u32 %v864, 7
        %v866 = vsub.s32 1, %v865
        %v867 = vrot.slane %v858, %v866
        %v902 = vunpack.c.l.b16 %v826
        %v903 = vunpack.c.h.b16 %v826
        %v904 = vunpack.c.l.b16 %v827
        %v905 = vunpack.c.h.b16 %v827
        %v906 = vunpack.c.l.b16 %v828
        %v907 = vunpack.c.h.b16 %v828
        %v908 = vunpack.c.l.b16 %v829
        %v909 = vunpack.c.h.b16 %v829
        %v910 = vunpack.c.l.b16 %v830
        %v911 = vunpack.c.h.b16 %v830
        %v912 = vunpack.c.l.b16 %v831
        %v913 = vunpack.c.h.b16 %v831
        %v914 = vunpack.c.l.b16 %v832
        %v915 = vunpack.c.h.b16 %v832
        %v916 = vunpack.c.l.b16 %v833
        %v917 = vunpack.c.h.b16 %v833
        %v918 = vunpack.c.l.b16 %v834
        %v919 = vunpack.c.h.b16 %v834
        %v920 = vunpack.c.l.b16 %v835
        %v921 = vunpack.c.h.b16 %v835
        %v922 = vunpack.c.l.b16 %v836
        %v923 = vunpack.c.h.b16 %v836
        %v924 = vunpack.c.l.b16 %v837
        %v925 = vunpack.c.h.b16 %v837
        %v926 = vunpack.c.l.b16 %v838
        %v927 = vunpack.c.h.b16 %v838
        %v928 = vunpack.c.l.b16 %v839
        %v929 = vunpack.c.h.b16 %v839
        %v930 = vunpack.c.l.b16 %v840
        %v931 = vunpack.c.h.b16 %v840
        %v932 = vunpack.c.l.b16 %v841
        %v933 = vunpack.c.h.b16 %v841
        %v934 = vunpack.c.l.b16 %v842
        %v935 = vunpack.c.h.b16 %v842
        %v936 = vunpack.c.l.b16 %v843
        %v937 = vunpack.c.h.b16 %v843
        %v938 = vunpack.c.l.b16 %v844
        %v939 = vunpack.c.h.b16 %v844
        %v940 = vunpack.c.l.b16 %v845
        %v941 = vunpack.c.h.b16 %v845
        %v942 = vunpack.c.l.b16 %v846
        %v943 = vunpack.c.h.b16 %v846
        %v944 = vunpack.c.l.b16 %v847
        %v945 = vunpack.c.h.b16 %v847
        %v946 = vunpack.c.l.b16 %v848
        %v947 = vunpack.c.h.b16 %v848
        %v948 = vunpack.c.l.b16 %v849
        %v949 = vunpack.c.h.b16 %v849
        %v950 = vunpack.c.l.b16 %v850
        %v951 = vunpack.c.h.b16 %v850
        %v952 = vunpack.c.l.b16 %v851
        %v953 = vunpack.c.h.b16 %v851
        %v954 = vunpack.c.l.b16 %v852
        %v955 = vunpack.c.h.b16 %v852
        %v956 = vunpack.c.l.b16 %v853
        %v957 = vunpack.c.h.b16 %v853
        %v958 = vunpack.c.l.b16 %v854
        %v959 = vunpack.c.h.b16 %v854
        %v960 = vunpack.c.l.b16 %v855
        %v961 = vunpack.c.h.b16 %v855
        %v962 = vunpack.c.l.b16 %v856
        %v963 = vunpack.c.h.b16 %v856
        %v964 = vunpack.c.l.b16 %v857
        %v965 = vunpack.c.h.b16 %v857
        %v966 = vpack.c.b16 %v904, %v902
        %v967 = vpack.c.b16 %v905, %v903
        %v968 = vpack.c.b16 %v908, %v906
        %v969 = vpack.c.b16 %v909, %v907
        %v970 = vpack.c.b16 %v912, %v910
        %v971 = vpack.c.b16 %v913, %v911
        %v972 = vpack.c.b16 %v916, %v914
        %v973 = vpack.c.b16 %v917, %v915
        %v974 = vpack.c.b16 %v920, %v918
        %v975 = vpack.c.b16 %v921, %v919
        %v976 = vpack.c.b16 %v924, %v922
        %v977 = vpack.c.b16 %v925, %v923
        %v978 = vpack.c.b16 %v928, %v926
        %v979 = vpack.c.b16 %v929, %v927
        %v980 = vpack.c.b16 %v932, %v930
        %v981 = vpack.c.b16 %v933, %v931
        %v982 = vpack.c.b16 %v936, %v934
        %v983 = vpack.c.b16 %v937, %v935
        %v984 = vpack.c.b16 %v940, %v938
        %v985 = vpack.c.b16 %v941, %v939
        %v986 = vpack.c.b16 %v944, %v942
        %v987 = vpack.c.b16 %v945, %v943
        %v988 = vpack.c.b16 %v948, %v946
        %v989 = vpack.c.b16 %v949, %v947
        %v990 = vpack.c.b16 %v952, %v950
        %v991 = vpack.c.b16 %v953, %v951
        %v992 = vpack.c.b16 %v956, %v954
        %v993 = vpack.c.b16 %v957, %v955
        %v994 = vpack.c.b16 %v960, %v958
        %v995 = vpack.c.b16 %v961, %v959
        %v996 = vpack.c.b16 %v964, %v962
        %v997 = vpack.c.b16 %v965, %v963
        %1030 = vmatprep.subr.bf16.mxu0 %v967
        %1031 = vmatpush1.bf16.msra.mxu0 %v966
        %1032 = vmatprep.subr.bf16.mxu0 %v969
        %1033 = vmatpush1.bf16.msra.mxu0 %v968
        %1034 = vmatprep.subr.bf16.mxu0 %v971
        %1035 = vmatpush1.bf16.msra.mxu0 %v970
        %1036 = vmatprep.subr.bf16.mxu0 %v973
        %1037 = vmatpush1.bf16.msra.mxu0 %v972
        %1038 = vmatprep.subr.bf16.mxu0 %v975
        %1039 = vmatpush1.bf16.msra.mxu0 %v974
        %1040 = vmatprep.subr.bf16.mxu0 %v977
        %1041 = vmatpush1.bf16.msra.mxu0 %v976
        %1042 = vmatprep.subr.bf16.mxu0 %v979
        %1043 = vmatpush1.bf16.msra.mxu0 %v978
        %1044 = vmatprep.subr.bf16.mxu0 %v981
        %1045 = vmatpush1.bf16.msra.mxu0 %v980
        %1046 = vmatprep.subr.bf16.mxu0 %v983
        %1047 = vmatpush1.bf16.msra.mxu0 %v982
        %1048 = vmatprep.subr.bf16.mxu0 %v985
        %1049 = vmatpush1.bf16.msra.mxu0 %v984
        %1050 = vmatprep.subr.bf16.mxu0 %v987
        %1051 = vmatpush1.bf16.msra.mxu0 %v986
        %1052 = vmatprep.subr.bf16.mxu0 %v989
        %1053 = vmatpush1.bf16.msra.mxu0 %v988
        %1054 = vmatprep.subr.bf16.mxu0 %v991
        %1055 = vmatpush1.bf16.msra.mxu0 %v990
        %1056 = vmatprep.subr.bf16.mxu0 %v993
        %1057 = vmatpush1.bf16.msra.mxu0 %v992
        %1058 = vmatprep.subr.bf16.mxu0 %v995
        %1059 = vmatpush1.bf16.msra.mxu0 %v994
        %1060 = vmatprep.subr.bf16.mxu0 %v997
        %1061 = vmatpush1.bf16.msra.mxu0 %v996
        %1062 = vmatprep.mubr.bf16.mxu0 %v811
        %1063 = vmatmul.mubr.bf16.gmra.mrb[0].mxu0 %v810
        %v1064 = vpop.f32.mrb[0].mxu0
        %v1065 = vadd.f32 %v863, %v1064
        %v1066 = vpop.f32.mrb[0].mxu0
        %v1067 = vadd.f32 %v867, %v1066
        %v1068 = vpop.f32.mrb[0].mxu0
        %v1069 = vadd.f32 %v863, %v1068
        %v1070 = vpop.f32.mrb[0].mxu0
        %v1071 = vadd.f32 %v867, %v1070
        %1072 = vmatprep.mubr.bf16.mxu0 %v813
        %1073 = vmatmul.mubr.bf16.gmra.mrb[0].mxu0 %v812
        %v1074 = vpop.f32.mrb[0].mxu0
        %v1075 = vadd.f32 %v863, %v1074
        %v1076 = vpop.f32.mrb[0].mxu0
        %v1077 = vadd.f32 %v867, %v1076
        %v1078 = vpop.f32.mrb[0].mxu0
        %v1079 = vadd.f32 %v863, %v1078
        %v1080 = vpop.f32.mrb[0].mxu0
        %v1081 = vadd.f32 %v867, %v1080
        %1082 = vmatprep.mubr.bf16.mxu0 %v815
        %1083 = vmatmul.mubr.bf16.gmra.mrb[0].mxu0 %v814
        %v1084 = vpop.f32.mrb[0].mxu0
        %v1085 = vadd.f32 %v863, %v1084
        %v1086 = vpop.f32.mrb[0].mxu0
        %v1087 = vadd.f32 %v867, %v1086
        %v1088 = vpop.f32.mrb[0].mxu0
        %v1089 = vadd.f32 %v863, %v1088
        %v1090 = vpop.f32.mrb[0].mxu0
        %v1091 = vadd.f32 %v867, %v1090
        %1092 = vmatprep.mubr.bf16.mxu0 %v817
        %1093 = vmatmul.mubr.bf16.gmra.mrb[0].mxu0 %v816
        %v1094 = vpop.f32.mrb[0].mxu0
        %v1095 = vadd.f32 %v863, %v1094
        %v1096 = vpop.f32.mrb[0].mxu0
        %v1097 = vadd.f32 %v867, %v1096
        %v1098 = vpop.f32.mrb[0].mxu0
        %v1099 = vadd.f32 %v863, %v1098
        %v1100 = vpop.f32.mrb[0].mxu0
        %v1101 = vadd.f32 %v867, %v1100
        %1102 = vmatprep.mubr.bf16.mxu0 %v819
        %1103 = vmatmul.mubr.bf16.gmra.mrb[0].mxu0 %v818
        %v1104 = vpop.f32.mrb[0].mxu0
        %v1105 = vadd.f32 %v863, %v1104
        %v1106 = vpop.f32.mrb[0].mxu0
        %v1107 = vadd.f32 %v867, %v1106
        %v1108 = vpop.f32.mrb[0].mxu0
        %v1109 = vadd.f32 %v863, %v1108
        %v1110 = vpop.f32.mrb[0].mxu0
        %v1111 = vadd.f32 %v867, %v1110
        %1112 = vmatprep.mubr.bf16.mxu0 %v821
        %1113 = vmatmul.mubr.bf16.gmra.mrb[0].mxu0 %v820
        %v1114 = vpop.f32.mrb[0].mxu0
        %v1115 = vadd.f32 %v863, %v1114
        %v1116 = vpop.f32.mrb[0].mxu0
        %v1117 = vadd.f32 %v867, %v1116
        %v1118 = vpop.f32.mrb[0].mxu0
        %v1119 = vadd.f32 %v863, %v1118
        %v1120 = vpop.f32.mrb[0].mxu0
        %v1121 = vadd.f32 %v867, %v1120
        %1122 = vmatprep.mubr.bf16.mxu0 %v823
        %1123 = vmatmul.mubr.bf16.gmra.mrb[0].mxu0 %v822
        %v1124 = vpop.f32.mrb[0].mxu0
        %v1125 = vadd.f32 %v863, %v1124
        %v1126 = vpop.f32.mrb[0].mxu0
        %v1127 = vadd.f32 %v867, %v1126
        %v1128 = vpop.f32.mrb[0].mxu0
        %v1129 = vadd.f32 %v863, %v1128
        %v1130 = vpop.f32.mrb[0].mxu0
        %v1131 = vadd.f32 %v867, %v1130
        %1132 = vmatprep.mubr.bf16.mxu0 %v825
        %1133 = vmatmul.mubr.bf16.gmra.mrb[0].mxu0 %v824
        %v1134 = vpop.f32.mrb[0].mxu0
        %v1135 = vadd.f32 %v863, %v1134
        %v1136 = vpop.f32.mrb[0].mxu0
        %v1137 = vadd.f32 %v867, %v1136
        %v1138 = vpop.f32.mrb[0].mxu0
        %v1139 = vadd.f32 %v863, %v1138
        %v1140 = vpop.f32.mrb[0].mxu0
        %v1141 = vadd.f32 %v867, %v1140
        %1142 = vdwg.mxu0
        %v1143 = vmax.f32 %v1065, 0.0
        %v1144 = vmax.f32 %v1067, 0.0
        %v1145 = vmax.f32 %v1069, 0.0
        %v1146 = vmax.f32 %v1071, 0.0
        %v1147 = vmax.f32 %v1075, 0.0
        %v1148 = vmax.f32 %v1077, 0.0
        %v1149 = vmax.f32 %v1079, 0.0
        %v1150 = vmax.f32 %v1081, 0.0
        %v1151 = vmax.f32 %v1085, 0.0
        %v1152 = vmax.f32 %v1087, 0.0
        %v1153 = vmax.f32 %v1089, 0.0
        %v1154 = vmax.f32 %v1091, 0.0
        %v1155 = vmax.f32 %v1095, 0.0
        %v1156 = vmax.f32 %v1097, 0.0
        %v1157 = vmax.f32 %v1099, 0.0
        %v1158 = vmax.f32 %v1101, 0.0
        %v1159 = vmax.f32 %v1105, 0.0
        %v1160 = vmax.f32 %v1107, 0.0
        %v1161 = vmax.f32 %v1109, 0.0
        %v1162 = vmax.f32 %v1111, 0.0
        %v1163 = vmax.f32 %v1115, 0.0
        %v1164 = vmax.f32 %v1117, 0.0
        %v1165 = vmax.f32 %v1119, 0.0
        %v1166 = vmax.f32 %v1121, 0.0
        %v1167 = vmax.f32 %v1125, 0.0
        %v1168 = vmax.f32 %v1127, 0.0
        %v1169 = vmax.f32 %v1129, 0.0
        %v1170 = vmax.f32 %v1131, 0.0
        %v1171 = vmax.f32 %v1135, 0.0
        %v1172 = vmax.f32 %v1137, 0.0
        %v1173 = vmax.f32 %v1139, 0.0
        %v1174 = vmax.f32 %v1141, 0.0
        %v1175 = vpack.c.bf16 %v1145, %v1143
        %v1176 = vpack.c.bf16 %v1146, %v1144
        %v1177 = vpack.c.bf16 %v1149, %v1147
        %v1178 = vpack.c.bf16 %v1150, %v1148
        %v1179 = vpack.c.bf16 %v1153, %v1151
        %v1180 = vpack.c.bf16 %v1154, %v1152
        %v1181 = vpack.c.bf16 %v1157, %v1155
        %v1182 = vpack.c.bf16 %v1158, %v1156
        %v1183 = vpack.c.bf16 %v1161, %v1159
        %v1184 = vpack.c.bf16 %v1162, %v1160
        %v1185 = vpack.c.bf16 %v1165, %v1163
        %v1186 = vpack.c.bf16 %v1166, %v1164
        %v1187 = vpack.c.bf16 %v1169, %v1167
        %v1188 = vpack.c.bf16 %v1170, %v1168
        %v1189 = vpack.c.bf16 %v1173, %v1171
        %v1190 = vpack.c.bf16 %v1174, %v1172
        %v1191 = vld [vmem:[#allocation8] sm:$0xff]
        %v1192 = vld [vmem:[#allocation8 + $0x8] sm:$0xff]
        %v1193 = vld [vmem:[#allocation8 + $0x10] sm:$0xff]
        %v1194 = vld [vmem:[#allocation8 + $0x18] sm:$0xff]
        %v1195 = vld [vmem:[#allocation8 + $0x20] sm:$0xff]
        %v1196 = vld [vmem:[#allocation8 + $0x28] sm:$0xff]
        %v1197 = vld [vmem:[#allocation8 + $0x30] sm:$0xff]
        %v1198 = vld [vmem:[#allocation8 + $0x38] sm:$0xff]
        %v1199 = vld [vmem:[#allocation8 + $0x40] sm:$0xff]
        %v1200 = vld [vmem:[#allocation8 + $0x48] sm:$0xff]
        %v1201 = vld [vmem:[#allocation8 + $0x50] sm:$0xff]
        %v1202 = vld [vmem:[#allocation8 + $0x58] sm:$0xff]
        %v1203 = vld [vmem:[#allocation8 + $0x60] sm:$0xff]
        %v1204 = vld [vmem:[#allocation8 + $0x68] sm:$0xff]
        %v1205 = vld [vmem:[#allocation8 + $0x70] sm:$0xff]
        %v1206 = vld [vmem:[#allocation8 + $0x78] sm:$0xff]
        %v1207 = vld [vmem:[#allocation8 + $0x80] sm:$0xff]
        %v1208 = vld [vmem:[#allocation8 + $0x88] sm:$0xff]
        %v1209 = vld [vmem:[#allocation8 + $0x90] sm:$0xff]
        %v1210 = vld [vmem:[#allocation8 + $0x98] sm:$0xff]
        %v1211 = vld [vmem:[#allocation8 + $0xa0] sm:$0xff]
        %v1212 = vld [vmem:[#allocation8 + $0xa8] sm:$0xff]
        %v1213 = vld [vmem:[#allocation8 + $0xb0] sm:$0xff]
        %v1214 = vld [vmem:[#allocation8 + $0xb8] sm:$0xff]
        %v1215 = vld [vmem:[#allocation8 + $0xc0] sm:$0xff]
        %v1216 = vld [vmem:[#allocation8 + $0xc8] sm:$0xff]
        %v1217 = vld [vmem:[#allocation8 + $0xd0] sm:$0xff]
        %v1218 = vld [vmem:[#allocation8 + $0xd8] sm:$0xff]
        %v1219 = vld [vmem:[#allocation8 + $0xe0] sm:$0xff]
        %v1220 = vld [vmem:[#allocation8 + $0xe8] sm:$0xff]
        %v1221 = vld [vmem:[#allocation8 + $0xf0] sm:$0xff]
        %v1222 = vld [vmem:[#allocation8 + $0xf8] sm:$0xff]
        %v1223 = vld [vmem:[%s6] sm:$0x3]
        %v1225 = vlaneseq
        %v1226 = vshrl.u32 %v1225, 7
        %v1227 = vsub.s32 0, %v1226
        %v1228 = vrot.slane %v1223, %v1227
        %v1229 = vlaneseq
        %v1230 = vshrl.u32 %v1229, 7
        %v1231 = vsub.s32 1, %v1230
        %v1232 = vrot.slane %v1223, %v1231
        %v1267 = vunpack.c.l.b16 %v1191
        %v1268 = vunpack.c.h.b16 %v1191
        %v1269 = vunpack.c.l.b16 %v1192
        %v1270 = vunpack.c.h.b16 %v1192
        %v1271 = vunpack.c.l.b16 %v1193
        %v1272 = vunpack.c.h.b16 %v1193
        %v1273 = vunpack.c.l.b16 %v1194
        %v1274 = vunpack.c.h.b16 %v1194
        %v1275 = vunpack.c.l.b16 %v1195
        %v1276 = vunpack.c.h.b16 %v1195
        %v1277 = vunpack.c.l.b16 %v1196
        %v1278 = vunpack.c.h.b16 %v1196
        %v1279 = vunpack.c.l.b16 %v1197
        %v1280 = vunpack.c.h.b16 %v1197
        %v1281 = vunpack.c.l.b16 %v1198
        %v1282 = vunpack.c.h.b16 %v1198
        %v1283 = vunpack.c.l.b16 %v1199
        %v1284 = vunpack.c.h.b16 %v1199
        %v1285 = vunpack.c.l.b16 %v1200
        %v1286 = vunpack.c.h.b16 %v1200
        %v1287 = vunpack.c.l.b16 %v1201
        %v1288 = vunpack.c.h.b16 %v1201
        %v1289 = vunpack.c.l.b16 %v1202
        %v1290 = vunpack.c.h.b16 %v1202
        %v1291 = vunpack.c.l.b16 %v1203
        %v1292 = vunpack.c.h.b16 %v1203
        %v1293 = vunpack.c.l.b16 %v1204
        %v1294 = vunpack.c.h.b16 %v1204
        %v1295 = vunpack.c.l.b16 %v1205
        %v1296 = vunpack.c.h.b16 %v1205
        %v1297 = vunpack.c.l.b16 %v1206
        %v1298 = vunpack.c.h.b16 %v1206
        %v1299 = vunpack.c.l.b16 %v1207
        %v1300 = vunpack.c.h.b16 %v1207
        %v1301 = vunpack.c.l.b16 %v1208
        %v1302 = vunpack.c.h.b16 %v1208
        %v1303 = vunpack.c.l.b16 %v1209
        %v1304 = vunpack.c.h.b16 %v1209
        %v1305 = vunpack.c.l.b16 %v1210
        %v1306 = vunpack.c.h.b16 %v1210
        %v1307 = vunpack.c.l.b16 %v1211
        %v1308 = vunpack.c.h.b16 %v1211
        %v1309 = vunpack.c.l.b16 %v1212
        %v1310 = vunpack.c.h.b16 %v1212
        %v1311 = vunpack.c.l.b16 %v1213
        %v1312 = vunpack.c.h.b16 %v1213
        %v1313 = vunpack.c.l.b16 %v1214
        %v1314 = vunpack.c.h.b16 %v1214
        %v1315 = vunpack.c.l.b16 %v1215
        %v1316 = vunpack.c.h.b16 %v1215
        %v1317 = vunpack.c.l.b16 %v1216
        %v1318 = vunpack.c.h.b16 %v1216
        %v1319 = vunpack.c.l.b16 %v1217
        %v1320 = vunpack.c.h.b16 %v1217
        %v1321 = vunpack.c.l.b16 %v1218
        %v1322 = vunpack.c.h.b16 %v1218
        %v1323 = vunpack.c.l.b16 %v1219
        %v1324 = vunpack.c.h.b16 %v1219
        %v1325 = vunpack.c.l.b16 %v1220
        %v1326 = vunpack.c.h.b16 %v1220
        %v1327 = vunpack.c.l.b16 %v1221
        %v1328 = vunpack.c.h.b16 %v1221
        %v1329 = vunpack.c.l.b16 %v1222
        %v1330 = vunpack.c.h.b16 %v1222
        %v1331 = vpack.c.b16 %v1269, %v1267
        %v1332 = vpack.c.b16 %v1270, %v1268
        %v1333 = vpack.c.b16 %v1273, %v1271
        %v1334 = vpack.c.b16 %v1274, %v1272
        %v1335 = vpack.c.b16 %v1277, %v1275
        %v1336 = vpack.c.b16 %v1278, %v1276
        %v1337 = vpack.c.b16 %v1281, %v1279
        %v1338 = vpack.c.b16 %v1282, %v1280
        %v1339 = vpack.c.b16 %v1285, %v1283
        %v1340 = vpack.c.b16 %v1286, %v1284
        %v1341 = vpack.c.b16 %v1289, %v1287
        %v1342 = vpack.c.b16 %v1290, %v1288
        %v1343 = vpack.c.b16 %v1293, %v1291
        %v1344 = vpack.c.b16 %v1294, %v1292
        %v1345 = vpack.c.b16 %v1297, %v1295
        %v1346 = vpack.c.b16 %v1298, %v1296
        %v1347 = vpack.c.b16 %v1301, %v1299
        %v1348 = vpack.c.b16 %v1302, %v1300
        %v1349 = vpack.c.b16 %v1305, %v1303
        %v1350 = vpack.c.b16 %v1306, %v1304
        %v1351 = vpack.c.b16 %v1309, %v1307
        %v1352 = vpack.c.b16 %v1310, %v1308
        %v1353 = vpack.c.b16 %v1313, %v1311
        %v1354 = vpack.c.b16 %v1314, %v1312
        %v1355 = vpack.c.b16 %v1317, %v1315
        %v1356 = vpack.c.b16 %v1318, %v1316
        %v1357 = vpack.c.b16 %v1321, %v1319
        %v1358 = vpack.c.b16 %v1322, %v1320
        %v1359 = vpack.c.b16 %v1325, %v1323
        %v1360 = vpack.c.b16 %v1326, %v1324
        %v1361 = vpack.c.b16 %v1329, %v1327
        %v1362 = vpack.c.b16 %v1330, %v1328
        %1395 = vmatprep.subr.bf16.mxu0 %v1332
        %1396 = vmatpush1.bf16.msra.mxu0 %v1331
        %1397 = vmatprep.subr.bf16.mxu0 %v1334
        %1398 = vmatpush1.bf16.msra.mxu0 %v1333
        %1399 = vmatprep.subr.bf16.mxu0 %v1336
        %1400 = vmatpush1.bf16.msra.mxu0 %v1335
        %1401 = vmatprep.subr.bf16.mxu0 %v1338
        %1402 = vmatpush1.bf16.msra.mxu0 %v1337
        %1403 = vmatprep.subr.bf16.mxu0 %v1340
        %1404 = vmatpush1.bf16.msra.mxu0 %v1339
        %1405 = vmatprep.subr.bf16.mxu0 %v1342
        %1406 = vmatpush1.bf16.msra.mxu0 %v1341
        %1407 = vmatprep.subr.bf16.mxu0 %v1344
        %1408 = vmatpush1.bf16.msra.mxu0 %v1343
        %1409 = vmatprep.subr.bf16.mxu0 %v1346
        %1410 = vmatpush1.bf16.msra.mxu0 %v1345
        %1411 = vmatprep.subr.bf16.mxu0 %v1348
        %1412 = vmatpush1.bf16.msra.mxu0 %v1347
        %1413 = vmatprep.subr.bf16.mxu0 %v1350
        %1414 = vmatpush1.bf16.msra.mxu0 %v1349
        %1415 = vmatprep.subr.bf16.mxu0 %v1352
        %1416 = vmatpush1.bf16.msra.mxu0 %v1351
        %1417 = vmatprep.subr.bf16.mxu0 %v1354
        %1418 = vmatpush1.bf16.msra.mxu0 %v1353
        %1419 = vmatprep.subr.bf16.mxu0 %v1356
        %1420 = vmatpush1.bf16.msra.mxu0 %v1355
        %1421 = vmatprep.subr.bf16.mxu0 %v1358
        %1422 = vmatpush1.bf16.msra.mxu0 %v1357
        %1423 = vmatprep.subr.bf16.mxu0 %v1360
        %1424 = vmatpush1.bf16.msra.mxu0 %v1359
        %1425 = vmatprep.subr.bf16.mxu0 %v1362
        %1426 = vmatpush1.bf16.msra.mxu0 %v1361
        %1427 = vmatprep.mubr.bf16.mxu0 %v1176
        %1428 = vmatmul.mubr.bf16.gmra.mrb[0].mxu0 %v1175
        %v1429 = vpop.f32.mrb[0].mxu0
        %v1430 = vadd.f32 %v1228, %v1429
        %v1431 = vpop.f32.mrb[0].mxu0
        %v1432 = vadd.f32 %v1232, %v1431
        %v1433 = vpop.f32.mrb[0].mxu0
        %v1434 = vadd.f32 %v1228, %v1433
        %v1435 = vpop.f32.mrb[0].mxu0
        %v1436 = vadd.f32 %v1232, %v1435
        %1437 = vmatprep.mubr.bf16.mxu0 %v1178
        %1438 = vmatmul.mubr.bf16.gmra.mrb[0].mxu0 %v1177
        %v1439 = vpop.f32.mrb[0].mxu0
        %v1440 = vadd.f32 %v1228, %v1439
        %v1441 = vpop.f32.mrb[0].mxu0
        %v1442 = vadd.f32 %v1232, %v1441
        %v1443 = vpop.f32.mrb[0].mxu0
        %v1444 = vadd.f32 %v1228, %v1443
        %v1445 = vpop.f32.mrb[0].mxu0
        %v1446 = vadd.f32 %v1232, %v1445
        %1447 = vmatprep.mubr.bf16.mxu0 %v1180
        %1448 = vmatmul.mubr.bf16.gmra.mrb[0].mxu0 %v1179
        %v1449 = vpop.f32.mrb[0].mxu0
        %v1450 = vadd.f32 %v1228, %v1449
        %v1451 = vpop.f32.mrb[0].mxu0
        %v1452 = vadd.f32 %v1232, %v1451
        %v1453 = vpop.f32.mrb[0].mxu0
        %v1454 = vadd.f32 %v1228, %v1453
        %v1455 = vpop.f32.mrb[0].mxu0
        %v1456 = vadd.f32 %v1232, %v1455
        %1457 = vmatprep.mubr.bf16.mxu0 %v1182
        %1458 = vmatmul.mubr.bf16.gmra.mrb[0].mxu0 %v1181
        %v1459 = vpop.f32.mrb[0].mxu0
        %v1460 = vadd.f32 %v1228, %v1459
        %v1461 = vpop.f32.mrb[0].mxu0
        %v1462 = vadd.f32 %v1232, %v1461
        %v1463 = vpop.f32.mrb[0].mxu0
        %v1464 = vadd.f32 %v1228, %v1463
        %v1465 = vpop.f32.mrb[0].mxu0
        %v1466 = vadd.f32 %v1232, %v1465
        %1467 = vmatprep.mubr.bf16.mxu0 %v1184
        %1468 = vmatmul.mubr.bf16.gmra.mrb[0].mxu0 %v1183
        %v1469 = vpop.f32.mrb[0].mxu0
        %v1470 = vadd.f32 %v1228, %v1469
        %v1471 = vpop.f32.mrb[0].mxu0
        %v1472 = vadd.f32 %v1232, %v1471
        %v1473 = vpop.f32.mrb[0].mxu0
        %v1474 = vadd.f32 %v1228, %v1473
        %v1475 = vpop.f32.mrb[0].mxu0
        %v1476 = vadd.f32 %v1232, %v1475
        %1477 = vmatprep.mubr.bf16.mxu0 %v1186
        %1478 = vmatmul.mubr.bf16.gmra.mrb[0].mxu0 %v1185
        %v1479 = vpop.f32.mrb[0].mxu0
        %v1480 = vadd.f32 %v1228, %v1479
        %v1481 = vpop.f32.mrb[0].mxu0
        %v1482 = vadd.f32 %v1232, %v1481
        %v1483 = vpop.f32.mrb[0].mxu0
        %v1484 = vadd.f32 %v1228, %v1483
        %v1485 = vpop.f32.mrb[0].mxu0
        %v1486 = vadd.f32 %v1232, %v1485
        %1487 = vmatprep.mubr.bf16.mxu0 %v1188
        %1488 = vmatmul.mubr.bf16.gmra.mrb[0].mxu0 %v1187
        %v1489 = vpop.f32.mrb[0].mxu0
        %v1490 = vadd.f32 %v1228, %v1489
        %v1491 = vpop.f32.mrb[0].mxu0
        %v1492 = vadd.f32 %v1232, %v1491
        %v1493 = vpop.f32.mrb[0].mxu0
        %v1494 = vadd.f32 %v1228, %v1493
        %v1495 = vpop.f32.mrb[0].mxu0
        %v1496 = vadd.f32 %v1232, %v1495
        %1497 = vmatprep.mubr.bf16.mxu0 %v1190
        %1498 = vmatmul.mubr.bf16.gmra.mrb[0].mxu0 %v1189
        %v1499 = vpop.f32.mrb[0].mxu0
        %v1500 = vadd.f32 %v1228, %v1499
        %v1501 = vpop.f32.mrb[0].mxu0
        %v1502 = vadd.f32 %v1232, %v1501
        %v1503 = vpop.f32.mrb[0].mxu0
        %v1504 = vadd.f32 %v1228, %v1503
        %v1505 = vpop.f32.mrb[0].mxu0
        %v1506 = vadd.f32 %v1232, %v1505
        %1507 = vdwg.mxu0
        %v1508 = vmax.f32 %v1430, 0.0
        %v1509 = vmax.f32 %v1432, 0.0
        %v1510 = vmax.f32 %v1434, 0.0
        %v1511 = vmax.f32 %v1436, 0.0
        %v1512 = vmax.f32 %v1440, 0.0
        %v1513 = vmax.f32 %v1442, 0.0
        %v1514 = vmax.f32 %v1444, 0.0
        %v1515 = vmax.f32 %v1446, 0.0
        %v1516 = vmax.f32 %v1450, 0.0
        %v1517 = vmax.f32 %v1452, 0.0
        %v1518 = vmax.f32 %v1454, 0.0
        %v1519 = vmax.f32 %v1456, 0.0
        %v1520 = vmax.f32 %v1460, 0.0
        %v1521 = vmax.f32 %v1462, 0.0
        %v1522 = vmax.f32 %v1464, 0.0
        %v1523 = vmax.f32 %v1466, 0.0
        %v1524 = vmax.f32 %v1470, 0.0
        %v1525 = vmax.f32 %v1472, 0.0
        %v1526 = vmax.f32 %v1474, 0.0
        %v1527 = vmax.f32 %v1476, 0.0
        %v1528 = vmax.f32 %v1480, 0.0
        %v1529 = vmax.f32 %v1482, 0.0
        %v1530 = vmax.f32 %v1484, 0.0
        %v1531 = vmax.f32 %v1486, 0.0
        %v1532 = vmax.f32 %v1490, 0.0
        %v1533 = vmax.f32 %v1492, 0.0
        %v1534 = vmax.f32 %v1494, 0.0
        %v1535 = vmax.f32 %v1496, 0.0
        %v1536 = vmax.f32 %v1500, 0.0
        %v1537 = vmax.f32 %v1502, 0.0
        %v1538 = vmax.f32 %v1504, 0.0
        %v1539 = vmax.f32 %v1506, 0.0
        %v1540 = vpack.c.bf16 %v1510, %v1508
        %v1541 = vpack.c.bf16 %v1511, %v1509
        %v1542 = vpack.c.bf16 %v1514, %v1512
        %v1543 = vpack.c.bf16 %v1515, %v1513
        %v1544 = vpack.c.bf16 %v1518, %v1516
        %v1545 = vpack.c.bf16 %v1519, %v1517
        %v1546 = vpack.c.bf16 %v1522, %v1520
        %v1547 = vpack.c.bf16 %v1523, %v1521
        %v1548 = vpack.c.bf16 %v1526, %v1524
        %v1549 = vpack.c.bf16 %v1527, %v1525
        %v1550 = vpack.c.bf16 %v1530, %v1528
        %v1551 = vpack.c.bf16 %v1531, %v1529
        %v1552 = vpack.c.bf16 %v1534, %v1532
        %v1553 = vpack.c.bf16 %v1535, %v1533
        %v1554 = vpack.c.bf16 %v1538, %v1536
        %v1555 = vpack.c.bf16 %v1539, %v1537
        %v1556 = vld [vmem:[#allocation10] sm:$0xf]
        %v1557 = vld [vmem:[#allocation10 + $0x4] sm:$0xf]
        %v1558 = vld [vmem:[#allocation10 + $0x8] sm:$0xf]
        %v1559 = vld [vmem:[#allocation10 + $0xc] sm:$0xf]
        %v1560 = vld [vmem:[#allocation10 + $0x10] sm:$0xf]
        %v1561 = vld [vmem:[#allocation10 + $0x14] sm:$0xf]
        %v1562 = vld [vmem:[#allocation10 + $0x18] sm:$0xf]
        %v1563 = vld [vmem:[#allocation10 + $0x1c] sm:$0xf]
        %v1564 = vld [vmem:[#allocation10 + $0x20] sm:$0xf]
        %v1565 = vld [vmem:[#allocation10 + $0x24] sm:$0xf]
        %v1566 = vld [vmem:[#allocation10 + $0x28] sm:$0xf]
        %v1567 = vld [vmem:[#allocation10 + $0x2c] sm:$0xf]
        %v1568 = vld [vmem:[#allocation10 + $0x30] sm:$0xf]
        %v1569 = vld [vmem:[#allocation10 + $0x34] sm:$0xf]
        %v1570 = vld [vmem:[#allocation10 + $0x38] sm:$0xf]
        %v1571 = vld [vmem:[#allocation10 + $0x3c] sm:$0xf]
        %v1572 = vld [vmem:[#allocation10 + $0x40] sm:$0xf]
        %v1573 = vld [vmem:[#allocation10 + $0x44] sm:$0xf]
        %v1574 = vld [vmem:[#allocation10 + $0x48] sm:$0xf]
        %v1575 = vld [vmem:[#allocation10 + $0x4c] sm:$0xf]
        %v1576 = vld [vmem:[#allocation10 + $0x50] sm:$0xf]
        %v1577 = vld [vmem:[#allocation10 + $0x54] sm:$0xf]
        %v1578 = vld [vmem:[#allocation10 + $0x58] sm:$0xf]
        %v1579 = vld [vmem:[#allocation10 + $0x5c] sm:$0xf]
        %v1580 = vld [vmem:[#allocation10 + $0x60] sm:$0xf]
        %v1581 = vld [vmem:[#allocation10 + $0x64] sm:$0xf]
        %v1582 = vld [vmem:[#allocation10 + $0x68] sm:$0xf]
        %v1583 = vld [vmem:[#allocation10 + $0x6c] sm:$0xf]
        %v1584 = vld [vmem:[#allocation10 + $0x70] sm:$0xf]
        %v1585 = vld [vmem:[#allocation10 + $0x74] sm:$0xf]
        %v1586 = vld [vmem:[#allocation10 + $0x78] sm:$0xf]
        %v1587 = vld [vmem:[#allocation10 + $0x7c] sm:$0xf]
        %v1588 = vld [vmem:[%s8] sm:$0x1]
        %v1590 = vlaneseq
        %v1591 = vshrl.u32 %v1590, 7
        %v1592 = vsub.s32 0, %v1591
        %v1593 = vrot.slane %v1588, %v1592
        %v1627 = vunpack.c.l.b16 %v1556
        %v1628 = vunpack.c.l.b16 %v1557
        %v1629 = vunpack.c.l.b16 %v1558
        %v1630 = vunpack.c.l.b16 %v1559
        %v1631 = vunpack.c.l.b16 %v1560
        %v1632 = vunpack.c.l.b16 %v1561
        %v1633 = vunpack.c.l.b16 %v1562
        %v1634 = vunpack.c.l.b16 %v1563
        %v1635 = vunpack.c.l.b16 %v1564
        %v1636 = vunpack.c.l.b16 %v1565
        %v1637 = vunpack.c.l.b16 %v1566
        %v1638 = vunpack.c.l.b16 %v1567
        %v1639 = vunpack.c.l.b16 %v1568
        %v1640 = vunpack.c.l.b16 %v1569
        %v1641 = vunpack.c.l.b16 %v1570
        %v1642 = vunpack.c.l.b16 %v1571
        %v1643 = vunpack.c.l.b16 %v1572
        %v1644 = vunpack.c.l.b16 %v1573
        %v1645 = vunpack.c.l.b16 %v1574
        %v1646 = vunpack.c.l.b16 %v1575
        %v1647 = vunpack.c.l.b16 %v1576
        %v1648 = vunpack.c.l.b16 %v1577
        %v1649 = vunpack.c.l.b16 %v1578
        %v1650 = vunpack.c.l.b16 %v1579
        %v1651 = vunpack.c.l.b16 %v1580
        %v1652 = vunpack.c.l.b16 %v1581
        %v1653 = vunpack.c.l.b16 %v1582
        %v1654 = vunpack.c.l.b16 %v1583
        %v1655 = vunpack.c.l.b16 %v1584
        %v1656 = vunpack.c.l.b16 %v1585
        %v1657 = vunpack.c.l.b16 %v1586
        %v1658 = vunpack.c.l.b16 %v1587
        %v1659 = vpack.c.b16 %v1628, %v1627
        %v1660 = vpack.c.b16 %v1630, %v1629
        %v1661 = vpack.c.b16 %v1632, %v1631
        %v1662 = vpack.c.b16 %v1634, %v1633
        %v1663 = vpack.c.b16 %v1636, %v1635
        %v1664 = vpack.c.b16 %v1638, %v1637
        %v1665 = vpack.c.b16 %v1640, %v1639
        %v1666 = vpack.c.b16 %v1642, %v1641
        %v1667 = vpack.c.b16 %v1644, %v1643
        %v1668 = vpack.c.b16 %v1646, %v1645
        %v1669 = vpack.c.b16 %v1648, %v1647
        %v1670 = vpack.c.b16 %v1650, %v1649
        %v1671 = vpack.c.b16 %v1652, %v1651
        %v1672 = vpack.c.b16 %v1654, %v1653
        %v1673 = vpack.c.b16 %v1656, %v1655
        %v1674 = vpack.c.b16 %v1658, %v1657
        %1691 = vmatprep.subr.bf16.mxu0 0
        %1692 = vmatpush1.bf16.msra.mxu0 %v1659
        %1693 = vmatprep.subr.bf16.mxu0 0
        %1694 = vmatpush1.bf16.msra.mxu0 %v1660
        %1695 = vmatprep.subr.bf16.mxu0 0
        %1696 = vmatpush1.bf16.msra.mxu0 %v1661
        %1697 = vmatprep.subr.bf16.mxu0 0
        %1698 = vmatpush1.bf16.msra.mxu0 %v1662
        %1699 = vmatprep.subr.bf16.mxu0 0
        %1700 = vmatpush1.bf16.msra.mxu0 %v1663
        %1701 = vmatprep.subr.bf16.mxu0 0
        %1702 = vmatpush1.bf16.msra.mxu0 %v1664
        %1703 = vmatprep.subr.bf16.mxu0 0
        %1704 = vmatpush1.bf16.msra.mxu0 %v1665
        %1705 = vmatprep.subr.bf16.mxu0 0
        %1706 = vmatpush1.bf16.msra.mxu0 %v1666
        %1707 = vmatprep.subr.bf16.mxu0 0
        %1708 = vmatpush1.bf16.msra.mxu0 %v1667
        %1709 = vmatprep.subr.bf16.mxu0 0
        %1710 = vmatpush1.bf16.msra.mxu0 %v1668
        %1711 = vmatprep.subr.bf16.mxu0 0
        %1712 = vmatpush1.bf16.msra.mxu0 %v1669
        %1713 = vmatprep.subr.bf16.mxu0 0
        %1714 = vmatpush1.bf16.msra.mxu0 %v1670
        %1715 = vmatprep.subr.bf16.mxu0 0
        %1716 = vmatpush1.bf16.msra.mxu0 %v1671
        %1717 = vmatprep.subr.bf16.mxu0 0
        %1718 = vmatpush1.bf16.msra.mxu0 %v1672
        %1719 = vmatprep.subr.bf16.mxu0 0
        %1720 = vmatpush1.bf16.msra.mxu0 %v1673
        %1721 = vmatprep.subr.bf16.mxu0 0
        %1722 = vmatpush1.bf16.msra.mxu0 %v1674
        %1723 = vmatprep.mubr.bf16.mxu0 %v1541
        %1724 = vmatmul.mubr.bf16.gmra.mrb[0].mxu0 %v1540
        %v1725 = vpop.f32.mrb[0].mxu0
        %v1726 = vadd.f32 %v1593, %v1725
        %v1727 = vpop.f32.mrb[0].mxu0
        %v1728 = vpop.f32.mrb[0].mxu0
        %v1729 = vadd.f32 %v1593, %v1728
        %v1730 = vpop.f32.mrb[0].mxu0
        %1731 = vmatprep.mubr.bf16.mxu0 %v1543
        %1732 = vmatmul.mubr.bf16.gmra.mrb[0].mxu0 %v1542
        %v1733 = vpop.f32.mrb[0].mxu0
        %v1734 = vadd.f32 %v1593, %v1733
        %v1735 = vpop.f32.mrb[0].mxu0
        %v1736 = vpop.f32.mrb[0].mxu0
        %v1737 = vadd.f32 %v1593, %v1736
        %v1738 = vpop.f32.mrb[0].mxu0
        %1739 = vmatprep.mubr.bf16.mxu0 %v1545
        %1740 = vmatmul.mubr.bf16.gmra.mrb[0].mxu0 %v1544
        %v1741 = vpop.f32.mrb[0].mxu0
        %v1742 = vadd.f32 %v1593, %v1741
        %v1743 = vpop.f32.mrb[0].mxu0
        %v1744 = vpop.f32.mrb[0].mxu0
        %v1745 = vadd.f32 %v1593, %v1744
        %v1746 = vpop.f32.mrb[0].mxu0
        %1747 = vmatprep.mubr.bf16.mxu0 %v1547
        %1748 = vmatmul.mubr.bf16.gmra.mrb[0].mxu0 %v1546
        %v1749 = vpop.f32.mrb[0].mxu0
        %v1750 = vadd.f32 %v1593, %v1749
        %v1751 = vpop.f32.mrb[0].mxu0
        %v1752 = vpop.f32.mrb[0].mxu0
        %v1753 = vadd.f32 %v1593, %v1752
        %v1754 = vpop.f32.mrb[0].mxu0
        %1755 = vmatprep.mubr.bf16.mxu0 %v1549
        %1756 = vmatmul.mubr.bf16.gmra.mrb[0].mxu0 %v1548
        %v1757 = vpop.f32.mrb[0].mxu0
        %v1758 = vadd.f32 %v1593, %v1757
        %v1759 = vpop.f32.mrb[0].mxu0
        %v1760 = vpop.f32.mrb[0].mxu0
        %v1761 = vadd.f32 %v1593, %v1760
        %v1762 = vpop.f32.mrb[0].mxu0
        %1763 = vmatprep.mubr.bf16.mxu0 %v1551
        %1764 = vmatmul.mubr.bf16.gmra.mrb[0].mxu0 %v1550
        %v1765 = vpop.f32.mrb[0].mxu0
        %v1766 = vadd.f32 %v1593, %v1765
        %v1767 = vpop.f32.mrb[0].mxu0
        %v1768 = vpop.f32.mrb[0].mxu0
        %v1769 = vadd.f32 %v1593, %v1768
        %v1770 = vpop.f32.mrb[0].mxu0
        %1771 = vmatprep.mubr.bf16.mxu0 %v1553
        %1772 = vmatmul.mubr.bf16.gmra.mrb[0].mxu0 %v1552
        %v1773 = vpop.f32.mrb[0].mxu0
        %v1774 = vadd.f32 %v1593, %v1773
        %v1775 = vpop.f32.mrb[0].mxu0
        %v1776 = vpop.f32.mrb[0].mxu0
        %v1777 = vadd.f32 %v1593, %v1776
        %v1778 = vpop.f32.mrb[0].mxu0
        %1779 = vmatprep.mubr.bf16.mxu0 %v1555
        %1780 = vmatmul.mubr.bf16.gmra.mrb[0].mxu0 %v1554
        %v1781 = vpop.f32.mrb[0].mxu0
        %v1782 = vadd.f32 %v1593, %v1781
        %v1783 = vpop.f32.mrb[0].mxu0
        %v1784 = vpop.f32.mrb[0].mxu0
        %v1785 = vadd.f32 %v1593, %v1784
        %v1786 = vpop.f32.mrb[0].mxu0
        %1787 = vdwg.mxu0
        %1788 = vst [vmem:[%s409] sm:$0xff] %v1726
        %1789 = vst [vmem:[%s409 + $0x8] sm:$0xff] %v1729
        %1790 = vst [vmem:[%s409 + $0x10] sm:$0xff] %v1734
        %1791 = vst [vmem:[%s409 + $0x18] sm:$0xff] %v1737
        %1792 = vst [vmem:[%s409 + $0x20] sm:$0xff] %v1742
        %1793 = vst [vmem:[%s409 + $0x28] sm:$0xff] %v1745
        %1794 = vst [vmem:[%s409 + $0x30] sm:$0xff] %v1750
        %1795 = vst [vmem:[%s409 + $0x38] sm:$0xff] %v1753
        %1796 = vst [vmem:[%s409 + $0x40] sm:$0xff] %v1758
        %1797 = vst [vmem:[%s409 + $0x48] sm:$0xff] %v1761
        %1798 = vst [vmem:[%s409 + $0x50] sm:$0xff] %v1766
        %1799 = vst [vmem:[%s409 + $0x58] sm:$0xff] %v1769
        %1800 = vst [vmem:[%s409 + $0x60] sm:$0xff] %v1774
        %1801 = vst [vmem:[%s409 + $0x68] sm:$0xff] %v1777
        %1802 = vst [vmem:[%s409 + $0x70] sm:$0xff] %v1782
        %1803 = vst [vmem:[%s409 + $0x78] sm:$0xff] %v1785
        %s1804 = sand.u32 %s230, 1
        %s1805 = scalar_lea.sflag [#allocation4], %s1804
        %s1806 = sand.u32 %s230, 1
        %s1807 = smul.addr %s1806, 128
        %s1808 = scalar_lea.vmem [#allocation11], %s1807
        // Predicated region
        $region77: #{_fused_mlp_call.1} parent=55 // pred_check
          %p1809 = pneg %p240
        $region78: #{_fused_mlp_call.1} parent=55 // pred_check_branch
          %1811 = sbr.rel (%p1809) target = $region80
        $region79: #{_fused_mlp_call.1} parent=55 // pred_region
          %s1812 = smul.u32 16, %s28
          %s1814 = ssub.s32 2048, 2048
          %1815 = vsyncadd %s1805, %s1814
          %s1816 = smul.addr %s1812, 128
          %s1817 = scalar_lea.hbm %s9, %s1816
          %s1818 = sshll.u32 %s1808, 4
          %s1819 = int_to_ptr.vmem [resolvable:$true] %s1818
          %1824 = dma.vmem_to_hbm [thread:$0]  %s1819, 2048, %s1817, %s1805, 128, 128, 8
        $region80: #{_fused_mlp_call.1} parent=55 // pred_fallthru
          _
      $region56: #{_fused_mlp_call.1} parent=5 // pred_fallthru
        _
      %p1825 = scmp.le.s32.totalorder 2, %s23
      // Predicated region
      $region81: #{_fused_mlp_call.1} parent=5 // pred_check
        %p1826 = pneg %p1825
      $region82: #{_fused_mlp_call.1} parent=5 // pred_check_branch
        %1828 = sbr.rel (%p1826) target = $region84
      $region83: #{_fused_mlp_call.1} parent=5 // pred_region
        %s1829 = ssub.s32 %s23, 2
        // Predicated region
        $region85: #{_fused_mlp_call.1} parent=83 // pred_check
          %p1830 = pneg %p246
        $region86: #{_fused_mlp_call.1} parent=83 // pred_check_branch
          %1832 = sbr.rel (%p1830) target = $region88
        $region87: #{_fused_mlp_call.1} parent=83 // pred_region
          %s1833 = sand.u32 %s231, 1
          %s1834 = scalar_lea.sflag [#allocation4], %s1833
          %s1835 = sand.u32 %s231, 1
          %s1836 = smul.addr %s1835, 128
          %s1837 = scalar_lea.vmem [#allocation11], %s1836
          %1838 = dma.done %s1834, 2048
        $region88: #{_fused_mlp_call.1} parent=83 // pred_fallthru
          _
      $region84: #{_fused_mlp_call.1} parent=5 // pred_fallthru
        _
    $region6: #{_fused_mlp_call.1} parent=1 // loop_footer
      %s27 = sadd.s32 1, %s23
    $region7: #{_fused_mlp_call.1} parent=1 // loop_footer_branch
      %22 = sbr.rel target = $region3
    $region8: #{_fused_mlp_call.1} parent=1 // loop_exit
      _
    %1839 = vsyncpa [#allocation3], 1
    %s1840 = scalar_lea.sflag [#allocation3], 1
    %1841 = vsyncpa %s1840, 1
    %1842 = vsyncpa [#allocation6], 1
    %1843 = vsyncpa [#allocation9], 1
    %1844 = vsyncpa [#allocation4], 1
    %s1845 = scalar_lea.sflag [#allocation4], 1
    %1846 = vsyncpa %s1845, 1

// kernel: _fused_mlp_call.1
$region0: #{_fused_mlp_call.1}
  #allocation0 [shape = 'u32[]', space=smem, size = 0x4, offset = 0x4, fixed_abs, tag = 'smem constant byte address 0x4 - core index']
  #allocation1 [shape = 'u32[144,128]{1,0:T(1,128)}', space=vmem, size = 0x12000, scoped, tag = 'internal scratch']
  %s0 = inlined_call_operand.hbm [shape: f32[256,256], index: 0, kind: input, shape index: {}]
  %s1 = inlined_call_operand.hbm [shape: bf16[256,256], index: 1, kind: input, shape index: {}]
  %s2 = inlined_call_operand.vmem [shape: f32[1,256], index: 2, kind: input, shape index: {}]
  %s3 = inlined_call_operand.hbm [shape: bf16[256,256], index: 3, kind: input, shape index: {}]
  %s4 = inlined_call_operand.vmem [shape: f32[1,256], index: 4, kind: input, shape index: {}]
  %s5 = inlined_call_operand.hbm [shape: bf16[256,256], index: 5, kind: input, shape index: {}]
  %s6 = inlined_call_operand.vmem [shape: f32[1,256], index: 6, kind: input, shape index: {}]
  %s7 = inlined_call_operand.hbm [shape: bf16[256,128], index: 7, kind: input, shape index: {}]
  %s8 = inlined_call_operand.vmem [shape: f32[1,128], index: 8, kind: input, shape index: {}]
  %s9 = inlined_call_operand.hbm [shape: f32[256,128], index: 9, kind: output, shape index: {}]
  %s10 = sld [smem:[#allocation0]]
  $region89: #{_fused_mlp_call.1} parent=0
    _
  %s12 = ssub.s32 1, %s10
  %s13 = scalar_select 0, %s12, %s10
  $region1: #{_fused_mlp_call.1} parent=0
    #allocation2 [shape = 'u8[262144]{0}', space=vmem, size = 0x40000, scoped, tag = 'input window, operand 0']
    #allocation3 [shape = 's32[2]{0}', space=sflag, size = 0x8, scoped, tag = 'scoped memory for _fused_mlp_call.1']
    #allocation4 [shape = 's32[2]{0}', space=sflag, size = 0x8, scoped, tag = 'scoped memory for _fused_mlp_call.1']
    #allocation5 [shape = 'u8[131072]{0}', space=vmem, size = 0x20000, scoped, tag = 'input window, operand 1, single buffered']
    #allocation6 [shape = 's32[1]{0}', space=sflag, size = 0x4, scoped, tag = 'scoped memory for _fused_mlp_call.1']
    #allocation7 [shape = 'u8[131072]{0}', space=vmem, size = 0x20000, scoped, tag = 'input window, operand 3, single buffered']
    #allocation8 [shape = 'u8[131072]{0}', space=vmem, size = 0x20000, scoped, tag = 'input window, operand 5, single buffered']
    #allocation9 [shape = 's32[1]{0}', space=sflag, size = 0x4, scoped, tag = 'scoped memory for _fused_mlp_call.1']
    #allocation10 [shape = 'u8[65536]{0}', space=vmem, size = 0x10000, scoped, tag = 'input window, operand 7, single buffered']
    #allocation11 [shape = 'u8[131072]{0}', space=vmem, size = 0x20000, scoped, tag = 'output window, operand 0']
    %14 = vsyncpa [#allocation3], 0
    %s15 = scalar_lea.sflag [#allocation3], 1
    %16 = vsyncpa %s15, 0
    %17 = vsyncpa [#allocation6], 0
    %18 = vsyncpa [#allocation9], 0
    %19 = vsyncpa [#allocation4], 0
    %s20 = scalar_lea.sflag [#allocation4], 1
    %21 = vsyncpa %s20, 0
    loop: start=0, step=1, limit=4
    $region2: #{_fused_mlp_call.1} parent=1 // loop_pre_header
      _
    $region3: #{_fused_mlp_call.1} parent=1 // loop_header
      %s23 = sphi 0, %s27
      %p24 = scmp.ge.s32.totalorder %s23, 4
      %s33 = sphi 0, %s35
      %s36 = sphi 0, %s33
      %s37 = sphi 0, %s36
      %s53 = sphi 0, %s37
      %s57 = sphi 0, %s57
      %s59 = sphi 0, %s57
      %s60 = sphi 0, %s59
      %s74 = sphi 0, %s60
      %s78 = sphi 0, %s78
      %s80 = sphi 0, %s78
      %s81 = sphi 0, %s80
      %s95 = sphi 0, %s81
      %s99 = sphi 0, %s99
      %s101 = sphi 0, %s99
      %s102 = sphi 0, %s101
      %s116 = sphi 0, %s102
      %s120 = sphi 0, %s120
      %s122 = sphi 0, %s120
      %s123 = sphi 0, %s122
      %s137 = sphi 0, %s123
      %s141 = sphi 0, %s141
      %s143 = sphi 0, %s141
      %s144 = sphi 0, %s143
      %s158 = sphi 0, %s144
      %s162 = sphi 0, %s162
      %s164 = sphi 0, %s162
      %s165 = sphi 0, %s164
      %s179 = sphi 0, %s165
      %s183 = sphi 0, %s183
      %s185 = sphi 0, %s183
      %s186 = sphi 0, %s185
      %s200 = sphi 0, %s186
      %s204 = sphi 0, %s204
      %s206 = sphi 0, %s204
      %s207 = sphi 0, %s206
      %s221 = sphi 0, %s207
      %s227 = sphi 0, %s229
      %s230 = sphi 0, %s227
      %s231 = sphi 0, %s230
      %s247 = sphi 0, %s231
    $region4: #{_fused_mlp_call.1} parent=1 // loop_header_branch
      %26 = sbr.rel (%p24) target = $region8
    $region5: #{_fused_mlp_call.1} parent=1 // loop_body
      %s28 = ssub.s32 %s23, 1
      %s29 = ssub.s32 %s23, 2
      %s30 = sadd.s32 %s23, 1
      %s31 = ssub.s32 %s23, %s30
      %p32 = scmp.eq.s32.totalorder %s31, 0
      %s34 = sadd.s32 %s33, 1
      %s35 = scalar_select %p32, %s33, %s34
      %p38 = pneg %p32
      %p39 = scmp.eq.s32.totalorder %s23, 1
      %p40 = por %p38, %p39
      %p41 = scmp.ne.s32.totalorder %s33, %s36
      %p42 = scmp.eq.s32.totalorder %s23, 0
      %p43 = por %p41, %p42
      %p44 = scmp.ne.s32.totalorder %s33, %s36
      %p45 = scmp.eq.s32.totalorder %s28, 1
      %p46 = por %p44, %p45
      %p47 = scmp.ne.s32.totalorder %s36, %s37
      %p48 = scmp.eq.s32.totalorder %s28, 0
      %p49 = por %p47, %p48
      %p50 = scmp.ne.s32.totalorder %s36, %s37
      %p51 = scmp.eq.s32.totalorder %s29, 1
      %p52 = por %p50, %p51
      %p54 = scmp.ne.s32.totalorder %s37, %s53
      %p55 = scmp.eq.s32.totalorder %s29, 0
      %p56 = por %p54, %p55
      %s58 = sadd.s32 %s57, 1
      %p61 = scmp.eq.s32.totalorder %s23, 1
      %p62 = scmp.ne.s32.totalorder %s57, %s59
      %p63 = scmp.eq.s32.totalorder %s23, 0
      %p64 = por %p62, %p63
      %p65 = scmp.ne.s32.totalorder %s57, %s59
      %p66 = scmp.eq.s32.totalorder %s28, 1
      %p67 = por %p65, %p66
      %p68 = scmp.ne.s32.totalorder %s59, %s60
      %p69 = scmp.eq.s32.totalorder %s28, 0
      %p70 = por %p68, %p69
      %p71 = scmp.ne.s32.totalorder %s59, %s60
      %p72 = scmp.eq.s32.totalorder %s29, 1
      %p73 = por %p71, %p72
      %p75 = scmp.ne.s32.totalorder %s60, %s74
      %p76 = scmp.eq.s32.totalorder %s29, 0
      %p77 = por %p75, %p76
      %s79 = sadd.s32 %s78, 1
      %p82 = scmp.eq.s32.totalorder %s23, 1
      %p83 = scmp.ne.s32.totalorder %s78, %s80
      %p84 = scmp.eq.s32.totalorder %s23, 0
      %p85 = por %p83, %p84
      %p86 = scmp.ne.s32.totalorder %s78, %s80
      %p87 = scmp.eq.s32.totalorder %s28, 1
      %p88 = por %p86, %p87
      %p89 = scmp.ne.s32.totalorder %s80, %s81
      %p90 = scmp.eq.s32.totalorder %s28, 0
      %p91 = por %p89, %p90
      %p92 = scmp.ne.s32.totalorder %s80, %s81
      %p93 = scmp.eq.s32.totalorder %s29, 1
      %p94 = por %p92, %p93
      %p96 = scmp.ne.s32.totalorder %s81, %s95
      %p97 = scmp.eq.s32.totalorder %s29, 0
      %p98 = por %p96, %p97
      %s100 = sadd.s32 %s99, 1
      %p103 = scmp.eq.s32.totalorder %s23, 1
      %p104 = scmp.ne.s32.totalorder %s99, %s101
      %p105 = scmp.eq.s32.totalorder %s23, 0
      %p106 = por %p104, %p105
      %p107 = scmp.ne.s32.totalorder %s99, %s101
      %p108 = scmp.eq.s32.totalorder %s28, 1
      %p109 = por %p107, %p108
      %p110 = scmp.ne.s32.totalorder %s101, %s102
      %p111 = scmp.eq.s32.totalorder %s28, 0
      %p112 = por %p110, %p111
      %p113 = scmp.ne.s32.totalorder %s101, %s102
      %p114 = scmp.eq.s32.totalorder %s29, 1
      %p115 = por %p113, %p114
      %p117 = scmp.ne.s32.totalorder %s102, %s116
      %p118 = scmp.eq.s32.totalorder %s29, 0
      %p119 = por %p117, %p118
      %s121 = sadd.s32 %s120, 1
      %p124 = scmp.eq.s32.totalorder %s23, 1
      %p125 = scmp.ne.s32.totalorder %s120, %s122
      %p126 = scmp.eq.s32.totalorder %s23, 0
      %p127 = por %p125, %p126
      %p128 = scmp.ne.s32.totalorder %s120, %s122
      %p129 = scmp.eq.s32.totalorder %s28, 1
      %p130 = por %p128, %p129
      %p131 = scmp.ne.s32.totalorder %s122, %s123
      %p132 = scmp.eq.s32.totalorder %s28, 0
      %p133 = por %p131, %p132
      %p134 = scmp.ne.s32.totalorder %s122, %s123
      %p135 = scmp.eq.s32.totalorder %s29, 1
      %p136 = por %p134, %p135
      %p138 = scmp.ne.s32.totalorder %s123, %s137
      %p139 = scmp.eq.s32.totalorder %s29, 0
      %p140 = por %p138, %p139
      %s142 = sadd.s32 %s141, 1
      %p145 = scmp.eq.s32.totalorder %s23, 1
      %p146 = scmp.ne.s32.totalorder %s141, %s143
      %p147 = scmp.eq.s32.totalorder %s23, 0
      %p148 = por %p146, %p147
      %p149 = scmp.ne.s32.totalorder %s141, %s143
      %p150 = scmp.eq.s32.totalorder %s28, 1
      %p151 = por %p149, %p150
      %p152 = scmp.ne.s32.totalorder %s143, %s144
      %p153 = scmp.eq.s32.totalorder %s28, 0
      %p154 = por %p152, %p153
      %p155 = scmp.ne.s32.totalorder %s143, %s144
      %p156 = scmp.eq.s32.totalorder %s29, 1
      %p157 = por %p155, %p156
      %p159 = scmp.ne.s32.totalorder %s144, %s158
      %p160 = scmp.eq.s32.totalorder %s29, 0
      %p161 = por %p159, %p160
      %s163 = sadd.s32 %s162, 1
      %p166 = scmp.eq.s32.totalorder %s23, 1
      %p167 = scmp.ne.s32.totalorder %s162, %s164
      %p168 = scmp.eq.s32.totalorder %s23, 0
      %p169 = por %p167, %p168
      %p170 = scmp.ne.s32.totalorder %s162, %s164
      %p171 = scmp.eq.s32.totalorder %s28, 1
      %p172 = por %p170, %p171
      %p173 = scmp.ne.s32.totalorder %s164, %s165
      %p174 = scmp.eq.s32.totalorder %s28, 0
      %p175 = por %p173, %p174
      %p176 = scmp.ne.s32.totalorder %s164, %s165
      %p177 = scmp.eq.s32.totalorder %s29, 1
      %p178 = por %p176, %p177
      %p180 = scmp.ne.s32.totalorder %s165, %s179
      %p181 = scmp.eq.s32.totalorder %s29, 0
      %p182 = por %p180, %p181
      %s184 = sadd.s32 %s183, 1
      %p187 = scmp.eq.s32.totalorder %s23, 1
      %p188 = scmp.ne.s32.totalorder %s183, %s185
      %p189 = scmp.eq.s32.totalorder %s23, 0
      %p190 = por %p188, %p189
      %p191 = scmp.ne.s32.totalorder %s183, %s185
      %p192 = scmp.eq.s32.totalorder %s28, 1
      %p193 = por %p191, %p192
      %p194 = scmp.ne.s32.totalorder %s185, %s186
      %p195 = scmp.eq.s32.totalorder %s28, 0
      %p196 = por %p194, %p195
      %p197 = scmp.ne.s32.totalorder %s185, %s186
      %p198 = scmp.eq.s32.totalorder %s29, 1
      %p199 = por %p197, %p198
      %p201 = scmp.ne.s32.totalorder %s186, %s200
      %p202 = scmp.eq.s32.totalorder %s29, 0
      %p203 = por %p201, %p202
      %s205 = sadd.s32 %s204, 1
      %p208 = scmp.eq.s32.totalorder %s23, 1
      %p209 = scmp.ne.s32.totalorder %s204, %s206
      %p210 = scmp.eq.s32.totalorder %s23, 0
      %p211 = por %p209, %p210
      %p212 = scmp.ne.s32.totalorder %s204, %s206
      %p213 = scmp.eq.s32.totalorder %s28, 1
      %p214 = por %p212, %p213
      %p215 = scmp.ne.s32.totalorder %s206, %s207
      %p216 = scmp.eq.s32.totalorder %s28, 0
      %p217 = por %p215, %p216
      %p218 = scmp.ne.s32.totalorder %s206, %s207
      %p219 = scmp.eq.s32.totalorder %s29, 1
      %p220 = por %p218, %p219
      %p222 = scmp.ne.s32.totalorder %s207, %s221
      %p223 = scmp.eq.s32.totalorder %s29, 0
      %p224 = por %p222, %p223
      %s225 = ssub.s32 %s23, %s30
      %p226 = scmp.eq.s32.totalorder %s225, 0
      %s228 = sadd.s32 %s227, 1
      %s229 = scalar_select %p226, %s227, %s228
      %p232 = pneg %p226
      %p233 = scmp.eq.s32.totalorder %s23, 1
      %p234 = por %p232, %p233
      %p235 = scmp.ne.s32.totalorder %s227, %s230
      %p236 = scmp.eq.s32.totalorder %s23, 0
      %p237 = por %p235, %p236
      %p238 = scmp.ne.s32.totalorder %s227, %s230
      %p239 = scmp.eq.s32.totalorder %s28, 1
      %p240 = por %p238, %p239
      %p241 = scmp.ne.s32.totalorder %s230, %s231
      %p242 = scmp.eq.s32.totalorder %s28, 0
      %p243 = por %p241, %p242
      %p244 = scmp.ne.s32.totalorder %s230, %s231
      %p245 = scmp.eq.s32.totalorder %s29, 1
      %p246 = por %p244, %p245
      %p248 = scmp.ne.s32.totalorder %s231, %s247
      %p249 = scmp.eq.s32.totalorder %s29, 0
      %p250 = por %p248, %p249
      %p251 = scmp.le.s32.totalorder 1, %s23
      %p252 = scmp.lt.s32.totalorder %s23, 3
      %p253 = pnand %p251, %p252
      %p254 = pneg %p253
      // Predicated region
      $region9: #{_fused_mlp_call.1} parent=5 // pred_check
        _
      $region10: #{_fused_mlp_call.1} parent=5 // pred_check_branch
        %256 = sbr.rel (%p253) target = $region12
      $region11: #{_fused_mlp_call.1} parent=5 // pred_region
        %s257 = ssub.s32 %s23, 1
        // Predicated region
        $region13: #{_fused_mlp_call.1} parent=11 // pred_check
          %p258 = pneg %p70
        $region14: #{_fused_mlp_call.1} parent=11 // pred_check_branch
          %260 = sbr.rel (%p258) target = $region16
        $region15: #{_fused_mlp_call.1} parent=11 // pred_region
          %s262 = ssub.s32 4096, 4096
          %263 = vsyncadd [#allocation6], %s262
          %s264 = sshll.u32 [#allocation5], 4
          %s265 = int_to_ptr.vmem [resolvable:$true] %s264
          %270 = dma.hbm_to_vmem [thread:$0]  %s1, 4096, %s265, [#allocation6], 128, 128, 8
        $region16: #{_fused_mlp_call.1} parent=11 // pred_fallthru
          _
        // Predicated region
        $region17: #{_fused_mlp_call.1} parent=11 // pred_check
          %p271 = pneg %p91
        $region18: #{_fused_mlp_call.1} parent=11 // pred_check_branch
          %273 = sbr.rel (%p271) target = $region20
        $region19: #{_fused_mlp_call.1} parent=11 // pred_region
          _
        $region20: #{_fused_mlp_call.1} parent=11 // pred_fallthru
          _
        // Predicated region
        $region21: #{_fused_mlp_call.1} parent=11 // pred_check
          %p274 = pneg %p112
        $region22: #{_fused_mlp_call.1} parent=11 // pred_check_branch
          %276 = sbr.rel (%p274) target = $region24
        $region23: #{_fused_mlp_call.1} parent=11 // pred_region
          %s278 = ssub.s32 4096, 4096
          %279 = vsyncadd [#allocation6], %s278
          %s280 = sshll.u32 [#allocation7], 4
          %s281 = int_to_ptr.vmem [resolvable:$true] %s280
          %286 = dma.hbm_to_vmem [thread:$0]  %s3, 4096, %s281, [#allocation6], 128, 128, 8
        $region24: #{_fused_mlp_call.1} parent=11 // pred_fallthru
          _
        // Predicated region
        $region25: #{_fused_mlp_call.1} parent=11 // pred_check
          %p287 = pneg %p133
        $region26: #{_fused_mlp_call.1} parent=11 // pred_check_branch
          %289 = sbr.rel (%p287) target = $region28
        $region27: #{_fused_mlp_call.1} parent=11 // pred_region
          _
        $region28: #{_fused_mlp_call.1} parent=11 // pred_fallthru
          _
        // Predicated region
        $region29: #{_fused_mlp_call.1} parent=11 // pred_check
          %p290 = pneg %p154
        $region30: #{_fused_mlp_call.1} parent=11 // pred_check_branch
          %292 = sbr.rel (%p290) target = $region32
        $region31: #{_fused_mlp_call.1} parent=11 // pred_region
          %s294 = ssub.s32 4096, 4096
          %295 = vsyncadd [#allocation9], %s294
          %s296 = sshll.u32 [#allocation8], 4
          %s297 = int_to_ptr.vmem [resolvable:$true] %s296
          %302 = dma.hbm_to_vmem [thread:$0]  %s5, 4096, %s297, [#allocation9], 128, 128, 8
        $region32: #{_fused_mlp_call.1} parent=11 // pred_fallthru
          _
        // Predicated region
        $region33: #{_fused_mlp_call.1} parent=11 // pred_check
          %p303 = pneg %p175
        $region34: #{_fused_mlp_call.1} parent=11 // pred_check_branch
          %305 = sbr.rel (%p303) target = $region36
        $region35: #{_fused_mlp_call.1} parent=11 // pred_region
          _
        $region36: #{_fused_mlp_call.1} parent=11 // pred_fallthru
          _
        // Predicated region
        $region37: #{_fused_mlp_call.1} parent=11 // pred_check
          %p306 = pneg %p196
        $region38: #{_fused_mlp_call.1} parent=11 // pred_check_branch
          %308 = sbr.rel (%p306) target = $region40
        $region39: #{_fused_mlp_call.1} parent=11 // pred_region
          %s310 = ssub.s32 2048, 2048
          %311 = vsyncadd [#allocation9], %s310
          %s312 = sshll.u32 [#allocation10], 4
          %s313 = int_to_ptr.vmem [resolvable:$true] %s312
          %318 = dma.hbm_to_vmem [thread:$0]  %s7, 2048, %s313, [#allocation9], 64, 64, 4
        $region40: #{_fused_mlp_call.1} parent=11 // pred_fallthru
          _
        // Predicated region
        $region41: #{_fused_mlp_call.1} parent=11 // pred_check
          %p319 = pneg %p217
        $region42: #{_fused_mlp_call.1} parent=11 // pred_check_branch
          %321 = sbr.rel (%p319) target = $region44
        $region43: #{_fused_mlp_call.1} parent=11 // pred_region
          _
        $region44: #{_fused_mlp_call.1} parent=11 // pred_fallthru
          _
      $region12: #{_fused_mlp_call.1} parent=5 // pred_fallthru
        _
      %p322 = scmp.lt.s32.totalorder %s23, 2
      // Predicated region
      $region45: #{_fused_mlp_call.1} parent=5 // pred_check
        %p323 = pneg %p322
      $region46: #{_fused_mlp_call.1} parent=5 // pred_check_branch
        %325 = sbr.rel (%p323) target = $region48
      $region47: #{_fused_mlp_call.1} parent=5 // pred_region
        // Predicated region
        $region49: #{_fused_mlp_call.1} parent=47 // pred_check
          %p326 = pneg %p43
        $region50: #{_fused_mlp_call.1} parent=47 // pred_check_branch
          %328 = sbr.rel (%p326) target = $region52
        $region51: #{_fused_mlp_call.1} parent=47 // pred_region
          %s329 = sand.u32 %s33, 1
          %s330 = scalar_lea.sflag [#allocation3], %s329
          %s331 = sand.u32 %s33, 1
          %s332 = smul.addr %s331, 256
          %s333 = scalar_lea.vmem [#allocation2], %s332
          %s334 = smul.u32 16, %s23
          %s336 = ssub.s32 4096, 4096
          %337 = vsyncadd %s330, %s336
          %s338 = smul.addr %s334, 2
          %s339 = smul.addr %s338, 128
          %s340 = scalar_lea.hbm %s0, %s339
          %s341 = sshll.u32 %s333, 4
          %s342 = int_to_ptr.vmem [resolvable:$true] %s341
          %347 = dma.hbm_to_vmem [thread:$0]  %s340, 4096, %s342, %s330, 256, 256, 16
        $region52: #{_fused_mlp_call.1} parent=47 // pred_fallthru
          _
      $region48: #{_fused_mlp_call.1} parent=5 // pred_fallthru
        _
      %p348 = scmp.le.s32.totalorder 1, %s23
      %p349 = scmp.lt.s32.totalorder %s23, 3
      %p350 = pnand %p348, %p349
      %p351 = pneg %p350
      // Predicated region
      $region53: #{_fused_mlp_call.1} parent=5 // pred_check
        _
      $region54: #{_fused_mlp_call.1} parent=5 // pred_check_branch
        %353 = sbr.rel (%p350) target = $region56
      $region55: #{_fused_mlp_call.1} parent=5 // pred_region
        %s354 = ssub.s32 %s23, 1
        %s355 = sand.u32 %s36, 1
        %s356 = scalar_lea.sflag [#allocation3], %s355
        %s357 = sand.u32 %s36, 1
        %s358 = smul.addr %s357, 256
        %s359 = scalar_lea.vmem [#allocation2], %s358
        // Predicated region
        $region57: #{_fused_mlp_call.1} parent=55 // pred_check
          %p360 = pneg %p49
        $region58: #{_fused_mlp_call.1} parent=55 // pred_check_branch
          %362 = sbr.rel (%p360) target = $region60
        $region59: #{_fused_mlp_call.1} parent=55 // pred_region
          %363 = dma.done %s356, 4096
        $region60: #{_fused_mlp_call.1} parent=55 // pred_fallthru
          _
        // Predicated region
        $region61: #{_fused_mlp_call.1} parent=55 // pred_check
          %p364 = pneg %p70
        $region62: #{_fused_mlp_call.1} parent=55 // pred_check_branch
          %366 = sbr.rel (%p364) target = $region64
        $region63: #{_fused_mlp_call.1} parent=55 // pred_region
          %367 = dma.done [#allocation6], 4096
        $region64: #{_fused_mlp_call.1} parent=55 // pred_fallthru
          _
        // Predicated region
        $region65: #{_fused_mlp_call.1} parent=55 // pred_check
          %p368 = pneg %p112
        $region66: #{_fused_mlp_call.1} parent=55 // pred_check_branch
          %370 = sbr.rel (%p368) target = $region68
        $region67: #{_fused_mlp_call.1} parent=55 // pred_region
          %371 = dma.done [#allocation6], 4096
        $region68: #{_fused_mlp_call.1} parent=55 // pred_fallthru
          _
        // Predicated region
        $region69: #{_fused_mlp_call.1} parent=55 // pred_check
          %p372 = pneg %p154
        $region70: #{_fused_mlp_call.1} parent=55 // pred_check_branch
          %374 = sbr.rel (%p372) target = $region72
        $region71: #{_fused_mlp_call.1} parent=55 // pred_region
          %375 = dma.done [#allocation9], 4096
        $region72: #{_fused_mlp_call.1} parent=55 // pred_fallthru
          _
        // Predicated region
        $region73: #{_fused_mlp_call.1} parent=55 // pred_check
          %p376 = pneg %p196
        $region74: #{_fused_mlp_call.1} parent=55 // pred_check_branch
          %378 = sbr.rel (%p376) target = $region76
        $region75: #{_fused_mlp_call.1} parent=55 // pred_region
          %379 = dma.done [#allocation9], 2048
        $region76: #{_fused_mlp_call.1} parent=55 // pred_fallthru
          _
        %s380 = sand.u32 %s36, 1
        %s381 = scalar_lea.sflag [#allocation3], %s380
        %s382 = sand.u32 %s36, 1
        %s383 = smul.addr %s382, 256
        %s384 = scalar_lea.vmem [#allocation2], %s383
        %p385 = pneg %p49
        %p386 = pneg %p46
        %p387 = pneg %p70
        %p388 = pneg %p67
        %p389 = pneg %p91
        %p390 = pneg %p88
        %p391 = pneg %p112
        %p392 = pneg %p109
        %p393 = pneg %p133
        %p394 = pneg %p130
        %p395 = pneg %p154
        %p396 = pneg %p151
        %p397 = pneg %p175
        %p398 = pneg %p172
        %p399 = pneg %p196
        %p400 = pneg %p193
        %p401 = pneg %p217
        %p402 = pneg %p214
        %p403 = pneg %p243
        %p404 = pneg %p240
        %s405 = sand.u32 %s230, 1
        %s406 = scalar_lea.sflag [#allocation4], %s405
        %s407 = sand.u32 %s230, 1
        %s408 = smul.addr %s407, 128
        %s409 = scalar_lea.vmem [#allocation11], %s408
        %s410 = smul.u32 16, %s28
        %s411 = smul.u32 16, %s28
        %v413 = vld [vmem:[%s359] sm:$0xff]
        %v414 = vld [vmem:[%s359 + $0x8] sm:$0xff]
        %v415 = vld [vmem:[%s359 + $0x10] sm:$0xff]
        %v416 = vld [vmem:[%s359 + $0x18] sm:$0xff]
        %v417 = vld [vmem:[%s359 + $0x20] sm:$0xff]
        %v418 = vld [vmem:[%s359 + $0x28] sm:$0xff]
        %v419 = vld [vmem:[%s359 + $0x30] sm:$0xff]
        %v420 = vld [vmem:[%s359 + $0x38] sm:$0xff]
        %v421 = vld [vmem:[%s359 + $0x40] sm:$0xff]
        %v422 = vld [vmem:[%s359 + $0x48] sm:$0xff]
        %v423 = vld [vmem:[%s359 + $0x50] sm:$0xff]
        %v424 = vld [vmem:[%s359 + $0x58] sm:$0xff]
        %v425 = vld [vmem:[%s359 + $0x60] sm:$0xff]
        %v426 = vld [vmem:[%s359 + $0x68] sm:$0xff]
        %v427 = vld [vmem:[%s359 + $0x70] sm:$0xff]
        %v428 = vld [vmem:[%s359 + $0x78] sm:$0xff]
        %v429 = vld [vmem:[%s359 + $0x80] sm:$0xff]
        %v430 = vld [vmem:[%s359 + $0x88] sm:$0xff]
        %v431 = vld [vmem:[%s359 + $0x90] sm:$0xff]
        %v432 = vld [vmem:[%s359 + $0x98] sm:$0xff]
        %v433 = vld [vmem:[%s359 + $0xa0] sm:$0xff]
        %v434 = vld [vmem:[%s359 + $0xa8] sm:$0xff]
        %v435 = vld [vmem:[%s359 + $0xb0] sm:$0xff]
        %v436 = vld [vmem:[%s359 + $0xb8] sm:$0xff]
        %v437 = vld [vmem:[%s359 + $0xc0] sm:$0xff]
        %v438 = vld [vmem:[%s359 + $0xc8] sm:$0xff]
        %v439 = vld [vmem:[%s359 + $0xd0] sm:$0xff]
        %v440 = vld [vmem:[%s359 + $0xd8] sm:$0xff]
        %v441 = vld [vmem:[%s359 + $0xe0] sm:$0xff]
        %v442 = vld [vmem:[%s359 + $0xe8] sm:$0xff]
        %v443 = vld [vmem:[%s359 + $0xf0] sm:$0xff]
        %v444 = vld [vmem:[%s359 + $0xf8] sm:$0xff]
        %v445 = vpack.c.bf16 %v415, %v413
        %v446 = vpack.c.bf16 %v416, %v414
        %v447 = vpack.c.bf16 %v419, %v417
        %v448 = vpack.c.bf16 %v420, %v418
        %v449 = vpack.c.bf16 %v423, %v421
        %v450 = vpack.c.bf16 %v424, %v422
        %v451 = vpack.c.bf16 %v427, %v425
        %v452 = vpack.c.bf16 %v428, %v426
        %v453 = vpack.c.bf16 %v431, %v429
        %v454 = vpack.c.bf16 %v432, %v430
        %v455 = vpack.c.bf16 %v435, %v433
        %v456 = vpack.c.bf16 %v436, %v434
        %v457 = vpack.c.bf16 %v439, %v437
        %v458 = vpack.c.bf16 %v440, %v438
        %v459 = vpack.c.bf16 %v443, %v441
        %v460 = vpack.c.bf16 %v444, %v442
        %v461 = vld [vmem:[#allocation5] sm:$0xff]
        %v462 = vld [vmem:[#allocation5 + $0x8] sm:$0xff]
        %v463 = vld [vmem:[#allocation5 + $0x10] sm:$0xff]
        %v464 = vld [vmem:[#allocation5 + $0x18] sm:$0xff]
        %v465 = vld [vmem:[#allocation5 + $0x20] sm:$0xff]
        %v466 = vld [vmem:[#allocation5 + $0x28] sm:$0xff]
        %v467 = vld [vmem:[#allocation5 + $0x30] sm:$0xff]
        %v468 = vld [vmem:[#allocation5 + $0x38] sm:$0xff]
        %v469 = vld [vmem:[#allocation5 + $0x40] sm:$0xff]
        %v470 = vld [vmem:[#allocation5 + $0x48] sm:$0xff]
        %v471 = vld [vmem:[#allocation5 + $0x50] sm:$0xff]
        %v472 = vld [vmem:[#allocation5 + $0x58] sm:$0xff]
        %v473 = vld [vmem:[#allocation5 + $0x60] sm:$0xff]
        %v474 = vld [vmem:[#allocation5 + $0x68] sm:$0xff]
        %v475 = vld [vmem:[#allocation5 + $0x70] sm:$0xff]
        %v476 = vld [vmem:[#allocation5 + $0x78] sm:$0xff]
        %v477 = vld [vmem:[#allocation5 + $0x80] sm:$0xff]
        %v478 = vld [vmem:[#allocation5 + $0x88] sm:$0xff]
        %v479 = vld [vmem:[#allocation5 + $0x90] sm:$0xff]
        %v480 = vld [vmem:[#allocation5 + $0x98] sm:$0xff]
        %v481 = vld [vmem:[#allocation5 + $0xa0] sm:$0xff]
        %v482 = vld [vmem:[#allocation5 + $0xa8] sm:$0xff]
        %v483 = vld [vmem:[#allocation5 + $0xb0] sm:$0xff]
        %v484 = vld [vmem:[#allocation5 + $0xb8] sm:$0xff]
        %v485 = vld [vmem:[#allocation5 + $0xc0] sm:$0xff]
        %v486 = vld [vmem:[#allocation5 + $0xc8] sm:$0xff]
        %v487 = vld [vmem:[#allocation5 + $0xd0] sm:$0xff]
        %v488 = vld [vmem:[#allocation5 + $0xd8] sm:$0xff]
        %v489 = vld [vmem:[#allocation5 + $0xe0] sm:$0xff]
        %v490 = vld [vmem:[#allocation5 + $0xe8] sm:$0xff]
        %v491 = vld [vmem:[#allocation5 + $0xf0] sm:$0xff]
        %v492 = vld [vmem:[#allocation5 + $0xf8] sm:$0xff]
        %v493 = vld [vmem:[%s2] sm:$0x3]
        %v495 = vlaneseq
        %v496 = vshrl.u32 %v495, 7
        %v497 = vsub.s32 0, %v496
        %v498 = vrot.slane %v493, %v497
        %v499 = vlaneseq
        %v500 = vshrl.u32 %v499, 7
        %v501 = vsub.s32 1, %v500
        %v502 = vrot.slane %v493, %v501
        %v537 = vunpack.c.l.b16 %v461
        %v538 = vunpack.c.h.b16 %v461
        %v539 = vunpack.c.l.b16 %v462
        %v540 = vunpack.c.h.b16 %v462
        %v541 = vunpack.c.l.b16 %v463
        %v542 = vunpack.c.h.b16 %v463
        %v543 = vunpack.c.l.b16 %v464
        %v544 = vunpack.c.h.b16 %v464
        %v545 = vunpack.c.l.b16 %v465
        %v546 = vunpack.c.h.b16 %v465
        %v547 = vunpack.c.l.b16 %v466
        %v548 = vunpack.c.h.b16 %v466
        %v549 = vunpack.c.l.b16 %v467
        %v550 = vunpack.c.h.b16 %v467
        %v551 = vunpack.c.l.b16 %v468
        %v552 = vunpack.c.h.b16 %v468
        %v553 = vunpack.c.l.b16 %v469
        %v554 = vunpack.c.h.b16 %v469
        %v555 = vunpack.c.l.b16 %v470
        %v556 = vunpack.c.h.b16 %v470
        %v557 = vunpack.c.l.b16 %v471
        %v558 = vunpack.c.h.b16 %v471
        %v559 = vunpack.c.l.b16 %v472
        %v560 = vunpack.c.h.b16 %v472
        %v561 = vunpack.c.l.b16 %v473
        %v562 = vunpack.c.h.b16 %v473
        %v563 = vunpack.c.l.b16 %v474
        %v564 = vunpack.c.h.b16 %v474
        %v565 = vunpack.c.l.b16 %v475
        %v566 = vunpack.c.h.b16 %v475
        %v567 = vunpack.c.l.b16 %v476
        %v568 = vunpack.c.h.b16 %v476
        %v569 = vunpack.c.l.b16 %v477
        %v570 = vunpack.c.h.b16 %v477
        %v571 = vunpack.c.l.b16 %v478
        %v572 = vunpack.c.h.b16 %v478
        %v573 = vunpack.c.l.b16 %v479
        %v574 = vunpack.c.h.b16 %v479
        %v575 = vunpack.c.l.b16 %v480
        %v576 = vunpack.c.h.b16 %v480
        %v577 = vunpack.c.l.b16 %v481
        %v578 = vunpack.c.h.b16 %v481
        %v579 = vunpack.c.l.b16 %v482
        %v580 = vunpack.c.h.b16 %v482
        %v581 = vunpack.c.l.b16 %v483
        %v582 = vunpack.c.h.b16 %v483
        %v583 = vunpack.c.l.b16 %v484
        %v584 = vunpack.c.h.b16 %v484
        %v585 = vunpack.c.l.b16 %v485
        %v586 = vunpack.c.h.b16 %v485
        %v587 = vunpack.c.l.b16 %v486
        %v588 = vunpack.c.h.b16 %v486
        %v589 = vunpack.c.l.b16 %v487
        %v590 = vunpack.c.h.b16 %v487
        %v591 = vunpack.c.l.b16 %v488
        %v592 = vunpack.c.h.b16 %v488
        %v593 = vunpack.c.l.b16 %v489
        %v594 = vunpack.c.h.b16 %v489
        %v595 = vunpack.c.l.b16 %v490
        %v596 = vunpack.c.h.b16 %v490
        %v597 = vunpack.c.l.b16 %v491
        %v598 = vunpack.c.h.b16 %v491
        %v599 = vunpack.c.l.b16 %v492
        %v600 = vunpack.c.h.b16 %v492
        %v601 = vpack.c.b16 %v539, %v537
        %v602 = vpack.c.b16 %v540, %v538
        %v603 = vpack.c.b16 %v543, %v541
        %v604 = vpack.c.b16 %v544, %v542
        %v605 = vpack.c.b16 %v547, %v545
        %v606 = vpack.c.b16 %v548, %v546
        %v607 = vpack.c.b16 %v551, %v549
        %v608 = vpack.c.b16 %v552, %v550
        %v609 = vpack.c.b16 %v555, %v553
        %v610 = vpack.c.b16 %v556, %v554
        %v611 = vpack.c.b16 %v559, %v557
        %v612 = vpack.c.b16 %v560, %v558
        %v613 = vpack.c.b16 %v563, %v561
        %v614 = vpack.c.b16 %v564, %v562
        %v615 = vpack.c.b16 %v567, %v565
        %v616 = vpack.c.b16 %v568, %v566
        %v617 = vpack.c.b16 %v571, %v569
        %v618 = vpack.c.b16 %v572, %v570
        %v619 = vpack.c.b16 %v575, %v573
        %v620 = vpack.c.b16 %v576, %v574
        %v621 = vpack.c.b16 %v579, %v577
        %v622 = vpack.c.b16 %v580, %v578
        %v623 = vpack.c.b16 %v583, %v581
        %v624 = vpack.c.b16 %v584, %v582
        %v625 = vpack.c.b16 %v587, %v585
        %v626 = vpack.c.b16 %v588, %v586
        %v627 = vpack.c.b16 %v591, %v589
        %v628 = vpack.c.b16 %v592, %v590
        %v629 = vpack.c.b16 %v595, %v593
        %v630 = vpack.c.b16 %v596, %v594
        %v631 = vpack.c.b16 %v599, %v597
        %v632 = vpack.c.b16 %v600, %v598
        %665 = vmatprep.subr.bf16.mxu0 %v602
        %666 = vmatpush1.bf16.msra.mxu0 %v601
        %667 = vmatprep.subr.bf16.mxu0 %v604
        %668 = vmatpush1.bf16.msra.mxu0 %v603
        %669 = vmatprep.subr.bf16.mxu0 %v606
        %670 = vmatpush1.bf16.msra.mxu0 %v605
        %671 = vmatprep.subr.bf16.mxu0 %v608
        %672 = vmatpush1.bf16.msra.mxu0 %v607
        %673 = vmatprep.subr.bf16.mxu0 %v610
        %674 = vmatpush1.bf16.msra.mxu0 %v609
        %675 = vmatprep.subr.bf16.mxu0 %v612
        %676 = vmatpush1.bf16.msra.mxu0 %v611
        %677 = vmatprep.subr.bf16.mxu0 %v614
        %678 = vmatpush1.bf16.msra.mxu0 %v613
        %679 = vmatprep.subr.bf16.mxu0 %v616
        %680 = vmatpush1.bf16.msra.mxu0 %v615
        %681 = vmatprep.subr.bf16.mxu0 %v618
        %682 = vmatpush1.bf16.msra.mxu0 %v617
        %683 = vmatprep.subr.bf16.mxu0 %v620
        %684 = vmatpush1.bf16.msra.mxu0 %v619
        %685 = vmatprep.subr.bf16.mxu0 %v622
        %686 = vmatpush1.bf16.msra.mxu0 %v621
        %687 = vmatprep.subr.bf16.mxu0 %v624
        %688 = vmatpush1.bf16.msra.mxu0 %v623
        %689 = vmatprep.subr.bf16.mxu0 %v626
        %690 = vmatpush1.bf16.msra.mxu0 %v625
        %691 = vmatprep.subr.bf16.mxu0 %v628
        %692 = vmatpush1.bf16.msra.mxu0 %v627
        %693 = vmatprep.subr.bf16.mxu0 %v630
        %694 = vmatpush1.bf16.msra.mxu0 %v629
        %695 = vmatprep.subr.bf16.mxu0 %v632
        %696 = vmatpush1.bf16.msra.mxu0 %v631
        %697 = vmatprep.mubr.bf16.mxu0 %v446
        %698 = vmatmul.mubr.bf16.gmra.mrb[0].mxu0 %v445
        %v699 = vpop.f32.mrb[0].mxu0
        %v700 = vadd.f32 %v498, %v699
        %v701 = vpop.f32.mrb[0].mxu0
        %v702 = vadd.f32 %v502, %v701
        %v703 = vpop.f32.mrb[0].mxu0
        %v704 = vadd.f32 %v498, %v703
        %v705 = vpop.f32.mrb[0].mxu0
        %v706 = vadd.f32 %v502, %v705
        %707 = vmatprep.mubr.bf16.mxu0 %v448
        %708 = vmatmul.mubr.bf16.gmra.mrb[0].mxu0 %v447
        %v709 = vpop.f32.mrb[0].mxu0
        %v710 = vadd.f32 %v498, %v709
        %v711 = vpop.f32.mrb[0].mxu0
        %v712 = vadd.f32 %v502, %v711
        %v713 = vpop.f32.mrb[0].mxu0
        %v714 = vadd.f32 %v498, %v713
        %v715 = vpop.f32.mrb[0].mxu0
        %v716 = vadd.f32 %v502, %v715
        %717 = vmatprep.mubr.bf16.mxu0 %v450
        %718 = vmatmul.mubr.bf16.gmra.mrb[0].mxu0 %v449
        %v719 = vpop.f32.mrb[0].mxu0
        %v720 = vadd.f32 %v498, %v719
        %v721 = vpop.f32.mrb[0].mxu0
        %v722 = vadd.f32 %v502, %v721
        %v723 = vpop.f32.mrb[0].mxu0
        %v724 = vadd.f32 %v498, %v723
        %v725 = vpop.f32.mrb[0].mxu0
        %v726 = vadd.f32 %v502, %v725
        %727 = vmatprep.mubr.bf16.mxu0 %v452
        %728 = vmatmul.mubr.bf16.gmra.mrb[0].mxu0 %v451
        %v729 = vpop.f32.mrb[0].mxu0
        %v730 = vadd.f32 %v498, %v729
        %v731 = vpop.f32.mrb[0].mxu0
        %v732 = vadd.f32 %v502, %v731
        %v733 = vpop.f32.mrb[0].mxu0
        %v734 = vadd.f32 %v498, %v733
        %v735 = vpop.f32.mrb[0].mxu0
        %v736 = vadd.f32 %v502, %v735
        %737 = vmatprep.mubr.bf16.mxu0 %v454
        %738 = vmatmul.mubr.bf16.gmra.mrb[0].mxu0 %v453
        %v739 = vpop.f32.mrb[0].mxu0
        %v740 = vadd.f32 %v498, %v739
        %v741 = vpop.f32.mrb[0].mxu0
        %v742 = vadd.f32 %v502, %v741
        %v743 = vpop.f32.mrb[0].mxu0
        %v744 = vadd.f32 %v498, %v743
        %v745 = vpop.f32.mrb[0].mxu0
        %v746 = vadd.f32 %v502, %v745
        %747 = vmatprep.mubr.bf16.mxu0 %v456
        %748 = vmatmul.mubr.bf16.gmra.mrb[0].mxu0 %v455
        %v749 = vpop.f32.mrb[0].mxu0
        %v750 = vadd.f32 %v498, %v749
        %v751 = vpop.f32.mrb[0].mxu0
        %v752 = vadd.f32 %v502, %v751
        %v753 = vpop.f32.mrb[0].mxu0
        %v754 = vadd.f32 %v498, %v753
        %v755 = vpop.f32.mrb[0].mxu0
        %v756 = vadd.f32 %v502, %v755
        %757 = vmatprep.mubr.bf16.mxu0 %v458
        %758 = vmatmul.mubr.bf16.gmra.mrb[0].mxu0 %v457
        %v759 = vpop.f32.mrb[0].mxu0
        %v760 = vadd.f32 %v498, %v759
        %v761 = vpop.f32.mrb[0].mxu0
        %v762 = vadd.f32 %v502, %v761
        %v763 = vpop.f32.mrb[0].mxu0
        %v764 = vadd.f32 %v498, %v763
        %v765 = vpop.f32.mrb[0].mxu0
        %v766 = vadd.f32 %v502, %v765
        %767 = vmatprep.mubr.bf16.mxu0 %v460
        %768 = vmatmul.mubr.bf16.gmra.mrb[0].mxu0 %v459
        %v769 = vpop.f32.mrb[0].mxu0
        %v770 = vadd.f32 %v498, %v769
        %v771 = vpop.f32.mrb[0].mxu0
        %v772 = vadd.f32 %v502, %v771
        %v773 = vpop.f32.mrb[0].mxu0
        %v774 = vadd.f32 %v498, %v773
        %v775 = vpop.f32.mrb[0].mxu0
        %v776 = vadd.f32 %v502, %v775
        %777 = vdwg.mxu0
        %v778 = vmax.f32 %v700, 0.0
        %v779 = vmax.f32 %v702, 0.0
        %v780 = vmax.f32 %v704, 0.0
        %v781 = vmax.f32 %v706, 0.0
        %v782 = vmax.f32 %v710, 0.0
        %v783 = vmax.f32 %v712, 0.0
        %v784 = vmax.f32 %v714, 0.0
        %v785 = vmax.f32 %v716, 0.0
        %v786 = vmax.f32 %v720, 0.0
        %v787 = vmax.f32 %v722, 0.0
        %v788 = vmax.f32 %v724, 0.0
        %v789 = vmax.f32 %v726, 0.0
        %v790 = vmax.f32 %v730, 0.0
        %v791 = vmax.f32 %v732, 0.0
        %v792 = vmax.f32 %v734, 0.0
        %v793 = vmax.f32 %v736, 0.0
        %v794 = vmax.f32 %v740, 0.0
        %v795 = vmax.f32 %v742, 0.0
        %v796 = vmax.f32 %v744, 0.0
        %v797 = vmax.f32 %v746, 0.0
        %v798 = vmax.f32 %v750, 0.0
        %v799 = vmax.f32 %v752, 0.0
        %v800 = vmax.f32 %v754, 0.0
        %v801 = vmax.f32 %v756, 0.0
        %v802 = vmax.f32 %v760, 0.0
        %v803 = vmax.f32 %v762, 0.0
        %v804 = vmax.f32 %v764, 0.0
        %v805 = vmax.f32 %v766, 0.0
        %v806 = vmax.f32 %v770, 0.0
        %v807 = vmax.f32 %v772, 0.0
        %v808 = vmax.f32 %v774, 0.0
        %v809 = vmax.f32 %v776, 0.0
        %v810 = vpack.c.bf16 %v780, %v778
        %v811 = vpack.c.bf16 %v781, %v779
        %v812 = vpack.c.bf16 %v784, %v782
        %v813 = vpack.c.bf16 %v785, %v783
        %v814 = vpack.c.bf16 %v788, %v786
        %v815 = vpack.c.bf16 %v789, %v787
        %v816 = vpack.c.bf16 %v792, %v790
        %v817 = vpack.c.bf16 %v793, %v791
        %v818 = vpack.c.bf16 %v796, %v794
        %v819 = vpack.c.bf16 %v797, %v795
        %v820 = vpack.c.bf16 %v800, %v798
        %v821 = vpack.c.bf16 %v801, %v799
        %v822 = vpack.c.bf16 %v804, %v802
        %v823 = vpack.c.bf16 %v805, %v803
        %v824 = vpack.c.bf16 %v808, %v806
        %v825 = vpack.c.bf16 %v809, %v807
        %v826 = vld [vmem:[#allocation7] sm:$0xff]
        %v827 = vld [vmem:[#allocation7 + $0x8] sm:$0xff]
        %v828 = vld [vmem:[#allocation7 + $0x10] sm:$0xff]
        %v829 = vld [vmem:[#allocation7 + $0x18] sm:$0xff]
        %v830 = vld [vmem:[#allocation7 + $0x20] sm:$0xff]
        %v831 = vld [vmem:[#allocation7 + $0x28] sm:$0xff]
        %v832 = vld [vmem:[#allocation7 + $0x30] sm:$0xff]
        %v833 = vld [vmem:[#allocation7 + $0x38] sm:$0xff]
        %v834 = vld [vmem:[#allocation7 + $0x40] sm:$0xff]
        %v835 = vld [vmem:[#allocation7 + $0x48] sm:$0xff]
        %v836 = vld [vmem:[#allocation7 + $0x50] sm:$0xff]
        %v837 = vld [vmem:[#allocation7 + $0x58] sm:$0xff]
        %v838 = vld [vmem:[#allocation7 + $0x60] sm:$0xff]
        %v839 = vld [vmem:[#allocation7 + $0x68] sm:$0xff]
        %v840 = vld [vmem:[#allocation7 + $0x70] sm:$0xff]
        %v841 = vld [vmem:[#allocation7 + $0x78] sm:$0xff]
        %v842 = vld [vmem:[#allocation7 + $0x80] sm:$0xff]
        %v843 = vld [vmem:[#allocation7 + $0x88] sm:$0xff]
        %v844 = vld [vmem:[#allocation7 + $0x90] sm:$0xff]
        %v845 = vld [vmem:[#allocation7 + $0x98] sm:$0xff]
        %v846 = vld [vmem:[#allocation7 + $0xa0] sm:$0xff]
        %v847 = vld [vmem:[#allocation7 + $0xa8] sm:$0xff]
        %v848 = vld [vmem:[#allocation7 + $0xb0] sm:$0xff]
        %v849 = vld [vmem:[#allocation7 + $0xb8] sm:$0xff]
        %v850 = vld [vmem:[#allocation7 + $0xc0] sm:$0xff]
        %v851 = vld [vmem:[#allocation7 + $0xc8] sm:$0xff]
        %v852 = vld [vmem:[#allocation7 + $0xd0] sm:$0xff]
        %v853 = vld [vmem:[#allocation7 + $0xd8] sm:$0xff]
        %v854 = vld [vmem:[#allocation7 + $0xe0] sm:$0xff]
        %v855 = vld [vmem:[#allocation7 + $0xe8] sm:$0xff]
        %v856 = vld [vmem:[#allocation7 + $0xf0] sm:$0xff]
        %v857 = vld [vmem:[#allocation7 + $0xf8] sm:$0xff]
        %v858 = vld [vmem:[%s4] sm:$0x3]
        %v860 = vlaneseq
        %v861 = vshrl.u32 %v860, 7
        %v862 = vsub.s32 0, %v861
        %v863 = vrot.slane %v858, %v862
        %v864 = vlaneseq
        %v865 = vshrl.u32 %v864, 7
        %v866 = vsub.s32 1, %v865
        %v867 = vrot.slane %v858, %v866
        %v902 = vunpack.c.l.b16 %v826
        %v903 = vunpack.c.h.b16 %v826
        %v904 = vunpack.c.l.b16 %v827
        %v905 = vunpack.c.h.b16 %v827
        %v906 = vunpack.c.l.b16 %v828
        %v907 = vunpack.c.h.b16 %v828
        %v908 = vunpack.c.l.b16 %v829
        %v909 = vunpack.c.h.b16 %v829
        %v910 = vunpack.c.l.b16 %v830
        %v911 = vunpack.c.h.b16 %v830
        %v912 = vunpack.c.l.b16 %v831
        %v913 = vunpack.c.h.b16 %v831
        %v914 = vunpack.c.l.b16 %v832
        %v915 = vunpack.c.h.b16 %v832
        %v916 = vunpack.c.l.b16 %v833
        %v917 = vunpack.c.h.b16 %v833
        %v918 = vunpack.c.l.b16 %v834
        %v919 = vunpack.c.h.b16 %v834
        %v920 = vunpack.c.l.b16 %v835
        %v921 = vunpack.c.h.b16 %v835
        %v922 = vunpack.c.l.b16 %v836
        %v923 = vunpack.c.h.b16 %v836
        %v924 = vunpack.c.l.b16 %v837
        %v925 = vunpack.c.h.b16 %v837
        %v926 = vunpack.c.l.b16 %v838
        %v927 = vunpack.c.h.b16 %v838
        %v928 = vunpack.c.l.b16 %v839
        %v929 = vunpack.c.h.b16 %v839
        %v930 = vunpack.c.l.b16 %v840
        %v931 = vunpack.c.h.b16 %v840
        %v932 = vunpack.c.l.b16 %v841
        %v933 = vunpack.c.h.b16 %v841
        %v934 = vunpack.c.l.b16 %v842
        %v935 = vunpack.c.h.b16 %v842
        %v936 = vunpack.c.l.b16 %v843
        %v937 = vunpack.c.h.b16 %v843
        %v938 = vunpack.c.l.b16 %v844
        %v939 = vunpack.c.h.b16 %v844
        %v940 = vunpack.c.l.b16 %v845
        %v941 = vunpack.c.h.b16 %v845
        %v942 = vunpack.c.l.b16 %v846
        %v943 = vunpack.c.h.b16 %v846
        %v944 = vunpack.c.l.b16 %v847
        %v945 = vunpack.c.h.b16 %v847
        %v946 = vunpack.c.l.b16 %v848
        %v947 = vunpack.c.h.b16 %v848
        %v948 = vunpack.c.l.b16 %v849
        %v949 = vunpack.c.h.b16 %v849
        %v950 = vunpack.c.l.b16 %v850
        %v951 = vunpack.c.h.b16 %v850
        %v952 = vunpack.c.l.b16 %v851
        %v953 = vunpack.c.h.b16 %v851
        %v954 = vunpack.c.l.b16 %v852
        %v955 = vunpack.c.h.b16 %v852
        %v956 = vunpack.c.l.b16 %v853
        %v957 = vunpack.c.h.b16 %v853
        %v958 = vunpack.c.l.b16 %v854
        %v959 = vunpack.c.h.b16 %v854
        %v960 = vunpack.c.l.b16 %v855
        %v961 = vunpack.c.h.b16 %v855
        %v962 = vunpack.c.l.b16 %v856
        %v963 = vunpack.c.h.b16 %v856
        %v964 = vunpack.c.l.b16 %v857
        %v965 = vunpack.c.h.b16 %v857
        %v966 = vpack.c.b16 %v904, %v902
        %v967 = vpack.c.b16 %v905, %v903
        %v968 = vpack.c.b16 %v908, %v906
        %v969 = vpack.c.b16 %v909, %v907
        %v970 = vpack.c.b16 %v912, %v910
        %v971 = vpack.c.b16 %v913, %v911
        %v972 = vpack.c.b16 %v916, %v914
        %v973 = vpack.c.b16 %v917, %v915
        %v974 = vpack.c.b16 %v920, %v918
        %v975 = vpack.c.b16 %v921, %v919
        %v976 = vpack.c.b16 %v924, %v922
        %v977 = vpack.c.b16 %v925, %v923
        %v978 = vpack.c.b16 %v928, %v926
        %v979 = vpack.c.b16 %v929, %v927
        %v980 = vpack.c.b16 %v932, %v930
        %v981 = vpack.c.b16 %v933, %v931
        %v982 = vpack.c.b16 %v936, %v934
        %v983 = vpack.c.b16 %v937, %v935
        %v984 = vpack.c.b16 %v940, %v938
        %v985 = vpack.c.b16 %v941, %v939
        %v986 = vpack.c.b16 %v944, %v942
        %v987 = vpack.c.b16 %v945, %v943
        %v988 = vpack.c.b16 %v948, %v946
        %v989 = vpack.c.b16 %v949, %v947
        %v990 = vpack.c.b16 %v952, %v950
        %v991 = vpack.c.b16 %v953, %v951
        %v992 = vpack.c.b16 %v956, %v954
        %v993 = vpack.c.b16 %v957, %v955
        %v994 = vpack.c.b16 %v960, %v958
        %v995 = vpack.c.b16 %v961, %v959
        %v996 = vpack.c.b16 %v964, %v962
        %v997 = vpack.c.b16 %v965, %v963
        %1030 = vmatprep.subr.bf16.mxu0 %v967
        %1031 = vmatpush1.bf16.msra.mxu0 %v966
        %1032 = vmatprep.subr.bf16.mxu0 %v969
        %1033 = vmatpush1.bf16.msra.mxu0 %v968
        %1034 = vmatprep.subr.bf16.mxu0 %v971
        %1035 = vmatpush1.bf16.msra.mxu0 %v970
        %1036 = vmatprep.subr.bf16.mxu0 %v973
        %1037 = vmatpush1.bf16.msra.mxu0 %v972
        %1038 = vmatprep.subr.bf16.mxu0 %v975
        %1039 = vmatpush1.bf16.msra.mxu0 %v974
        %1040 = vmatprep.subr.bf16.mxu0 %v977
        %1041 = vmatpush1.bf16.msra.mxu0 %v976
        %1042 = vmatprep.subr.bf16.mxu0 %v979
        %1043 = vmatpush1.bf16.msra.mxu0 %v978
        %1044 = vmatprep.subr.bf16.mxu0 %v981
        %1045 = vmatpush1.bf16.msra.mxu0 %v980
        %1046 = vmatprep.subr.bf16.mxu0 %v983
        %1047 = vmatpush1.bf16.msra.mxu0 %v982
        %1048 = vmatprep.subr.bf16.mxu0 %v985
        %1049 = vmatpush1.bf16.msra.mxu0 %v984
        %1050 = vmatprep.subr.bf16.mxu0 %v987
        %1051 = vmatpush1.bf16.msra.mxu0 %v986
        %1052 = vmatprep.subr.bf16.mxu0 %v989
        %1053 = vmatpush1.bf16.msra.mxu0 %v988
        %1054 = vmatprep.subr.bf16.mxu0 %v991
        %1055 = vmatpush1.bf16.msra.mxu0 %v990
        %1056 = vmatprep.subr.bf16.mxu0 %v993
        %1057 = vmatpush1.bf16.msra.mxu0 %v992
        %1058 = vmatprep.subr.bf16.mxu0 %v995
        %1059 = vmatpush1.bf16.msra.mxu0 %v994
        %1060 = vmatprep.subr.bf16.mxu0 %v997
        %1061 = vmatpush1.bf16.msra.mxu0 %v996
        %1062 = vmatprep.mubr.bf16.mxu0 %v811
        %1063 = vmatmul.mubr.bf16.gmra.mrb[0].mxu0 %v810
        %v1064 = vpop.f32.mrb[0].mxu0
        %v1065 = vadd.f32 %v863, %v1064
        %v1066 = vpop.f32.mrb[0].mxu0
        %v1067 = vadd.f32 %v867, %v1066
        %v1068 = vpop.f32.mrb[0].mxu0
        %v1069 = vadd.f32 %v863, %v1068
        %v1070 = vpop.f32.mrb[0].mxu0
        %v1071 = vadd.f32 %v867, %v1070
        %1072 = vmatprep.mubr.bf16.mxu0 %v813
        %1073 = vmatmul.mubr.bf16.gmra.mrb[0].mxu0 %v812
        %v1074 = vpop.f32.mrb[0].mxu0
        %v1075 = vadd.f32 %v863, %v1074
        %v1076 = vpop.f32.mrb[0].mxu0
        %v1077 = vadd.f32 %v867, %v1076
        %v1078 = vpop.f32.mrb[0].mxu0
        %v1079 = vadd.f32 %v863, %v1078
        %v1080 = vpop.f32.mrb[0].mxu0
        %v1081 = vadd.f32 %v867, %v1080
        %1082 = vmatprep.mubr.bf16.mxu0 %v815
        %1083 = vmatmul.mubr.bf16.gmra.mrb[0].mxu0 %v814
        %v1084 = vpop.f32.mrb[0].mxu0
        %v1085 = vadd.f32 %v863, %v1084
        %v1086 = vpop.f32.mrb[0].mxu0
        %v1087 = vadd.f32 %v867, %v1086
        %v1088 = vpop.f32.mrb[0].mxu0
        %v1089 = vadd.f32 %v863, %v1088
        %v1090 = vpop.f32.mrb[0].mxu0
        %v1091 = vadd.f32 %v867, %v1090
        %1092 = vmatprep.mubr.bf16.mxu0 %v817
        %1093 = vmatmul.mubr.bf16.gmra.mrb[0].mxu0 %v816
        %v1094 = vpop.f32.mrb[0].mxu0
        %v1095 = vadd.f32 %v863, %v1094
        %v1096 = vpop.f32.mrb[0].mxu0
        %v1097 = vadd.f32 %v867, %v1096
        %v1098 = vpop.f32.mrb[0].mxu0
        %v1099 = vadd.f32 %v863, %v1098
        %v1100 = vpop.f32.mrb[0].mxu0
        %v1101 = vadd.f32 %v867, %v1100
        %1102 = vmatprep.mubr.bf16.mxu0 %v819
        %1103 = vmatmul.mubr.bf16.gmra.mrb[0].mxu0 %v818
        %v1104 = vpop.f32.mrb[0].mxu0
        %v1105 = vadd.f32 %v863, %v1104
        %v1106 = vpop.f32.mrb[0].mxu0
        %v1107 = vadd.f32 %v867, %v1106
        %v1108 = vpop.f32.mrb[0].mxu0
        %v1109 = vadd.f32 %v863, %v1108
        %v1110 = vpop.f32.mrb[0].mxu0
        %v1111 = vadd.f32 %v867, %v1110
        %1112 = vmatprep.mubr.bf16.mxu0 %v821
        %1113 = vmatmul.mubr.bf16.gmra.mrb[0].mxu0 %v820
        %v1114 = vpop.f32.mrb[0].mxu0
        %v1115 = vadd.f32 %v863, %v1114
        %v1116 = vpop.f32.mrb[0].mxu0
        %v1117 = vadd.f32 %v867, %v1116
        %v1118 = vpop.f32.mrb[0].mxu0
        %v1119 = vadd.f32 %v863, %v1118
        %v1120 = vpop.f32.mrb[0].mxu0
        %v1121 = vadd.f32 %v867, %v1120
        %1122 = vmatprep.mubr.bf16.mxu0 %v823
        %1123 = vmatmul.mubr.bf16.gmra.mrb[0].mxu0 %v822
        %v1124 = vpop.f32.mrb[0].mxu0
        %v1125 = vadd.f32 %v863, %v1124
        %v1126 = vpop.f32.mrb[0].mxu0
        %v1127 = vadd.f32 %v867, %v1126
        %v1128 = vpop.f32.mrb[0].mxu0
        %v1129 = vadd.f32 %v863, %v1128
        %v1130 = vpop.f32.mrb[0].mxu0
        %v1131 = vadd.f32 %v867, %v1130
        %1132 = vmatprep.mubr.bf16.mxu0 %v825
        %1133 = vmatmul.mubr.bf16.gmra.mrb[0].mxu0 %v824
        %v1134 = vpop.f32.mrb[0].mxu0
        %v1135 = vadd.f32 %v863, %v1134
        %v1136 = vpop.f32.mrb[0].mxu0
        %v1137 = vadd.f32 %v867, %v1136
        %v1138 = vpop.f32.mrb[0].mxu0
        %v1139 = vadd.f32 %v863, %v1138
        %v1140 = vpop.f32.mrb[0].mxu0
        %v1141 = vadd.f32 %v867, %v1140
        %1142 = vdwg.mxu0
        %v1143 = vmax.f32 %v1065, 0.0
        %v1144 = vmax.f32 %v1067, 0.0
        %v1145 = vmax.f32 %v1069, 0.0
        %v1146 = vmax.f32 %v1071, 0.0
        %v1147 = vmax.f32 %v1075, 0.0
        %v1148 = vmax.f32 %v1077, 0.0
        %v1149 = vmax.f32 %v1079, 0.0
        %v1150 = vmax.f32 %v1081, 0.0
        %v1151 = vmax.f32 %v1085, 0.0
        %v1152 = vmax.f32 %v1087, 0.0
        %v1153 = vmax.f32 %v1089, 0.0
        %v1154 = vmax.f32 %v1091, 0.0
        %v1155 = vmax.f32 %v1095, 0.0
        %v1156 = vmax.f32 %v1097, 0.0
        %v1157 = vmax.f32 %v1099, 0.0
        %v1158 = vmax.f32 %v1101, 0.0
        %v1159 = vmax.f32 %v1105, 0.0
        %v1160 = vmax.f32 %v1107, 0.0
        %v1161 = vmax.f32 %v1109, 0.0
        %v1162 = vmax.f32 %v1111, 0.0
        %v1163 = vmax.f32 %v1115, 0.0
        %v1164 = vmax.f32 %v1117, 0.0
        %v1165 = vmax.f32 %v1119, 0.0
        %v1166 = vmax.f32 %v1121, 0.0
        %v1167 = vmax.f32 %v1125, 0.0
        %v1168 = vmax.f32 %v1127, 0.0
        %v1169 = vmax.f32 %v1129, 0.0
        %v1170 = vmax.f32 %v1131, 0.0
        %v1171 = vmax.f32 %v1135, 0.0
        %v1172 = vmax.f32 %v1137, 0.0
        %v1173 = vmax.f32 %v1139, 0.0
        %v1174 = vmax.f32 %v1141, 0.0
        %v1175 = vpack.c.bf16 %v1145, %v1143
        %v1176 = vpack.c.bf16 %v1146, %v1144
        %v1177 = vpack.c.bf16 %v1149, %v1147
        %v1178 = vpack.c.bf16 %v1150, %v1148
        %v1179 = vpack.c.bf16 %v1153, %v1151
        %v1180 = vpack.c.bf16 %v1154, %v1152
        %v1181 = vpack.c.bf16 %v1157, %v1155
        %v1182 = vpack.c.bf16 %v1158, %v1156
        %v1183 = vpack.c.bf16 %v1161, %v1159
        %v1184 = vpack.c.bf16 %v1162, %v1160
        %v1185 = vpack.c.bf16 %v1165, %v1163
        %v1186 = vpack.c.bf16 %v1166, %v1164
        %v1187 = vpack.c.bf16 %v1169, %v1167
        %v1188 = vpack.c.bf16 %v1170, %v1168
        %v1189 = vpack.c.bf16 %v1173, %v1171
        %v1190 = vpack.c.bf16 %v1174, %v1172
        %v1191 = vld [vmem:[#allocation8] sm:$0xff]
        %v1192 = vld [vmem:[#allocation8 + $0x8] sm:$0xff]
        %v1193 = vld [vmem:[#allocation8 + $0x10] sm:$0xff]
        %v1194 = vld [vmem:[#allocation8 + $0x18] sm:$0xff]
        %v1195 = vld [vmem:[#allocation8 + $0x20] sm:$0xff]
        %v1196 = vld [vmem:[#allocation8 + $0x28] sm:$0xff]
        %v1197 = vld [vmem:[#allocation8 + $0x30] sm:$0xff]
        %v1198 = vld [vmem:[#allocation8 + $0x38] sm:$0xff]
        %v1199 = vld [vmem:[#allocation8 + $0x40] sm:$0xff]
        %v1200 = vld [vmem:[#allocation8 + $0x48] sm:$0xff]
        %v1201 = vld [vmem:[#allocation8 + $0x50] sm:$0xff]
        %v1202 = vld [vmem:[#allocation8 + $0x58] sm:$0xff]
        %v1203 = vld [vmem:[#allocation8 + $0x60] sm:$0xff]
        %v1204 = vld [vmem:[#allocation8 + $0x68] sm:$0xff]
        %v1205 = vld [vmem:[#allocation8 + $0x70] sm:$0xff]
        %v1206 = vld [vmem:[#allocation8 + $0x78] sm:$0xff]
        %v1207 = vld [vmem:[#allocation8 + $0x80] sm:$0xff]
        %v1208 = vld [vmem:[#allocation8 + $0x88] sm:$0xff]
        %v1209 = vld [vmem:[#allocation8 + $0x90] sm:$0xff]
        %v1210 = vld [vmem:[#allocation8 + $0x98] sm:$0xff]
        %v1211 = vld [vmem:[#allocation8 + $0xa0] sm:$0xff]
        %v1212 = vld [vmem:[#allocation8 + $0xa8] sm:$0xff]
        %v1213 = vld [vmem:[#allocation8 + $0xb0] sm:$0xff]
        %v1214 = vld [vmem:[#allocation8 + $0xb8] sm:$0xff]
        %v1215 = vld [vmem:[#allocation8 + $0xc0] sm:$0xff]
        %v1216 = vld [vmem:[#allocation8 + $0xc8] sm:$0xff]
        %v1217 = vld [vmem:[#allocation8 + $0xd0] sm:$0xff]
        %v1218 = vld [vmem:[#allocation8 + $0xd8] sm:$0xff]
        %v1219 = vld [vmem:[#allocation8 + $0xe0] sm:$0xff]
        %v1220 = vld [vmem:[#allocation8 + $0xe8] sm:$0xff]
        %v1221 = vld [vmem:[#allocation8 + $0xf0] sm:$0xff]
        %v1222 = vld [vmem:[#allocation8 + $0xf8] sm:$0xff]
        %v1223 = vld [vmem:[%s6] sm:$0x3]
        %v1225 = vlaneseq
        %v1226 = vshrl.u32 %v1225, 7
        %v1227 = vsub.s32 0, %v1226
        %v1228 = vrot.slane %v1223, %v1227
        %v1229 = vlaneseq
        %v1230 = vshrl.u32 %v1229, 7
        %v1231 = vsub.s32 1, %v1230
        %v1232 = vrot.slane %v1223, %v1231
        %v1267 = vunpack.c.l.b16 %v1191
        %v1268 = vunpack.c.h.b16 %v1191
        %v1269 = vunpack.c.l.b16 %v1192
        %v1270 = vunpack.c.h.b16 %v1192
        %v1271 = vunpack.c.l.b16 %v1193
        %v1272 = vunpack.c.h.b16 %v1193
        %v1273 = vunpack.c.l.b16 %v1194
        %v1274 = vunpack.c.h.b16 %v1194
        %v1275 = vunpack.c.l.b16 %v1195
        %v1276 = vunpack.c.h.b16 %v1195
        %v1277 = vunpack.c.l.b16 %v1196
        %v1278 = vunpack.c.h.b16 %v1196
        %v1279 = vunpack.c.l.b16 %v1197
        %v1280 = vunpack.c.h.b16 %v1197
        %v1281 = vunpack.c.l.b16 %v1198
        %v1282 = vunpack.c.h.b16 %v1198
        %v1283 = vunpack.c.l.b16 %v1199
        %v1284 = vunpack.c.h.b16 %v1199
        %v1285 = vunpack.c.l.b16 %v1200
        %v1286 = vunpack.c.h.b16 %v1200
        %v1287 = vunpack.c.l.b16 %v1201
        %v1288 = vunpack.c.h.b16 %v1201
        %v1289 = vunpack.c.l.b16 %v1202
        %v1290 = vunpack.c.h.b16 %v1202
        %v1291 = vunpack.c.l.b16 %v1203
        %v1292 = vunpack.c.h.b16 %v1203
        %v1293 = vunpack.c.l.b16 %v1204
        %v1294 = vunpack.c.h.b16 %v1204
        %v1295 = vunpack.c.l.b16 %v1205
        %v1296 = vunpack.c.h.b16 %v1205
        %v1297 = vunpack.c.l.b16 %v1206
        %v1298 = vunpack.c.h.b16 %v1206
        %v1299 = vunpack.c.l.b16 %v1207
        %v1300 = vunpack.c.h.b16 %v1207
        %v1301 = vunpack.c.l.b16 %v1208
        %v1302 = vunpack.c.h.b16 %v1208
        %v1303 = vunpack.c.l.b16 %v1209
        %v1304 = vunpack.c.h.b16 %v1209
        %v1305 = vunpack.c.l.b16 %v1210
        %v1306 = vunpack.c.h.b16 %v1210
        %v1307 = vunpack.c.l.b16 %v1211
        %v1308 = vunpack.c.h.b16 %v1211
        %v1309 = vunpack.c.l.b16 %v1212
        %v1310 = vunpack.c.h.b16 %v1212
        %v1311 = vunpack.c.l.b16 %v1213
        %v1312 = vunpack.c.h.b16 %v1213
        %v1313 = vunpack.c.l.b16 %v1214
        %v1314 = vunpack.c.h.b16 %v1214
        %v1315 = vunpack.c.l.b16 %v1215
        %v1316 = vunpack.c.h.b16 %v1215
        %v1317 = vunpack.c.l.b16 %v1216
        %v1318 = vunpack.c.h.b16 %v1216
        %v1319 = vunpack.c.l.b16 %v1217
        %v1320 = vunpack.c.h.b16 %v1217
        %v1321 = vunpack.c.l.b16 %v1218
        %v1322 = vunpack.c.h.b16 %v1218
        %v1323 = vunpack.c.l.b16 %v1219
        %v1324 = vunpack.c.h.b16 %v1219
        %v1325 = vunpack.c.l.b16 %v1220
        %v1326 = vunpack.c.h.b16 %v1220
        %v1327 = vunpack.c.l.b16 %v1221
        %v1328 = vunpack.c.h.b16 %v1221
        %v1329 = vunpack.c.l.b16 %v1222
        %v1330 = vunpack.c.h.b16 %v1222
        %v1331 = vpack.c.b16 %v1269, %v1267
        %v1332 = vpack.c.b16 %v1270, %v1268
        %v1333 = vpack.c.b16 %v1273, %v1271
        %v1334 = vpack.c.b16 %v1274, %v1272
        %v1335 = vpack.c.b16 %v1277, %v1275
        %v1336 = vpack.c.b16 %v1278, %v1276
        %v1337 = vpack.c.b16 %v1281, %v1279
        %v1338 = vpack.c.b16 %v1282, %v1280
        %v1339 = vpack.c.b16 %v1285, %v1283
        %v1340 = vpack.c.b16 %v1286, %v1284
        %v1341 = vpack.c.b16 %v1289, %v1287
        %v1342 = vpack.c.b16 %v1290, %v1288
        %v1343 = vpack.c.b16 %v1293, %v1291
        %v1344 = vpack.c.b16 %v1294, %v1292
        %v1345 = vpack.c.b16 %v1297, %v1295
        %v1346 = vpack.c.b16 %v1298, %v1296
        %v1347 = vpack.c.b16 %v1301, %v1299
        %v1348 = vpack.c.b16 %v1302, %v1300
        %v1349 = vpack.c.b16 %v1305, %v1303
        %v1350 = vpack.c.b16 %v1306, %v1304
        %v1351 = vpack.c.b16 %v1309, %v1307
        %v1352 = vpack.c.b16 %v1310, %v1308
        %v1353 = vpack.c.b16 %v1313, %v1311
        %v1354 = vpack.c.b16 %v1314, %v1312
        %v1355 = vpack.c.b16 %v1317, %v1315
        %v1356 = vpack.c.b16 %v1318, %v1316
        %v1357 = vpack.c.b16 %v1321, %v1319
        %v1358 = vpack.c.b16 %v1322, %v1320
        %v1359 = vpack.c.b16 %v1325, %v1323
        %v1360 = vpack.c.b16 %v1326, %v1324
        %v1361 = vpack.c.b16 %v1329, %v1327
        %v1362 = vpack.c.b16 %v1330, %v1328
        %1395 = vmatprep.subr.bf16.mxu0 %v1332
        %1396 = vmatpush1.bf16.msra.mxu0 %v1331
        %1397 = vmatprep.subr.bf16.mxu0 %v1334
        %1398 = vmatpush1.bf16.msra.mxu0 %v1333
        %1399 = vmatprep.subr.bf16.mxu0 %v1336
        %1400 = vmatpush1.bf16.msra.mxu0 %v1335
        %1401 = vmatprep.subr.bf16.mxu0 %v1338
        %1402 = vmatpush1.bf16.msra.mxu0 %v1337
        %1403 = vmatprep.subr.bf16.mxu0 %v1340
        %1404 = vmatpush1.bf16.msra.mxu0 %v1339
        %1405 = vmatprep.subr.bf16.mxu0 %v1342
        %1406 = vmatpush1.bf16.msra.mxu0 %v1341
        %1407 = vmatprep.subr.bf16.mxu0 %v1344
        %1408 = vmatpush1.bf16.msra.mxu0 %v1343
        %1409 = vmatprep.subr.bf16.mxu0 %v1346
        %1410 = vmatpush1.bf16.msra.mxu0 %v1345
        %1411 = vmatprep.subr.bf16.mxu0 %v1348
        %1412 = vmatpush1.bf16.msra.mxu0 %v1347
        %1413 = vmatprep.subr.bf16.mxu0 %v1350
        %1414 = vmatpush1.bf16.msra.mxu0 %v1349
        %1415 = vmatprep.subr.bf16.mxu0 %v1352
        %1416 = vmatpush1.bf16.msra.mxu0 %v1351
        %1417 = vmatprep.subr.bf16.mxu0 %v1354
        %1418 = vmatpush1.bf16.msra.mxu0 %v1353
        %1419 = vmatprep.subr.bf16.mxu0 %v1356
        %1420 = vmatpush1.bf16.msra.mxu0 %v1355
        %1421 = vmatprep.subr.bf16.mxu0 %v1358
        %1422 = vmatpush1.bf16.msra.mxu0 %v1357
        %1423 = vmatprep.subr.bf16.mxu0 %v1360
        %1424 = vmatpush1.bf16.msra.mxu0 %v1359
        %1425 = vmatprep.subr.bf16.mxu0 %v1362
        %1426 = vmatpush1.bf16.msra.mxu0 %v1361
        %1427 = vmatprep.mubr.bf16.mxu0 %v1176
        %1428 = vmatmul.mubr.bf16.gmra.mrb[0].mxu0 %v1175
        %v1429 = vpop.f32.mrb[0].mxu0
        %v1430 = vadd.f32 %v1228, %v1429
        %v1431 = vpop.f32.mrb[0].mxu0
        %v1432 = vadd.f32 %v1232, %v1431
        %v1433 = vpop.f32.mrb[0].mxu0
        %v1434 = vadd.f32 %v1228, %v1433
        %v1435 = vpop.f32.mrb[0].mxu0
        %v1436 = vadd.f32 %v1232, %v1435
        %1437 = vmatprep.mubr.bf16.mxu0 %v1178
        %1438 = vmatmul.mubr.bf16.gmra.mrb[0].mxu0 %v1177
        %v1439 = vpop.f32.mrb[0].mxu0
        %v1440 = vadd.f32 %v1228, %v1439
        %v1441 = vpop.f32.mrb[0].mxu0
        %v1442 = vadd.f32 %v1232, %v1441
        %v1443 = vpop.f32.mrb[0].mxu0
        %v1444 = vadd.f32 %v1228, %v1443
        %v1445 = vpop.f32.mrb[0].mxu0
        %v1446 = vadd.f32 %v1232, %v1445
        %1447 = vmatprep.mubr.bf16.mxu0 %v1180
        %1448 = vmatmul.mubr.bf16.gmra.mrb[0].mxu0 %v1179
        %v1449 = vpop.f32.mrb[0].mxu0
        %v1450 = vadd.f32 %v1228, %v1449
        %v1451 = vpop.f32.mrb[0].mxu0
        %v1452 = vadd.f32 %v1232, %v1451
        %v1453 = vpop.f32.mrb[0].mxu0
        %v1454 = vadd.f32 %v1228, %v1453
        %v1455 = vpop.f32.mrb[0].mxu0
        %v1456 = vadd.f32 %v1232, %v1455
        %1457 = vmatprep.mubr.bf16.mxu0 %v1182
        %1458 = vmatmul.mubr.bf16.gmra.mrb[0].mxu0 %v1181
        %v1459 = vpop.f32.mrb[0].mxu0
        %v1460 = vadd.f32 %v1228, %v1459
        %v1461 = vpop.f32.mrb[0].mxu0
        %v1462 = vadd.f32 %v1232, %v1461
        %v1463 = vpop.f32.mrb[0].mxu0
        %v1464 = vadd.f32 %v1228, %v1463
        %v1465 = vpop.f32.mrb[0].mxu0
        %v1466 = vadd.f32 %v1232, %v1465
        %1467 = vmatprep.mubr.bf16.mxu0 %v1184
        %1468 = vmatmul.mubr.bf16.gmra.mrb[0].mxu0 %v1183
        %v1469 = vpop.f32.mrb[0].mxu0
        %v1470 = vadd.f32 %v1228, %v1469
        %v1471 = vpop.f32.mrb[0].mxu0
        %v1472 = vadd.f32 %v1232, %v1471
        %v1473 = vpop.f32.mrb[0].mxu0
        %v1474 = vadd.f32 %v1228, %v1473
        %v1475 = vpop.f32.mrb[0].mxu0
        %v1476 = vadd.f32 %v1232, %v1475
        %1477 = vmatprep.mubr.bf16.mxu0 %v1186
        %1478 = vmatmul.mubr.bf16.gmra.mrb[0].mxu0 %v1185
        %v1479 = vpop.f32.mrb[0].mxu0
        %v1480 = vadd.f32 %v1228, %v1479
        %v1481 = vpop.f32.mrb[0].mxu0
        %v1482 = vadd.f32 %v1232, %v1481
        %v1483 = vpop.f32.mrb[0].mxu0
        %v1484 = vadd.f32 %v1228, %v1483
        %v1485 = vpop.f32.mrb[0].mxu0
        %v1486 = vadd.f32 %v1232, %v1485
        %1487 = vmatprep.mubr.bf16.mxu0 %v1188
        %1488 = vmatmul.mubr.bf16.gmra.mrb[0].mxu0 %v1187
        %v1489 = vpop.f32.mrb[0].mxu0
        %v1490 = vadd.f32 %v1228, %v1489
        %v1491 = vpop.f32.mrb[0].mxu0
        %v1492 = vadd.f32 %v1232, %v1491
        %v1493 = vpop.f32.mrb[0].mxu0
        %v1494 = vadd.f32 %v1228, %v1493
        %v1495 = vpop.f32.mrb[0].mxu0
        %v1496 = vadd.f32 %v1232, %v1495
        %1497 = vmatprep.mubr.bf16.mxu0 %v1190
        %1498 = vmatmul.mubr.bf16.gmra.mrb[0].mxu0 %v1189
        %v1499 = vpop.f32.mrb[0].mxu0
        %v1500 = vadd.f32 %v1228, %v1499
        %v1501 = vpop.f32.mrb[0].mxu0
        %v1502 = vadd.f32 %v1232, %v1501
        %v1503 = vpop.f32.mrb[0].mxu0
        %v1504 = vadd.f32 %v1228, %v1503
        %v1505 = vpop.f32.mrb[0].mxu0
        %v1506 = vadd.f32 %v1232, %v1505
        %1507 = vdwg.mxu0
        %v1508 = vmax.f32 %v1430, 0.0
        %v1509 = vmax.f32 %v1432, 0.0
        %v1510 = vmax.f32 %v1434, 0.0
        %v1511 = vmax.f32 %v1436, 0.0
        %v1512 = vmax.f32 %v1440, 0.0
        %v1513 = vmax.f32 %v1442, 0.0
        %v1514 = vmax.f32 %v1444, 0.0
        %v1515 = vmax.f32 %v1446, 0.0
        %v1516 = vmax.f32 %v1450, 0.0
        %v1517 = vmax.f32 %v1452, 0.0
        %v1518 = vmax.f32 %v1454, 0.0
        %v1519 = vmax.f32 %v1456, 0.0
        %v1520 = vmax.f32 %v1460, 0.0
        %v1521 = vmax.f32 %v1462, 0.0
        %v1522 = vmax.f32 %v1464, 0.0
        %v1523 = vmax.f32 %v1466, 0.0
        %v1524 = vmax.f32 %v1470, 0.0
        %v1525 = vmax.f32 %v1472, 0.0
        %v1526 = vmax.f32 %v1474, 0.0
        %v1527 = vmax.f32 %v1476, 0.0
        %v1528 = vmax.f32 %v1480, 0.0
        %v1529 = vmax.f32 %v1482, 0.0
        %v1530 = vmax.f32 %v1484, 0.0
        %v1531 = vmax.f32 %v1486, 0.0
        %v1532 = vmax.f32 %v1490, 0.0
        %v1533 = vmax.f32 %v1492, 0.0
        %v1534 = vmax.f32 %v1494, 0.0
        %v1535 = vmax.f32 %v1496, 0.0
        %v1536 = vmax.f32 %v1500, 0.0
        %v1537 = vmax.f32 %v1502, 0.0
        %v1538 = vmax.f32 %v1504, 0.0
        %v1539 = vmax.f32 %v1506, 0.0
        %v1540 = vpack.c.bf16 %v1510, %v1508
        %v1541 = vpack.c.bf16 %v1511, %v1509
        %v1542 = vpack.c.bf16 %v1514, %v1512
        %v1543 = vpack.c.bf16 %v1515, %v1513
        %v1544 = vpack.c.bf16 %v1518, %v1516
        %v1545 = vpack.c.bf16 %v1519, %v1517
        %v1546 = vpack.c.bf16 %v1522, %v1520
        %v1547 = vpack.c.bf16 %v1523, %v1521
        %v1548 = vpack.c.bf16 %v1526, %v1524
        %v1549 = vpack.c.bf16 %v1527, %v1525
        %v1550 = vpack.c.bf16 %v1530, %v1528
        %v1551 = vpack.c.bf16 %v1531, %v1529
        %v1552 = vpack.c.bf16 %v1534, %v1532
        %v1553 = vpack.c.bf16 %v1535, %v1533
        %v1554 = vpack.c.bf16 %v1538, %v1536
        %v1555 = vpack.c.bf16 %v1539, %v1537
        %v1556 = vld [vmem:[#allocation10] sm:$0xf]
        %v1557 = vld [vmem:[#allocation10 + $0x4] sm:$0xf]
        %v1558 = vld [vmem:[#allocation10 + $0x8] sm:$0xf]
        %v1559 = vld [vmem:[#allocation10 + $0xc] sm:$0xf]
        %v1560 = vld [vmem:[#allocation10 + $0x10] sm:$0xf]
        %v1561 = vld [vmem:[#allocation10 + $0x14] sm:$0xf]
        %v1562 = vld [vmem:[#allocation10 + $0x18] sm:$0xf]
        %v1563 = vld [vmem:[#allocation10 + $0x1c] sm:$0xf]
        %v1564 = vld [vmem:[#allocation10 + $0x20] sm:$0xf]
        %v1565 = vld [vmem:[#allocation10 + $0x24] sm:$0xf]
        %v1566 = vld [vmem:[#allocation10 + $0x28] sm:$0xf]
        %v1567 = vld [vmem:[#allocation10 + $0x2c] sm:$0xf]
        %v1568 = vld [vmem:[#allocation10 + $0x30] sm:$0xf]
        %v1569 = vld [vmem:[#allocation10 + $0x34] sm:$0xf]
        %v1570 = vld [vmem:[#allocation10 + $0x38] sm:$0xf]
        %v1571 = vld [vmem:[#allocation10 + $0x3c] sm:$0xf]
        %v1572 = vld [vmem:[#allocation10 + $0x40] sm:$0xf]
        %v1573 = vld [vmem:[#allocation10 + $0x44] sm:$0xf]
        %v1574 = vld [vmem:[#allocation10 + $0x48] sm:$0xf]
        %v1575 = vld [vmem:[#allocation10 + $0x4c] sm:$0xf]
        %v1576 = vld [vmem:[#allocation10 + $0x50] sm:$0xf]
        %v1577 = vld [vmem:[#allocation10 + $0x54] sm:$0xf]
        %v1578 = vld [vmem:[#allocation10 + $0x58] sm:$0xf]
        %v1579 = vld [vmem:[#allocation10 + $0x5c] sm:$0xf]
        %v1580 = vld [vmem:[#allocation10 + $0x60] sm:$0xf]
        %v1581 = vld [vmem:[#allocation10 + $0x64] sm:$0xf]
        %v1582 = vld [vmem:[#allocation10 + $0x68] sm:$0xf]
        %v1583 = vld [vmem:[#allocation10 + $0x6c] sm:$0xf]
        %v1584 = vld [vmem:[#allocation10 + $0x70] sm:$0xf]
        %v1585 = vld [vmem:[#allocation10 + $0x74] sm:$0xf]
        %v1586 = vld [vmem:[#allocation10 + $0x78] sm:$0xf]
        %v1587 = vld [vmem:[#allocation10 + $0x7c] sm:$0xf]
        %v1588 = vld [vmem:[%s8] sm:$0x1]
        %v1590 = vlaneseq
        %v1591 = vshrl.u32 %v1590, 7
        %v1592 = vsub.s32 0, %v1591
        %v1593 = vrot.slane %v1588, %v1592
        %v1627 = vunpack.c.l.b16 %v1556
        %v1628 = vunpack.c.l.b16 %v1557
        %v1629 = vunpack.c.l.b16 %v1558
        %v1630 = vunpack.c.l.b16 %v1559
        %v1631 = vunpack.c.l.b16 %v1560
        %v1632 = vunpack.c.l.b16 %v1561
        %v1633 = vunpack.c.l.b16 %v1562
        %v1634 = vunpack.c.l.b16 %v1563
        %v1635 = vunpack.c.l.b16 %v1564
        %v1636 = vunpack.c.l.b16 %v1565
        %v1637 = vunpack.c.l.b16 %v1566
        %v1638 = vunpack.c.l.b16 %v1567
        %v1639 = vunpack.c.l.b16 %v1568
        %v1640 = vunpack.c.l.b16 %v1569
        %v1641 = vunpack.c.l.b16 %v1570
        %v1642 = vunpack.c.l.b16 %v1571
        %v1643 = vunpack.c.l.b16 %v1572
        %v1644 = vunpack.c.l.b16 %v1573
        %v1645 = vunpack.c.l.b16 %v1574
        %v1646 = vunpack.c.l.b16 %v1575
        %v1647 = vunpack.c.l.b16 %v1576
        %v1648 = vunpack.c.l.b16 %v1577
        %v1649 = vunpack.c.l.b16 %v1578
        %v1650 = vunpack.c.l.b16 %v1579
        %v1651 = vunpack.c.l.b16 %v1580
        %v1652 = vunpack.c.l.b16 %v1581
        %v1653 = vunpack.c.l.b16 %v1582
        %v1654 = vunpack.c.l.b16 %v1583
        %v1655 = vunpack.c.l.b16 %v1584
        %v1656 = vunpack.c.l.b16 %v1585
        %v1657 = vunpack.c.l.b16 %v1586
        %v1658 = vunpack.c.l.b16 %v1587
        %v1659 = vpack.c.b16 %v1628, %v1627
        %v1660 = vpack.c.b16 %v1630, %v1629
        %v1661 = vpack.c.b16 %v1632, %v1631
        %v1662 = vpack.c.b16 %v1634, %v1633
        %v1663 = vpack.c.b16 %v1636, %v1635
        %v1664 = vpack.c.b16 %v1638, %v1637
        %v1665 = vpack.c.b16 %v1640, %v1639
        %v1666 = vpack.c.b16 %v1642, %v1641
        %v1667 = vpack.c.b16 %v1644, %v1643
        %v1668 = vpack.c.b16 %v1646, %v1645
        %v1669 = vpack.c.b16 %v1648, %v1647
        %v1670 = vpack.c.b16 %v1650, %v1649
        %v1671 = vpack.c.b16 %v1652, %v1651
        %v1672 = vpack.c.b16 %v1654, %v1653
        %v1673 = vpack.c.b16 %v1656, %v1655
        %v1674 = vpack.c.b16 %v1658, %v1657
        %1691 = vmatprep.subr.bf16.mxu0 0
        %1692 = vmatpush1.bf16.msra.mxu0 %v1659
        %1693 = vmatprep.subr.bf16.mxu0 0
        %1694 = vmatpush1.bf16.msra.mxu0 %v1660
        %1695 = vmatprep.subr.bf16.mxu0 0
        %1696 = vmatpush1.bf16.msra.mxu0 %v1661
        %1697 = vmatprep.subr.bf16.mxu0 0
        %1698 = vmatpush1.bf16.msra.mxu0 %v1662
        %1699 = vmatprep.subr.bf16.mxu0 0
        %1700 = vmatpush1.bf16.msra.mxu0 %v1663
        %1701 = vmatprep.subr.bf16.mxu0 0
        %1702 = vmatpush1.bf16.msra.mxu0 %v1664
        %1703 = vmatprep.subr.bf16.mxu0 0
        %1704 = vmatpush1.bf16.msra.mxu0 %v1665
        %1705 = vmatprep.subr.bf16.mxu0 0
        %1706 = vmatpush1.bf16.msra.mxu0 %v1666
        %1707 = vmatprep.subr.bf16.mxu0 0
        %1708 = vmatpush1.bf16.msra.mxu0 %v1667
        %1709 = vmatprep.subr.bf16.mxu0 0
        %1710 = vmatpush1.bf16.msra.mxu0 %v1668
        %1711 = vmatprep.subr.bf16.mxu0 0
        %1712 = vmatpush1.bf16.msra.mxu0 %v1669
        %1713 = vmatprep.subr.bf16.mxu0 0
        %1714 = vmatpush1.bf16.msra.mxu0 %v1670
        %1715 = vmatprep.subr.bf16.mxu0 0
        %1716 = vmatpush1.bf16.msra.mxu0 %v1671
        %1717 = vmatprep.subr.bf16.mxu0 0
        %1718 = vmatpush1.bf16.msra.mxu0 %v1672
        %1719 = vmatprep.subr.bf16.mxu0 0
        %1720 = vmatpush1.bf16.msra.mxu0 %v1673
        %1721 = vmatprep.subr.bf16.mxu0 0
        %1722 = vmatpush1.bf16.msra.mxu0 %v1674
        %1723 = vmatprep.mubr.bf16.mxu0 %v1541
        %1724 = vmatmul.mubr.bf16.gmra.mrb[0].mxu0 %v1540
        %v1725 = vpop.f32.mrb[0].mxu0
        %v1726 = vadd.f32 %v1593, %v1725
        %v1727 = vpop.f32.mrb[0].mxu0
        %v1728 = vpop.f32.mrb[0].mxu0
        %v1729 = vadd.f32 %v1593, %v1728
        %v1730 = vpop.f32.mrb[0].mxu0
        %1731 = vmatprep.mubr.bf16.mxu0 %v1543
        %1732 = vmatmul.mubr.bf16.gmra.mrb[0].mxu0 %v1542
        %v1733 = vpop.f32.mrb[0].mxu0
        %v1734 = vadd.f32 %v1593, %v1733
        %v1735 = vpop.f32.mrb[0].mxu0
        %v1736 = vpop.f32.mrb[0].mxu0
        %v1737 = vadd.f32 %v1593, %v1736
        %v1738 = vpop.f32.mrb[0].mxu0
        %1739 = vmatprep.mubr.bf16.mxu0 %v1545
        %1740 = vmatmul.mubr.bf16.gmra.mrb[0].mxu0 %v1544
        %v1741 = vpop.f32.mrb[0].mxu0
        %v1742 = vadd.f32 %v1593, %v1741
        %v1743 = vpop.f32.mrb[0].mxu0
        %v1744 = vpop.f32.mrb[0].mxu0
        %v1745 = vadd.f32 %v1593, %v1744
        %v1746 = vpop.f32.mrb[0].mxu0
        %1747 = vmatprep.mubr.bf16.mxu0 %v1547
        %1748 = vmatmul.mubr.bf16.gmra.mrb[0].mxu0 %v1546
        %v1749 = vpop.f32.mrb[0].mxu0
        %v1750 = vadd.f32 %v1593, %v1749
        %v1751 = vpop.f32.mrb[0].mxu0
        %v1752 = vpop.f32.mrb[0].mxu0
        %v1753 = vadd.f32 %v1593, %v1752
        %v1754 = vpop.f32.mrb[0].mxu0
        %1755 = vmatprep.mubr.bf16.mxu0 %v1549
        %1756 = vmatmul.mubr.bf16.gmra.mrb[0].mxu0 %v1548
        %v1757 = vpop.f32.mrb[0].mxu0
        %v1758 = vadd.f32 %v1593, %v1757
        %v1759 = vpop.f32.mrb[0].mxu0
        %v1760 = vpop.f32.mrb[0].mxu0
        %v1761 = vadd.f32 %v1593, %v1760
        %v1762 = vpop.f32.mrb[0].mxu0
        %1763 = vmatprep.mubr.bf16.mxu0 %v1551
        %1764 = vmatmul.mubr.bf16.gmra.mrb[0].mxu0 %v1550
        %v1765 = vpop.f32.mrb[0].mxu0
        %v1766 = vadd.f32 %v1593, %v1765
        %v1767 = vpop.f32.mrb[0].mxu0
        %v1768 = vpop.f32.mrb[0].mxu0
        %v1769 = vadd.f32 %v1593, %v1768
        %v1770 = vpop.f32.mrb[0].mxu0
        %1771 = vmatprep.mubr.bf16.mxu0 %v1553
        %1772 = vmatmul.mubr.bf16.gmra.mrb[0].mxu0 %v1552
        %v1773 = vpop.f32.mrb[0].mxu0
        %v1774 = vadd.f32 %v1593, %v1773
        %v1775 = vpop.f32.mrb[0].mxu0
        %v1776 = vpop.f32.mrb[0].mxu0
        %v1777 = vadd.f32 %v1593, %v1776
        %v1778 = vpop.f32.mrb[0].mxu0
        %1779 = vmatprep.mubr.bf16.mxu0 %v1555
        %1780 = vmatmul.mubr.bf16.gmra.mrb[0].mxu0 %v1554
        %v1781 = vpop.f32.mrb[0].mxu0
        %v1782 = vadd.f32 %v1593, %v1781
        %v1783 = vpop.f32.mrb[0].mxu0
        %v1784 = vpop.f32.mrb[0].mxu0
        %v1785 = vadd.f32 %v1593, %v1784
        %v1786 = vpop.f32.mrb[0].mxu0
        %1787 = vdwg.mxu0
        %1788 = vst [vmem:[%s409] sm:$0xff] %v1726
        %1789 = vst [vmem:[%s409 + $0x8] sm:$0xff] %v1729
        %1790 = vst [vmem:[%s409 + $0x10] sm:$0xff] %v1734
        %1791 = vst [vmem:[%s409 + $0x18] sm:$0xff] %v1737
        %1792 = vst [vmem:[%s409 + $0x20] sm:$0xff] %v1742
        %1793 = vst [vmem:[%s409 + $0x28] sm:$0xff] %v1745
        %1794 = vst [vmem:[%s409 + $0x30] sm:$0xff] %v1750
        %1795 = vst [vmem:[%s409 + $0x38] sm:$0xff] %v1753
        %1796 = vst [vmem:[%s409 + $0x40] sm:$0xff] %v1758
        %1797 = vst [vmem:[%s409 + $0x48] sm:$0xff] %v1761
        %1798 = vst [vmem:[%s409 + $0x50] sm:$0xff] %v1766
        %1799 = vst [vmem:[%s409 + $0x58] sm:$0xff] %v1769
        %1800 = vst [vmem:[%s409 + $0x60] sm:$0xff] %v1774
        %1801 = vst [vmem:[%s409 + $0x68] sm:$0xff] %v1777
        %1802 = vst [vmem:[%s409 + $0x70] sm:$0xff] %v1782
        %1803 = vst [vmem:[%s409 + $0x78] sm:$0xff] %v1785
        %s1804 = sand.u32 %s230, 1
        %s1805 = scalar_lea.sflag [#allocation4], %s1804
        %s1806 = sand.u32 %s230, 1
        %s1807 = smul.addr %s1806, 128
        %s1808 = scalar_lea.vmem [#allocation11], %s1807
        // Predicated region
        $region77: #{_fused_mlp_call.1} parent=55 // pred_check
          %p1809 = pneg %p240
        $region78: #{_fused_mlp_call.1} parent=55 // pred_check_branch
          %1811 = sbr.rel (%p1809) target = $region80
        $region79: #{_fused_mlp_call.1} parent=55 // pred_region
          %s1812 = smul.u32 16, %s28
          %s1814 = ssub.s32 2048, 2048
          %1815 = vsyncadd %s1805, %s1814
          %s1816 = smul.addr %s1812, 128
          %s1817 = scalar_lea.hbm %s9, %s1816
          %s1818 = sshll.u32 %s1808, 4
          %s1819 = int_to_ptr.vmem [resolvable:$true] %s1818
          %1824 = dma.vmem_to_hbm [thread:$0]  %s1819, 2048, %s1817, %s1805, 128, 128, 8
        $region80: #{_fused_mlp_call.1} parent=55 // pred_fallthru
          _
      $region56: #{_fused_mlp_call.1} parent=5 // pred_fallthru
        _
      %p1825 = scmp.le.s32.totalorder 2, %s23
      // Predicated region
      $region81: #{_fused_mlp_call.1} parent=5 // pred_check
        %p1826 = pneg %p1825
      $region82: #{_fused_mlp_call.1} parent=5 // pred_check_branch
        %1828 = sbr.rel (%p1826) target = $region84
      $region83: #{_fused_mlp_call.1} parent=5 // pred_region
        %s1829 = ssub.s32 %s23, 2
        // Predicated region
        $region85: #{_fused_mlp_call.1} parent=83 // pred_check
          %p1830 = pneg %p246
        $region86: #{_fused_mlp_call.1} parent=83 // pred_check_branch
          %1832 = sbr.rel (%p1830) target = $region88
        $region87: #{_fused_mlp_call.1} parent=83 // pred_region
          %s1833 = sand.u32 %s231, 1
          %s1834 = scalar_lea.sflag [#allocation4], %s1833
          %s1835 = sand.u32 %s231, 1
          %s1836 = smul.addr %s1835, 128
          %s1837 = scalar_lea.vmem [#allocation11], %s1836
          %1838 = dma.done %s1834, 2048
        $region88: #{_fused_mlp_call.1} parent=83 // pred_fallthru
          _
      $region84: #{_fused_mlp_call.1} parent=5 // pred_fallthru
        _
    $region6: #{_fused_mlp_call.1} parent=1 // loop_footer
      %s27 = sadd.s32 1, %s23
    $region7: #{_fused_mlp_call.1} parent=1 // loop_footer_branch
      %22 = sbr.rel target = $region3
    $region8: #{_fused_mlp_call.1} parent=1 // loop_exit
      _
    %1839 = vsyncpa [#allocation3], 1
    %s1840 = scalar_lea.sflag [#allocation3], 1
    %1841 = vsyncpa %s1840, 1
    %1842 = vsyncpa [#allocation6], 1
    %1843 = vsyncpa [#allocation9], 1
    %1844 = vsyncpa [#allocation4], 1
    %s1845 = scalar_lea.sflag [#allocation4], 1
    %1846 = vsyncpa %s1845, 1

</llo_original>
